<compile_context>
chip_gen: v6e
topology: v6e:2x2x1
jax: 0.10.0
libtpu: 0.0.40
codegen_flags: <defaults>
</compile_context>

<pallas_src>
import jax
import jax.numpy as jnp
import numpy as np
from jax.experimental import pallas as pl
from jax.experimental.pallas import tpu as pltpu

B = 2           # batch
N_POINTS = 16   # points per cloud
LATENT = 16     # latent_size
BN_EPS = 1e-5
_C = 512        # lane width of the packed weight slab
_XYZ_PAD = 16   # xyz channels padded 3 -> 16 (bf16 sublane-tile aligned contraction)

# ---------------------------------------------------------------------------
# Weight slab layout: one (2960, 512) bf16 array, three row groups, all block
# offsets multiples of 16 (bf16 native tile is (16, 128)).
#   group 0 (mlp1):  rows    0: 384   w2 (lanes 0:256) + w1 (rows 0:16, lanes 256:384), w3
#   group 1 (mlp2):  rows  384:1936   w4x, w4g, w5, w6  (all full-lane)
#   group 2 (heads): rows 1936:2960   h1, [h2 | packed h3]
# ---------------------------------------------------------------------------
G0_ROWS, G1_ROWS, G2_ROWS = 384, 1552, 1024
G0_OFF = 0
G1_OFF = G0_OFF + G0_ROWS        # 384
G2_OFF = G1_OFF + G1_ROWS        # 1936
W_ROWS = G2_OFF + G2_ROWS        # 2960
B_ROWS = 16                      # bias slab rows (f32, (16, 512))


# ---------------------------------------------------------------------------
# Single fused kernel: mlp1 -> max -> mlp2 -> max -> heads -> reparameterize,
# with the weight slab manually streamed HBM -> VMEM per layer group.
# ---------------------------------------------------------------------------
def _encoder_kernel(xp_ref, e_ref, b_ref, w_hbm, out_ref, g0, g1, g2, sem):
    bf16 = jnp.bfloat16

    # Issue all three weight-group DMAs immediately; groups 1 and 2 keep
    # streaming while the MXU works on the earlier layer groups.
    cp0 = pltpu.make_async_copy(w_hbm.at[pl.ds(G0_OFF, G0_ROWS), :], g0, sem.at[0])
    cp1 = pltpu.make_async_copy(w_hbm.at[pl.ds(G1_OFF, G1_ROWS), :], g1, sem.at[1])
    cp2 = pltpu.make_async_copy(w_hbm.at[pl.ds(G2_OFF, G2_ROWS), :], g2, sem.at[2])
    cp0.start(); cp1.start(); cp2.start()

    def mm(a, wt):                       # bf16 MXU matmul, f32 accumulation
        return jnp.dot(a.astype(bf16), wt, preferred_element_type=jnp.float32)

    def cloud_max(a):                    # per-cloud max over points -> (B, 512)
        return jnp.concatenate(
            [jnp.max(a[i * N_POINTS:(i + 1) * N_POINTS], axis=0, keepdims=True)
             for i in range(B)], axis=0)

    x = xp_ref[...]                      # (B*N, 16) f32, xyz in cols 0:3
    bias = b_ref[...]                    # (16, 512) f32
    # Mask noise lanes >= LATENT so correctness never depends on wrapper padding.
    lane = jax.lax.broadcasted_iota(jnp.int32, (B, 128), 1)
    e = jnp.where(lane < LATENT, e_ref[...], 0.0)

    # ---- mlp1 (group 0): Conv(3,128)+BN+ReLU, Conv(128,256)+BN+ReLU, Conv(256,512)+BN
    cp0.wait()
    h = jnp.maximum(mm(x, g0[0:16, 256:384]) + bias[0:1, 0:128], 0.0)    # (B*N,128)
    h = jnp.maximum(mm(h, g0[0:128, 0:256]) + bias[1:2, 0:256], 0.0)     # (B*N,256)
    h = mm(h, g0[128:384, :]) + bias[2:3, :]                             # (B*N,512)

    # ---- global feature: per-cloud max over points
    g = cloud_max(h)                                                     # (B,512)

    # ---- mlp2 (group 1): Conv(515,512)+BN+ReLU (concat == weight split), +BN+ReLU, Conv
    cp1.wait()
    # global-feature term on the pooled rows (2x512x512), broadcast back to points
    gw = mm(g, g1[16:528, :])                                            # (B,512)
    gw_pp = jnp.concatenate(
        [jnp.broadcast_to(gw[i:i + 1], (N_POINTS, _C)) for i in range(B)], axis=0)
    h2 = jnp.maximum(mm(x, g1[0:16, :]) + gw_pp + bias[3:4, :], 0.0)
    h2 = jnp.maximum(mm(h2, g1[528:1040, :]) + bias[4:5, :], 0.0)
    h2 = mm(h2, g1[1040:1552, :]) + bias[5:6, :]

    # ---- per-cloud max -> 512-d feature
    feat = cloud_max(h2)                                                 # (B,512)

    # ---- heads (group 2): mean / log_var branches fused on the lane axis
    cp2.wait()
    hh = mm(feat, g2[0:512, :]) + bias[6:7, :]   # lanes 0:256 mean-branch, 256:512 var
    hm = mm(hh[:, 0:256], g2[512:768, 0:256]) + bias[7:8, 0:256]         # (B,256)
    hv = mm(hh[:, 256:512], g2[768:1024, 0:256]) + bias[7:8, 256:512]    # (B,256)
    # packed final projections:
    #   arr1 lanes = [mean | mean | log_var | 0...],  arr2 lanes = [log_var | 0...]
    arr1 = (mm(hm, g2[512:768, 256:384]) + mm(hv, g2[768:1024, 256:384])
            + bias[8:9, 0:128])
    arr2 = mm(hv, g2[768:1024, 384:512]) + bias[9:10, 0:128]

    # ---- reparameterize; emit (z | mean | log_var) as one lane-dense (B,128) store
    out_ref[...] = jnp.exp(0.5 * arr2) * e + arr1


# ---------------------------------------------------------------------------
# Parameter construction (deterministic, synthetic) + BN folding + packing
# ---------------------------------------------------------------------------
def _fold_bn(w, b, gamma, beta, rm, rv, eps=BN_EPS):
    """Fold y = BN(x @ w.T + b) into y = x @ w_t + shift (inference mode)."""
    scale = gamma / jnp.sqrt(rv + eps)
    w_t = (w.T * scale[None, :]).astype(jnp.float32)
    shift = ((b - rm) * scale + beta).astype(jnp.float32)
    return w_t, shift


def _no_bn(w, b):
    return w.T.astype(jnp.float32), b.astype(jnp.float32)


def init_params(key, zero_final_linears=True):
    """Per-layer folded (Cin, Cout) weights + (Cout,) shifts, f32."""
    keys = iter(jax.random.split(key, 96))

    def nrm(shape, std=0.05):
        return std * jax.random.normal(next(keys), shape, jnp.float32)

    def bn(c):
        gamma = 1.0 + 0.1 * jax.random.normal(next(keys), (c,), jnp.float32)
        beta = 0.05 * jax.random.normal(next(keys), (c,), jnp.float32)
        rm = 0.05 * jax.random.normal(next(keys), (c,), jnp.float32)
        rv = 0.5 + jax.random.uniform(next(keys), (c,), jnp.float32)
        return gamma, beta, rm, rv

    # ---- mlp1
    w1, c1 = _fold_bn(nrm((128, 3)), nrm((128,)), *bn(128))
    w2, c2 = _fold_bn(nrm((256, 128)), nrm((256,)), *bn(256))
    w3, c3 = _fold_bn(nrm((512, 256)), nrm((512,)), *bn(512))

    # ---- mlp2 (first conv sees torch.cat((global_emb, x)): 512 global + 3 xyz rows)
    w4_full, c4 = _fold_bn(nrm((512, 515)), nrm((512,)), *bn(512))
    w4g, w4x = w4_full[:512], w4_full[512:]          # (512,512), (3,512)
    w5, c5 = _fold_bn(nrm((512, 512)), nrm((512,)), *bn(512))
    w6, c6 = _no_bn(nrm((512, 512)), nrm((512,)))    # last conv: no BN

    # ---- heads: Linear+BN, Linear+BN, Linear
    am1, cm1 = _fold_bn(nrm((256, 512)), nrm((256,)), *bn(256))
    am2, cm2 = _fold_bn(nrm((256, 256)), nrm((256,)), *bn(256))
    av1, cv1 = _fold_bn(nrm((256, 512)), nrm((256,)), *bn(256))
    av2, cv2 = _fold_bn(nrm((256, 256)), nrm((256,)), *bn(256))
    if zero_final_linears:
        # Faithful to the PyTorch module: last Linear of both heads is zero-initialized.
        am3, cm3 = _no_bn(jnp.zeros((LATENT, 256), jnp.float32), jnp.zeros((LATENT,), jnp.float32))
        av3, cv3 = _no_bn(jnp.zeros((LATENT, 256), jnp.float32), jnp.zeros((LATENT,), jnp.float32))
    else:
        # Non-zero variant: exercises the packed-head (h3) path in the test.
        am3, cm3 = _no_bn(nrm((LATENT, 256)), nrm((LATENT,)))
        av3, cv3 = _no_bn(nrm((LATENT, 256)), nrm((LATENT,)))

    return (w1, c1, w2, c2, w3, c3, w4g, w4x, c4, w5, c5, w6, c6,
            am1, cm1, am2, cm2, am3, cm3, av1, cv1, av2, cv2, av3, cv3)


def pack_params(per_layer):
    """Pack folded weights into one 16-aligned bf16 slab + one f32 bias slab."""
    (w1, c1, w2, c2, w3, c3, w4g, w4x, c4, w5, c5, w6, c6,
     am1, cm1, am2, cm2, am3, cm3, av1, cv1, av2, cv2, av3, cv3) = per_layer

    W = jnp.zeros((W_ROWS, _C), jnp.float32)
    # ---- group 0 (mlp1): rows 0:384
    W = W.at[0:128, 0:256].set(w2)               # Conv(128,256)+BN
    W = W.at[0:3, 256:384].set(w1)               # Conv(3,128)+BN packed in w2's dead lanes
    W = W.at[128:384, :].set(w3)                 # Conv(256,512)+BN
    # ---- group 1 (mlp2): rows 384:1936
    W = W.at[384:387, :].set(w4x)                # Conv(515,512)+BN  - xyz rows
    W = W.at[400:912, :].set(w4g)                # Conv(515,512)+BN  - global-feature rows
    W = W.at[912:1424, :].set(w5)                # Conv(512,512)+BN
    W = W.at[1424:1936, :].set(w6)               # Conv(512,512)
    # ---- group 2 (heads): rows 1936:2960
    W = W.at[1936:2448, 0:256].set(am1).at[1936:2448, 256:512].set(av1)   # h1 lane-concat
    W = W.at[2448:2704, 0:256].set(am2)          # h2 mean branch (stacked)
    W = W.at[2704:2960, 0:256].set(av2)          # h2 var  branch (stacked)
    # packed final projections (arr1 region: lanes 256:384)
    W = W.at[2448:2704, 256:256 + LATENT].set(am3)   # mean    -> z slot (lanes 0:16)
    W = W.at[2448:2704, 272:272 + LATENT].set(am3)   # mean    -> mean slot (16:32)
    W = W.at[2704:2960, 288:288 + LATENT].set(av3)   # log_var -> log_var slot (32:48)
    # (arr2 region: lanes 384:512)
    W = W.at[2704:2960, 384:384 + LATENT].set(av3)   # log_var -> z slot (lanes 0:16)
    w_slab = W.astype(jnp.bfloat16)
    assert w_slab.shape == (W_ROWS, _C)

    Bb = jnp.zeros((B_ROWS, _C), jnp.float32)
    Bb = Bb.at[0, 0:128].set(c1)
    Bb = Bb.at[1, 0:256].set(c2)
    Bb = Bb.at[2, :].set(c3)
    Bb = Bb.at[3, :].set(c4)
    Bb = Bb.at[4, :].set(c5)
    Bb = Bb.at[5, :].set(c6)
    Bb = Bb.at[6, 0:256].set(cm1).at[6, 256:512].set(cv1)
    Bb = Bb.at[7, 0:256].set(cm2).at[7, 256:512].set(cv2)
    Bb = Bb.at[8, 0:LATENT].set(cm3).at[8, 16:16 + LATENT].set(cm3).at[8, 32:32 + LATENT].set(cv3)
    Bb = Bb.at[9, 0:LATENT].set(cv3)
    return w_slab, Bb


# ---------------------------------------------------------------------------
# Wrapper (layout plumbing in XLA, single fused pallas_call)
# ---------------------------------------------------------------------------
@jax.jit
def encoder_forward(x_ncl, e, w_slab, b_slab):
    """x_ncl: (B, 3, N) like the PyTorch module; returns (z, mean, log_var)."""
    x_bnc = jnp.transpose(x_ncl, (0, 2, 1)).astype(jnp.float32)       # (B, N, 3)
    xp = jnp.pad(x_bnc.reshape(B * N_POINTS, 3), ((0, 0), (0, _XYZ_PAD - 3)))
    e_pad = jnp.pad(e.astype(jnp.float32), ((0, 0), (0, 128 - LATENT)))

    packed = pl.pallas_call(
        _encoder_kernel,
        in_specs=[
            pl.BlockSpec(memory_space=pltpu.MemorySpace.VMEM),   # points  (tiny)
            pl.BlockSpec(memory_space=pltpu.MemorySpace.VMEM),   # noise   (tiny)
            pl.BlockSpec(memory_space=pltpu.MemorySpace.VMEM),   # biases  (32 KB)
            pl.BlockSpec(memory_space=pl.ANY),                   # weight slab stays in HBM
        ],
        out_specs=pl.BlockSpec(memory_space=pltpu.MemorySpace.VMEM),
        out_shape=jax.ShapeDtypeStruct((B, 128), jnp.float32),
        scratch_shapes=[
            pltpu.VMEM((G0_ROWS, _C), jnp.bfloat16),   # mlp1 weights
            pltpu.VMEM((G1_ROWS, _C), jnp.bfloat16),   # mlp2 weights
            pltpu.VMEM((G2_ROWS, _C), jnp.bfloat16),   # head weights
            pltpu.SemaphoreType.DMA((3,)),
        ],
    )(xp, e_pad, b_slab, w_slab)

    z = packed[:, 0:LATENT]
    mean = packed[:, LATENT:2 * LATENT]
    log_var = packed[:, 2 * LATENT:3 * LATENT]
    return z, mean, log_var


# ---------------------------------------------------------------------------
# Pure-JAX reference (same math, mirrors the bf16 weight/activation casts)
# ---------------------------------------------------------------------------
def _ref_forward(x_ncl, e, per_layer):
    (w1, c1, w2, c2, w3, c3, w4g, w4x, c4, w5, c5, w6, c6,
     am1, cm1, am2, cm2, am3, cm3, av1, cv1, av2, cv2, av3, cv3) = per_layer
    bf16 = jnp.bfloat16

    def mm(a, wt):
        return jnp.dot(a.astype(bf16), wt.astype(bf16), preferred_element_type=jnp.float32)

    x = jnp.transpose(x_ncl, (0, 2, 1)).astype(jnp.float32)           # (B, N, 3)
    h = jax.nn.relu(mm(x, w1) + c1)
    h = jax.nn.relu(mm(h, w2) + c2)
    h = mm(h, w3) + c3
    g = jnp.max(h, axis=1, keepdims=True)                             # (B, 1, 512)
    h2 = jax.nn.relu(mm(x, w4x) + mm(g, w4g) + c4)
    h2 = jax.nn.relu(mm(h2, w5) + c5)
    h2 = mm(h2, w6) + c6
    feat = jnp.max(h2, axis=1)                                        # (B, 512)

    hm = mm(mm(feat, am1) + cm1, am2) + cm2
    mean = mm(hm, am3) + cm3
    hv = mm(mm(feat, av1) + cv1, av2) + cv2
    log_var = mm(hv, av3) + cv3
    z = jnp.exp(0.5 * log_var) * e + mean
    return z, mean, log_var


if __name__ == "__main__":
    key = jax.random.PRNGKey(0)
    k_param, k_param2, k_x, k_e = jax.random.split(key, 4)

    # Same axis convention as the PyTorch module: (B, 3, N)
    x = jax.random.normal(k_x, (B, 3, N_POINTS), jnp.float32)
    # Reparameterization noise (torch.randn_like equivalent), generated in JAX.
    e = jax.random.normal(k_e, (B, LATENT), jnp.float32)

    # Config 1: faithful to PyTorch init (zeroed final head Linears).
    # Config 2: non-zero final head Linears, to exercise the packed-head path.
    for k, zero_final in ((k_param, True), (k_param2, False)):
        per_layer = init_params(k, zero_final_linears=zero_final)
        w_slab, b_slab = pack_params(per_layer)

        z, mean, log_var = encoder_forward(x, e, w_slab, b_slab)
        jax.block_until_ready((z, mean, log_var))

        z_r, mean_r, lv_r = _ref_forward(x, e, per_layer)
        np.testing.assert_allclose(np.asarray(z), np.asarray(z_r), rtol=2e-2, atol=2e-2)
        np.testing.assert_allclose(np.asarray(mean), np.asarray(mean_r), rtol=2e-2, atol=2e-2)
        np.testing.assert_allclose(np.asarray(log_var), np.asarray(lv_r), rtol=2e-2, atol=2e-2)

    print("KERNEL_OK")
</pallas_src>

<mosaic_0001>
module attributes {stable_mosaic.version = 11 : i64} {
  func.func @_encoder_kernel(%arg0: memref<32x16xf32, #tpu.memory_space<vmem>>, %arg1: memref<2x128xf32, #tpu.memory_space<vmem>>, %arg2: memref<16x512xf32, #tpu.memory_space<vmem>>, %arg3: memref<2960x512xbf16, #tpu.memory_space<any>>, %arg4: memref<2x128xf32, #tpu.memory_space<vmem>>, %arg5: memref<384x512xbf16, #tpu.memory_space<vmem>>, %arg6: memref<1552x512xbf16, #tpu.memory_space<vmem>>, %arg7: memref<1024x512xbf16, #tpu.memory_space<vmem>>, %arg8: memref<3x!tpu.dma_semaphore, #tpu.memory_space<semaphore_mem>>) attributes {dimension_semantics = [], scalar_prefetch = 0 : i64, scratch_operands = 4 : i64, tpu.core_type = #tpu.core_type<tc>} {
    %c0_i32 = arith.constant 0 : i32
    %c0_i32_0 = arith.constant 0 : i32
    %c0_i32_1 = arith.constant 0 : i32
    %0 = tpu.memref_slice %arg3[%c0_i32_0, %c0_i32_1] : memref<2960x512xbf16, #tpu.memory_space<any>> -> memref<384x512xbf16, #tpu.memory_space<any>>
    %1 = tpu.memref_slice %arg8[%c0_i32] : memref<3x!tpu.dma_semaphore, #tpu.memory_space<semaphore_mem>> -> memref<1x!tpu.dma_semaphore, #tpu.memory_space<semaphore_mem>>
    %2 = tpu.memref_squeeze %1 : memref<1x!tpu.dma_semaphore, #tpu.memory_space<semaphore_mem>> -> memref<!tpu.dma_semaphore, #tpu.memory_space<semaphore_mem>>
    tpu.enqueue_dma source(%0 : memref<384x512xbf16, #tpu.memory_space<any>>) target(%arg5 : memref<384x512xbf16, #tpu.memory_space<vmem>>) target_semaphore(%2 : memref<!tpu.dma_semaphore, #tpu.memory_space<semaphore_mem>>)
    %c1_i32 = arith.constant 1 : i32
    %c384_i32 = arith.constant 384 : i32
    %c0_i32_2 = arith.constant 0 : i32
    %3 = tpu.memref_slice %arg3[%c384_i32, %c0_i32_2] : memref<2960x512xbf16, #tpu.memory_space<any>> -> memref<1552x512xbf16, #tpu.memory_space<any>>
    %4 = tpu.memref_slice %arg8[%c1_i32] : memref<3x!tpu.dma_semaphore, #tpu.memory_space<semaphore_mem>> -> memref<1x!tpu.dma_semaphore, #tpu.memory_space<semaphore_mem>>
    %5 = tpu.memref_squeeze %4 : memref<1x!tpu.dma_semaphore, #tpu.memory_space<semaphore_mem>> -> memref<!tpu.dma_semaphore, #tpu.memory_space<semaphore_mem>>
    tpu.enqueue_dma source(%3 : memref<1552x512xbf16, #tpu.memory_space<any>>) target(%arg6 : memref<1552x512xbf16, #tpu.memory_space<vmem>>) target_semaphore(%5 : memref<!tpu.dma_semaphore, #tpu.memory_space<semaphore_mem>>)
    %c2_i32 = arith.constant 2 : i32
    %c1936_i32 = arith.constant 1936 : i32
    %c0_i32_3 = arith.constant 0 : i32
    %6 = tpu.memref_slice %arg3[%c1936_i32, %c0_i32_3] : memref<2960x512xbf16, #tpu.memory_space<any>> -> memref<1024x512xbf16, #tpu.memory_space<any>>
    %7 = tpu.memref_slice %arg8[%c2_i32] : memref<3x!tpu.dma_semaphore, #tpu.memory_space<semaphore_mem>> -> memref<1x!tpu.dma_semaphore, #tpu.memory_space<semaphore_mem>>
    %8 = tpu.memref_squeeze %7 : memref<1x!tpu.dma_semaphore, #tpu.memory_space<semaphore_mem>> -> memref<!tpu.dma_semaphore, #tpu.memory_space<semaphore_mem>>
    tpu.enqueue_dma source(%6 : memref<1024x512xbf16, #tpu.memory_space<any>>) target(%arg7 : memref<1024x512xbf16, #tpu.memory_space<vmem>>) target_semaphore(%8 : memref<!tpu.dma_semaphore, #tpu.memory_space<semaphore_mem>>)
    %c0 = arith.constant 0 : index
    %c0_4 = arith.constant 0 : index
    %9 = vector.load %arg0[%c0, %c0_4] : memref<32x16xf32, #tpu.memory_space<vmem>>, vector<32x16xf32>
    %c0_5 = arith.constant 0 : index
    %c0_6 = arith.constant 0 : index
    %10 = vector.load %arg2[%c0_5, %c0_6] : memref<16x512xf32, #tpu.memory_space<vmem>>, vector<16x512xf32>
    %11 = tpu.iota {dimensions = array<i32: 1>} : vector<2x128xi32>
    %c16_i32 = arith.constant 16 : i32
    %12 = vector.broadcast %c16_i32 : i32 to vector<2x128xi32>
    %13 = arith.cmpi slt, %11, %12 : vector<2x128xi32>
    %c0_7 = arith.constant 0 : index
    %c0_8 = arith.constant 0 : index
    %14 = vector.load %arg1[%c0_7, %c0_8] : memref<2x128xf32, #tpu.memory_space<vmem>>, vector<2x128xf32>
    %cst = arith.constant 0.000000e+00 : f32
    %15 = vector.broadcast %cst : f32 to vector<2x128xf32>
    %16 = arith.select %13, %14, %15 : vector<2x128xi1>, vector<2x128xf32>
    %c0_i32_9 = arith.constant 0 : i32
    %c0_i32_10 = arith.constant 0 : i32
    %c0_i32_11 = arith.constant 0 : i32
    %17 = tpu.memref_slice %arg3[%c0_i32_10, %c0_i32_11] : memref<2960x512xbf16, #tpu.memory_space<any>> -> memref<384x512xbf16, #tpu.memory_space<any>>
    %18 = tpu.memref_slice %arg8[%c0_i32_9] : memref<3x!tpu.dma_semaphore, #tpu.memory_space<semaphore_mem>> -> memref<1x!tpu.dma_semaphore, #tpu.memory_space<semaphore_mem>>
    %19 = tpu.memref_squeeze %18 : memref<1x!tpu.dma_semaphore, #tpu.memory_space<semaphore_mem>> -> memref<!tpu.dma_semaphore, #tpu.memory_space<semaphore_mem>>
    tpu.wait_dma2 semaphore(%19 : memref<!tpu.dma_semaphore, #tpu.memory_space<semaphore_mem>>) src(%17 : memref<384x512xbf16, #tpu.memory_space<any>>) dst(%arg5 : memref<384x512xbf16, #tpu.memory_space<vmem>>)
    %c0_12 = arith.constant 0 : index
    %c256 = arith.constant 256 : index
    %20 = vector.load %arg5[%c0_12, %c256] : memref<384x512xbf16, #tpu.memory_space<vmem>>, vector<16x128xbf16>
    %21 = arith.truncf %9 : vector<32x16xf32> to vector<32x16xbf16>
    %cst_13 = arith.constant dense<0.000000e+00> : vector<32x128xf32>
    %22 = tpu.matmul %21, %20, %cst_13 {dimension_numbers = #tpu.dot_dimension_numbers<[1], [0], [0], [1], [0, 0, 1, 1], [], []>} : vector<32x16xbf16>, vector<16x128xbf16>, vector<32x128xf32> -> vector<32x128xf32>
    %23 = vector.extract_strided_slice %10 {offsets = [0, 0], sizes = [1, 128], strides = [1, 1]} : vector<16x512xf32> to vector<1x128xf32>
    %24 = vector.broadcast %23 : vector<1x128xf32> to vector<32x128xf32>
    %25 = arith.addf %22, %24 : vector<32x128xf32>
    %cst_14 = arith.constant 0.000000e+00 : f32
    %26 = vector.broadcast %cst_14 : f32 to vector<32x128xf32>
    %27 = arith.maximumf %25, %26 : vector<32x128xf32>
    %c0_15 = arith.constant 0 : index
    %c0_16 = arith.constant 0 : index
    %28 = vector.load %arg5[%c0_15, %c0_16] : memref<384x512xbf16, #tpu.memory_space<vmem>>, vector<128x256xbf16>
    %29 = arith.truncf %27 : vector<32x128xf32> to vector<32x128xbf16>
    %cst_17 = arith.constant dense<0.000000e+00> : vector<32x256xf32>
    %30 = tpu.matmul %29, %28, %cst_17 {dimension_numbers = #tpu.dot_dimension_numbers<[1], [0], [0], [1], [0, 0, 1, 1], [], []>} : vector<32x128xbf16>, vector<128x256xbf16>, vector<32x256xf32> -> vector<32x256xf32>
    %31 = vector.extract_strided_slice %10 {offsets = [1, 0], sizes = [1, 256], strides = [1, 1]} : vector<16x512xf32> to vector<1x256xf32>
    %32 = vector.broadcast %31 : vector<1x256xf32> to vector<32x256xf32>
    %33 = arith.addf %30, %32 : vector<32x256xf32>
    %cst_18 = arith.constant 0.000000e+00 : f32
    %34 = vector.broadcast %cst_18 : f32 to vector<32x256xf32>
    %35 = arith.maximumf %33, %34 : vector<32x256xf32>
    %c128 = arith.constant 128 : index
    %c0_19 = arith.constant 0 : index
    %36 = vector.load %arg5[%c128, %c0_19] : memref<384x512xbf16, #tpu.memory_space<vmem>>, vector<256x512xbf16>
    %37 = arith.truncf %35 : vector<32x256xf32> to vector<32x256xbf16>
    %cst_20 = arith.constant dense<0.000000e+00> : vector<32x512xf32>
    %38 = tpu.matmul %37, %36, %cst_20 {dimension_numbers = #tpu.dot_dimension_numbers<[1], [0], [0], [1], [0, 0, 1, 1], [], []>} : vector<32x256xbf16>, vector<256x512xbf16>, vector<32x512xf32> -> vector<32x512xf32>
    %39 = vector.extract_strided_slice %10 {offsets = [2, 0], sizes = [1, 512], strides = [1, 1]} : vector<16x512xf32> to vector<1x512xf32>
    %40 = vector.broadcast %39 : vector<1x512xf32> to vector<32x512xf32>
    %41 = arith.addf %38, %40 : vector<32x512xf32>
    %42 = vector.extract_strided_slice %41 {offsets = [0, 0], sizes = [16, 512], strides = [1, 1]} : vector<32x512xf32> to vector<16x512xf32>
    %cst_21 = arith.constant dense<0xFF800000> : vector<512xf32>
    %43 = vector.multi_reduction <maximumf>, %42, %cst_21 [0] : vector<16x512xf32> to vector<512xf32>
    %44 = vector.shape_cast %43 : vector<512xf32> to vector<1x512xf32>
    %45 = vector.extract_strided_slice %41 {offsets = [16, 0], sizes = [16, 512], strides = [1, 1]} : vector<32x512xf32> to vector<16x512xf32>
    %cst_22 = arith.constant dense<0xFF800000> : vector<512xf32>
    %46 = vector.multi_reduction <maximumf>, %45, %cst_22 [0] : vector<16x512xf32> to vector<512xf32>
    %47 = vector.shape_cast %46 : vector<512xf32> to vector<1x512xf32>
    %48 = tpu.concatenate %44, %47 in 0 : vector<1x512xf32>, vector<1x512xf32> -> vector<2x512xf32>
    %c1_i32_23 = arith.constant 1 : i32
    %c384_i32_24 = arith.constant 384 : i32
    %c0_i32_25 = arith.constant 0 : i32
    %49 = tpu.memref_slice %arg3[%c384_i32_24, %c0_i32_25] : memref<2960x512xbf16, #tpu.memory_space<any>> -> memref<1552x512xbf16, #tpu.memory_space<any>>
    %50 = tpu.memref_slice %arg8[%c1_i32_23] : memref<3x!tpu.dma_semaphore, #tpu.memory_space<semaphore_mem>> -> memref<1x!tpu.dma_semaphore, #tpu.memory_space<semaphore_mem>>
    %51 = tpu.memref_squeeze %50 : memref<1x!tpu.dma_semaphore, #tpu.memory_space<semaphore_mem>> -> memref<!tpu.dma_semaphore, #tpu.memory_space<semaphore_mem>>
    tpu.wait_dma2 semaphore(%51 : memref<!tpu.dma_semaphore, #tpu.memory_space<semaphore_mem>>) src(%49 : memref<1552x512xbf16, #tpu.memory_space<any>>) dst(%arg6 : memref<1552x512xbf16, #tpu.memory_space<vmem>>)
    %c16 = arith.constant 16 : index
    %c0_26 = arith.constant 0 : index
    %52 = vector.load %arg6[%c16, %c0_26] : memref<1552x512xbf16, #tpu.memory_space<vmem>>, vector<512x512xbf16>
    %53 = arith.truncf %48 : vector<2x512xf32> to vector<2x512xbf16>
    %cst_27 = arith.constant dense<0.000000e+00> : vector<2x512xf32>
    %54 = tpu.matmul %53, %52, %cst_27 {dimension_numbers = #tpu.dot_dimension_numbers<[1], [0], [0], [1], [0, 0, 1, 1], [], []>} : vector<2x512xbf16>, vector<512x512xbf16>, vector<2x512xf32> -> vector<2x512xf32>
    %55 = vector.extract_strided_slice %54 {offsets = [0, 0], sizes = [1, 512], strides = [1, 1]} : vector<2x512xf32> to vector<1x512xf32>
    %56 = vector.shape_cast %55 : vector<1x512xf32> to vector<1x512xf32>
    %57 = vector.broadcast %56 : vector<1x512xf32> to vector<16x512xf32>
    %58 = vector.extract_strided_slice %54 {offsets = [1, 0], sizes = [1, 512], strides = [1, 1]} : vector<2x512xf32> to vector<1x512xf32>
    %59 = vector.shape_cast %58 : vector<1x512xf32> to vector<1x512xf32>
    %60 = vector.broadcast %59 : vector<1x512xf32> to vector<16x512xf32>
    %61 = tpu.concatenate %57, %60 in 0 : vector<16x512xf32>, vector<16x512xf32> -> vector<32x512xf32>
    %c0_28 = arith.constant 0 : index
    %c0_29 = arith.constant 0 : index
    %62 = vector.load %arg6[%c0_28, %c0_29] : memref<1552x512xbf16, #tpu.memory_space<vmem>>, vector<16x512xbf16>
    %63 = arith.truncf %9 : vector<32x16xf32> to vector<32x16xbf16>
    %cst_30 = arith.constant dense<0.000000e+00> : vector<32x512xf32>
    %64 = tpu.matmul %63, %62, %cst_30 {dimension_numbers = #tpu.dot_dimension_numbers<[1], [0], [0], [1], [0, 0, 1, 1], [], []>} : vector<32x16xbf16>, vector<16x512xbf16>, vector<32x512xf32> -> vector<32x512xf32>
    %65 = arith.addf %64, %61 : vector<32x512xf32>
    %66 = vector.extract_strided_slice %10 {offsets = [3, 0], sizes = [1, 512], strides = [1, 1]} : vector<16x512xf32> to vector<1x512xf32>
    %67 = vector.broadcast %66 : vector<1x512xf32> to vector<32x512xf32>
    %68 = arith.addf %65, %67 : vector<32x512xf32>
    %cst_31 = arith.constant 0.000000e+00 : f32
    %69 = vector.broadcast %cst_31 : f32 to vector<32x512xf32>
    %70 = arith.maximumf %68, %69 : vector<32x512xf32>
    %c528 = arith.constant 528 : index
    %c0_32 = arith.constant 0 : index
    %71 = vector.load %arg6[%c528, %c0_32] : memref<1552x512xbf16, #tpu.memory_space<vmem>>, vector<512x512xbf16>
    %72 = arith.truncf %70 : vector<32x512xf32> to vector<32x512xbf16>
    %cst_33 = arith.constant dense<0.000000e+00> : vector<32x512xf32>
    %73 = tpu.matmul %72, %71, %cst_33 {dimension_numbers = #tpu.dot_dimension_numbers<[1], [0], [0], [1], [0, 0, 1, 1], [], []>} : vector<32x512xbf16>, vector<512x512xbf16>, vector<32x512xf32> -> vector<32x512xf32>
    %74 = vector.extract_strided_slice %10 {offsets = [4, 0], sizes = [1, 512], strides = [1, 1]} : vector<16x512xf32> to vector<1x512xf32>
    %75 = vector.broadcast %74 : vector<1x512xf32> to vector<32x512xf32>
    %76 = arith.addf %73, %75 : vector<32x512xf32>
    %cst_34 = arith.constant 0.000000e+00 : f32
    %77 = vector.broadcast %cst_34 : f32 to vector<32x512xf32>
    %78 = arith.maximumf %76, %77 : vector<32x512xf32>
    %c1040 = arith.constant 1040 : index
    %c0_35 = arith.constant 0 : index
    %79 = vector.load %arg6[%c1040, %c0_35] : memref<1552x512xbf16, #tpu.memory_space<vmem>>, vector<512x512xbf16>
    %80 = arith.truncf %78 : vector<32x512xf32> to vector<32x512xbf16>
    %cst_36 = arith.constant dense<0.000000e+00> : vector<32x512xf32>
    %81 = tpu.matmul %80, %79, %cst_36 {dimension_numbers = #tpu.dot_dimension_numbers<[1], [0], [0], [1], [0, 0, 1, 1], [], []>} : vector<32x512xbf16>, vector<512x512xbf16>, vector<32x512xf32> -> vector<32x512xf32>
    %82 = vector.extract_strided_slice %10 {offsets = [5, 0], sizes = [1, 512], strides = [1, 1]} : vector<16x512xf32> to vector<1x512xf32>
    %83 = vector.broadcast %82 : vector<1x512xf32> to vector<32x512xf32>
    %84 = arith.addf %81, %83 : vector<32x512xf32>
    %85 = vector.extract_strided_slice %84 {offsets = [0, 0], sizes = [16, 512], strides = [1, 1]} : vector<32x512xf32> to vector<16x512xf32>
    %cst_37 = arith.constant dense<0xFF800000> : vector<512xf32>
    %86 = vector.multi_reduction <maximumf>, %85, %cst_37 [0] : vector<16x512xf32> to vector<512xf32>
    %87 = vector.shape_cast %86 : vector<512xf32> to vector<1x512xf32>
    %88 = vector.extract_strided_slice %84 {offsets = [16, 0], sizes = [16, 512], strides = [1, 1]} : vector<32x512xf32> to vector<16x512xf32>
    %cst_38 = arith.constant dense<0xFF800000> : vector<512xf32>
    %89 = vector.multi_reduction <maximumf>, %88, %cst_38 [0] : vector<16x512xf32> to vector<512xf32>
    %90 = vector.shape_cast %89 : vector<512xf32> to vector<1x512xf32>
    %91 = tpu.concatenate %87, %90 in 0 : vector<1x512xf32>, vector<1x512xf32> -> vector<2x512xf32>
    %c2_i32_39 = arith.constant 2 : i32
    %c1936_i32_40 = arith.constant 1936 : i32
    %c0_i32_41 = arith.constant 0 : i32
    %92 = tpu.memref_slice %arg3[%c1936_i32_40, %c0_i32_41] : memref<2960x512xbf16, #tpu.memory_space<any>> -> memref<1024x512xbf16, #tpu.memory_space<any>>
    %93 = tpu.memref_slice %arg8[%c2_i32_39] : memref<3x!tpu.dma_semaphore, #tpu.memory_space<semaphore_mem>> -> memref<1x!tpu.dma_semaphore, #tpu.memory_space<semaphore_mem>>
    %94 = tpu.memref_squeeze %93 : memref<1x!tpu.dma_semaphore, #tpu.memory_space<semaphore_mem>> -> memref<!tpu.dma_semaphore, #tpu.memory_space<semaphore_mem>>
    tpu.wait_dma2 semaphore(%94 : memref<!tpu.dma_semaphore, #tpu.memory_space<semaphore_mem>>) src(%92 : memref<1024x512xbf16, #tpu.memory_space<any>>) dst(%arg7 : memref<1024x512xbf16, #tpu.memory_space<vmem>>)
    %c0_42 = arith.constant 0 : index
    %c0_43 = arith.constant 0 : index
    %95 = vector.load %arg7[%c0_42, %c0_43] : memref<1024x512xbf16, #tpu.memory_space<vmem>>, vector<512x512xbf16>
    %96 = arith.truncf %91 : vector<2x512xf32> to vector<2x512xbf16>
    %cst_44 = arith.constant dense<0.000000e+00> : vector<2x512xf32>
    %97 = tpu.matmul %96, %95, %cst_44 {dimension_numbers = #tpu.dot_dimension_numbers<[1], [0], [0], [1], [0, 0, 1, 1], [], []>} : vector<2x512xbf16>, vector<512x512xbf16>, vector<2x512xf32> -> vector<2x512xf32>
    %98 = vector.extract_strided_slice %10 {offsets = [6, 0], sizes = [1, 512], strides = [1, 1]} : vector<16x512xf32> to vector<1x512xf32>
    %99 = vector.broadcast %98 : vector<1x512xf32> to vector<2x512xf32>
    %100 = arith.addf %97, %99 : vector<2x512xf32>
    %101 = vector.extract_strided_slice %100 {offsets = [0, 0], sizes = [2, 256], strides = [1, 1]} : vector<2x512xf32> to vector<2x256xf32>
    %c512 = arith.constant 512 : index
    %c0_45 = arith.constant 0 : index
    %102 = vector.load %arg7[%c512, %c0_45] : memref<1024x512xbf16, #tpu.memory_space<vmem>>, vector<256x256xbf16>
    %103 = arith.truncf %101 : vector<2x256xf32> to vector<2x256xbf16>
    %cst_46 = arith.constant dense<0.000000e+00> : vector<2x256xf32>
    %104 = tpu.matmul %103, %102, %cst_46 {dimension_numbers = #tpu.dot_dimension_numbers<[1], [0], [0], [1], [0, 0, 1, 1], [], []>} : vector<2x256xbf16>, vector<256x256xbf16>, vector<2x256xf32> -> vector<2x256xf32>
    %105 = vector.extract_strided_slice %10 {offsets = [7, 0], sizes = [1, 256], strides = [1, 1]} : vector<16x512xf32> to vector<1x256xf32>
    %106 = vector.broadcast %105 : vector<1x256xf32> to vector<2x256xf32>
    %107 = arith.addf %104, %106 : vector<2x256xf32>
    %108 = vector.extract_strided_slice %100 {offsets = [0, 256], sizes = [2, 256], strides = [1, 1]} : vector<2x512xf32> to vector<2x256xf32>
    %c768 = arith.constant 768 : index
    %c0_47 = arith.constant 0 : index
    %109 = vector.load %arg7[%c768, %c0_47] : memref<1024x512xbf16, #tpu.memory_space<vmem>>, vector<256x256xbf16>
    %110 = arith.truncf %108 : vector<2x256xf32> to vector<2x256xbf16>
    %cst_48 = arith.constant dense<0.000000e+00> : vector<2x256xf32>
    %111 = tpu.matmul %110, %109, %cst_48 {dimension_numbers = #tpu.dot_dimension_numbers<[1], [0], [0], [1], [0, 0, 1, 1], [], []>} : vector<2x256xbf16>, vector<256x256xbf16>, vector<2x256xf32> -> vector<2x256xf32>
    %112 = vector.extract_strided_slice %10 {offsets = [7, 256], sizes = [1, 256], strides = [1, 1]} : vector<16x512xf32> to vector<1x256xf32>
    %113 = vector.broadcast %112 : vector<1x256xf32> to vector<2x256xf32>
    %114 = arith.addf %111, %113 : vector<2x256xf32>
    %c512_49 = arith.constant 512 : index
    %c256_50 = arith.constant 256 : index
    %115 = vector.load %arg7[%c512_49, %c256_50] : memref<1024x512xbf16, #tpu.memory_space<vmem>>, vector<256x128xbf16>
    %116 = arith.truncf %107 : vector<2x256xf32> to vector<2x256xbf16>
    %cst_51 = arith.constant dense<0.000000e+00> : vector<2x128xf32>
    %117 = tpu.matmul %116, %115, %cst_51 {dimension_numbers = #tpu.dot_dimension_numbers<[1], [0], [0], [1], [0, 0, 1, 1], [], []>} : vector<2x256xbf16>, vector<256x128xbf16>, vector<2x128xf32> -> vector<2x128xf32>
    %c768_52 = arith.constant 768 : index
    %c256_53 = arith.constant 256 : index
    %118 = vector.load %arg7[%c768_52, %c256_53] : memref<1024x512xbf16, #tpu.memory_space<vmem>>, vector<256x128xbf16>
    %119 = arith.truncf %114 : vector<2x256xf32> to vector<2x256xbf16>
    %cst_54 = arith.constant dense<0.000000e+00> : vector<2x128xf32>
    %120 = tpu.matmul %119, %118, %cst_54 {dimension_numbers = #tpu.dot_dimension_numbers<[1], [0], [0], [1], [0, 0, 1, 1], [], []>} : vector<2x256xbf16>, vector<256x128xbf16>, vector<2x128xf32> -> vector<2x128xf32>
    %121 = arith.addf %117, %120 : vector<2x128xf32>
    %122 = vector.extract_strided_slice %10 {offsets = [8, 0], sizes = [1, 128], strides = [1, 1]} : vector<16x512xf32> to vector<1x128xf32>
    %123 = vector.broadcast %122 : vector<1x128xf32> to vector<2x128xf32>
    %124 = arith.addf %121, %123 : vector<2x128xf32>
    %c768_55 = arith.constant 768 : index
    %c384 = arith.constant 384 : index
    %125 = vector.load %arg7[%c768_55, %c384] : memref<1024x512xbf16, #tpu.memory_space<vmem>>, vector<256x128xbf16>
    %126 = arith.truncf %114 : vector<2x256xf32> to vector<2x256xbf16>
    %cst_56 = arith.constant dense<0.000000e+00> : vector<2x128xf32>
    %127 = tpu.matmul %126, %125, %cst_56 {dimension_numbers = #tpu.dot_dimension_numbers<[1], [0], [0], [1], [0, 0, 1, 1], [], []>} : vector<2x256xbf16>, vector<256x128xbf16>, vector<2x128xf32> -> vector<2x128xf32>
    %128 = vector.extract_strided_slice %10 {offsets = [9, 0], sizes = [1, 128], strides = [1, 1]} : vector<16x512xf32> to vector<1x128xf32>
    %129 = vector.broadcast %128 : vector<1x128xf32> to vector<2x128xf32>
    %130 = arith.addf %127, %129 : vector<2x128xf32>
    %cst_57 = arith.constant 5.000000e-01 : f32
    %131 = vector.broadcast %cst_57 : f32 to vector<2x128xf32>
    %132 = arith.mulf %131, %130 : vector<2x128xf32>
    %133 = math.exp %132 : vector<2x128xf32>
    %134 = arith.mulf %133, %16 : vector<2x128xf32>
    %135 = arith.addf %134, %124 : vector<2x128xf32>
    %c0_58 = arith.constant 0 : index
    %c0_59 = arith.constant 0 : index
    %136 = vector.load %arg4[%c0_58, %c0_59] : memref<2x128xf32, #tpu.memory_space<vmem>>, vector<2x128xf32>
    tpu.vector_store %arg4[%c0_58, %c0_59], %135 {strides = array<i32>} : memref<2x128xf32, #tpu.memory_space<vmem>>, vector<2x128xf32>,
    return
  }
}

</mosaic_0001>

<llo_original>
// kernel: encoder_forward.1
$region0: #{encoder_forward.1}
  #allocation0 [shape = 'u32[]', space=smem, size = 0x4, offset = 0x4, fixed_abs, tag = 'smem constant byte address 0x4 - core index']
  #allocation1 [shape = 'u32[144,128]{1,0:T(1,128)}', space=vmem, size = 0x12000, scoped, tag = 'internal scratch']
  #allocation2 [shape = 'bf16[384,512]{1,0:T(8,128)(2,1)}', space=vmem, size = 0x60000, scoped, tag = 'scratch operand']
  #allocation3 [shape = 'bf16[1552,512]{1,0:T(8,128)(2,1)}', space=vmem, size = 0x184000, scoped, tag = 'scratch operand']
  #allocation4 [shape = 'bf16[1024,512]{1,0:T(8,128)(2,1)}', space=vmem, size = 0x100000, scoped, tag = 'scratch operand']
  #allocation5 [shape = 's32[3]{0}', space=sflag, size = 0xc, scoped, tag = 'scratch operand']
  #allocation8 [shape = 's32[]', space=sflag, size = 0x4, offset = 0, fixed_abs, tag = 'sflag constant byte address 0x0 - dummy sync flag']
  #allocation9 [shape = 's32[]', space=sflag, size = 0x4, offset = 0, fixed_abs, tag = 'sflag constant byte address 0x0 - dummy sync flag']
  #allocation10 [shape = 'u32[]', space=smem, size = 0x4, offset = 0x44, fixed_abs, tag = 'smem constant byte address 0x44 - assertion arg 0']
  #allocation11 [shape = 'u32[]', space=smem, size = 0x4, offset = 0x48, fixed_abs, tag = 'smem constant byte address 0x48 - assertion arg 1']
  #allocation12 [shape = 's32[]', space=sflag, size = 0x4, offset = 0, fixed_abs, tag = 'sflag constant byte address 0x0 - dummy sync flag']
  #allocation13 [shape = 's32[]', space=sflag, size = 0x4, offset = 0, fixed_abs, tag = 'sflag constant byte address 0x0 - dummy sync flag']
  #allocation14 [shape = 's32[]', space=sflag, size = 0x4, offset = 0, fixed_abs, tag = 'sflag constant byte address 0x0 - dummy sync flag']
  #allocation15 [shape = 's32[]', space=sflag, size = 0x4, offset = 0, fixed_abs, tag = 'sflag constant byte address 0x0 - dummy sync flag']
  %s0 = inlined_call_operand.vmem [shape: f32[32,16], index: 0, kind: input, shape index: {}]
  %s1 = inlined_call_operand.vmem [shape: f32[2,128], index: 1, kind: input, shape index: {}]
  %s2 = inlined_call_operand.hbm [shape: f32[16,512], index: 2, kind: input, shape index: {}]
  %s3 = inlined_call_operand.hbm [shape: bf16[2960,512], index: 3, kind: input, shape index: {}]
  %s4 = inlined_call_operand.vmem [shape: f32[2,128], index: 4, kind: output, shape index: {}]
  %s5 = sld [smem:[#allocation0]]
  $region38: #{encoder_forward.1} parent=0
    _
  %s7 = ssub.s32 1, %s5
  %s8 = scalar_select 0, %s7, %s5
  $region1: #{encoder_forward.1} parent=0
    #allocation6 [shape = 'u8[32768]{0}', space=vmem, size = 0x8000, scoped, tag = 'input window, operand 2, single buffered']
    #allocation7 [shape = 's32[1]{0}', space=sflag, size = 0x4, scoped, tag = 'scoped memory for encoder_forward.1']
    %9 = vsyncpa [#allocation7], 0
    // Predicated region
    $region2: #{encoder_forward.1} parent=1 // pred_check
      _
    $region3: #{encoder_forward.1} parent=1 // pred_check_branch
      %11 = sbr.rel (0) target = $region5
    $region4: #{encoder_forward.1} parent=1 // pred_region
      _
    $region5: #{encoder_forward.1} parent=1 // pred_fallthru
      _
    // Predicated region
    $region6: #{encoder_forward.1} parent=1 // pred_check
      _
    $region7: #{encoder_forward.1} parent=1 // pred_check_branch
      %13 = sbr.rel (0) target = $region9
    $region8: #{encoder_forward.1} parent=1 // pred_region
      _
    $region9: #{encoder_forward.1} parent=1 // pred_fallthru
      _
    // Predicated region
    $region10: #{encoder_forward.1} parent=1 // pred_check
      _
    $region11: #{encoder_forward.1} parent=1 // pred_check_branch
      %15 = sbr.rel (0) target = $region13
    $region12: #{encoder_forward.1} parent=1 // pred_region
      %s17 = ssub.s32 1024, 1024
      %18 = vsyncadd [#allocation7], %s17
      %s19 = sshll.u32 [#allocation6], 4
      %s20 = int_to_ptr.vmem [resolvable:$true] %s19
      %25 = dma.hbm_to_vmem [thread:$0]  %s2, 1024, %s20, [#allocation7], 512, 512, 32
    $region13: #{encoder_forward.1} parent=1 // pred_fallthru
      _
    // Predicated region
    $region14: #{encoder_forward.1} parent=1 // pred_check
      _
    $region15: #{encoder_forward.1} parent=1 // pred_check_branch
      %27 = sbr.rel (0) target = $region17
    $region16: #{encoder_forward.1} parent=1 // pred_region
      %28 = dma.done [#allocation7], 1024
    $region17: #{encoder_forward.1} parent=1 // pred_fallthru
      _
    // Predicated region
    $region18: #{encoder_forward.1} parent=1 // pred_check
      _
    $region19: #{encoder_forward.1} parent=1 // pred_check_branch
      %31 = sbr.rel target = $region21
    $region20: #{encoder_forward.1} parent=1 // pred_region
      %32 = sst [smem:[#allocation10]] [#allocation9]
      %33 = sst [smem:[#allocation11]] [#allocation8]
    $region21: #{encoder_forward.1} parent=1 // pred_fallthru
      _
    %35 = shalt.err (0)
    %s37 = sshll.u32 [#allocation2], 4
    %s38 = int_to_ptr.vmem [resolvable:$true] %s37
    %40 = dma.hbm_to_vmem [thread:$0]  %s3, 12288, %s38, [#allocation5]
    %s41 = scalar_lea.hbm %s3, 12288
    %s42 = scalar_lea.sflag [#allocation5], 1
    // Predicated region
    $region22: #{encoder_forward.1} parent=1 // pred_check
      _
    $region23: #{encoder_forward.1} parent=1 // pred_check_branch
      %44 = sbr.rel target = $region25
    $region24: #{encoder_forward.1} parent=1 // pred_region
      %45 = sst [smem:[#allocation10]] [#allocation13]
      %46 = sst [smem:[#allocation11]] [#allocation12]
    $region25: #{encoder_forward.1} parent=1 // pred_fallthru
      _
    %48 = shalt.err (0)
    %s50 = sshll.u32 [#allocation3], 4
    %s51 = int_to_ptr.vmem [resolvable:$true] %s50
    %53 = dma.hbm_to_vmem [thread:$0]  %s41, 49664, %s51, %s42
    %s54 = scalar_lea.hbm %s3, 61952
    %s55 = scalar_lea.sflag [#allocation5], 2
    // Predicated region
    $region26: #{encoder_forward.1} parent=1 // pred_check
      _
    $region27: #{encoder_forward.1} parent=1 // pred_check_branch
      %57 = sbr.rel target = $region29
    $region28: #{encoder_forward.1} parent=1 // pred_region
      %58 = sst [smem:[#allocation10]] [#allocation15]
      %59 = sst [smem:[#allocation11]] [#allocation14]
    $region29: #{encoder_forward.1} parent=1 // pred_fallthru
      _
    %61 = shalt.err (0)
    %s63 = sshll.u32 [#allocation4], 4
    %s64 = int_to_ptr.vmem [resolvable:$true] %s63
    %66 = dma.hbm_to_vmem [thread:$0]  %s54, 32768, %s64, %s55
    %v67 = vld [vmem:[%s0] sm:$0xff]
    %v68 = vld [vmem:[%s0 + $0x8] sm:$0xff]
    %v69 = vld [vmem:[%s0 + $0x10] sm:$0xff]
    %v70 = vld [vmem:[%s0 + $0x18] sm:$0xff]
    %v71 = vld [vmem:[#allocation6] sm:$0xff]
    %v72 = vld [vmem:[#allocation6 + $0x8] sm:$0xff]
    %v73 = vld [vmem:[#allocation6 + $0x10] sm:$0xff]
    %v74 = vld [vmem:[#allocation6 + $0x18] sm:$0xff]
    %v75 = vld [vmem:[#allocation6 + $0x20] sm:$0xff]
    %v76 = vlaneseq
    %v77 = vand.u32 %v76, 127
    %vm78 = vcmp.lt.s32.totalorder %v77, 16
    %v79 = vld [vmem:[%s1] sm:$0x3]
    %v80 = vsel %vm78, %v79, 0.0
    %s81 = smul.u32 4, 48
    %s82 = smul.u32 %s81, 4
    %s83 = sshll.u32 %s82, 4
    %84 = dma.done [#allocation5], %s83
    %v85 = vld [vmem:[#allocation2 + $0x8] sm:$0xf]
    %v86 = vld [vmem:[#allocation2 + $0x18] sm:$0xf]
    %v87 = vpack.c.bf16 %v68, %v67
    %v88 = vpack.c.bf16 %v70, %v69
    %v89 = vlaneseq
    %v90 = vshrl.u32 %v89, 7
    %v91 = vsub.s32 0, %v90
    %v92 = vrot.slane %v71, %v91
    %v95 = vunpack.c.l.b16 %v85
    %v96 = vunpack.c.l.b16 %v86
    %v97 = vpack.c.b16 %v96, %v95
    %vm99 = vcmask 130048
    %v101 = vsel %vm99, %v87, 0
    %v104 = vsel %vm99, %v88, 0
    %106 = vmatprep.subr.bf16.mxu0 0
    %107 = vmatpush1.bf16.msra.mxu0 0
    %108 = vmatprep.subr.bf16.mxu0 0
    %109 = vmatpush1.bf16.msra.mxu0 0
    %110 = vmatprep.subr.bf16.mxu0 0
    %111 = vmatpush1.bf16.msra.mxu0 0
    %112 = vmatprep.subr.bf16.mxu0 0
    %113 = vmatpush1.bf16.msra.mxu0 0
    %114 = vmatprep.subr.bf16.mxu0 0
    %115 = vmatpush1.bf16.msra.mxu0 0
    %116 = vmatprep.subr.bf16.mxu0 0
    %117 = vmatpush1.bf16.msra.mxu0 0
    %118 = vmatprep.subr.bf16.mxu0 0
    %119 = vmatpush1.bf16.msra.mxu0 0
    %120 = vmatprep.subr.bf16.mxu0 0
    %121 = vmatpush1.bf16.msra.mxu0 %v97
    %122 = vmatprep.subr.bf16.mxu0 0
    %123 = vmatpush2.bf16.msra.mxu0 0
    %124 = vmatprep.subr.bf16.mxu0 0
    %125 = vmatpush2.bf16.msra.mxu0 0
    %126 = vmatprep.subr.bf16.mxu0 0
    %127 = vmatpush2.bf16.msra.mxu0 0
    %128 = vmatprep.subr.bf16.mxu0 0
    %129 = vmatpush2.bf16.msra.mxu0 0
    %130 = vmatprep.subr.bf16.mxu0 0
    %131 = vmatpush2.bf16.msra.mxu0 0
    %132 = vmatprep.subr.bf16.mxu0 0
    %133 = vmatpush2.bf16.msra.mxu0 0
    %134 = vmatprep.subr.bf16.mxu0 0
    %135 = vmatpush2.bf16.msra.mxu0 0
    %136 = vmatprep.subr.bf16.mxu0 0
    %137 = vmatpush2.bf16.msra.mxu0 0
    %138 = vmatprep.mubr.bf16.mxu0 0
    %139 = vmatmul.mubr.bf16.gmra.mxu0 %v101
    %v140 = vpop.f32.mrf.mxu0
    %v141 = vadd.f32 %v92, %v140
    %v142 = vpop.f32.mrf.mxu0
    %v143 = vpop.f32.mrf.mxu0
    %v144 = vadd.f32 %v92, %v143
    %v145 = vpop.f32.mrf.mxu0
    %146 = vmatprep.mubr.bf16.mxu0 0
    %147 = vmatmul.mubr.bf16.gmra.mxu0 %v104
    %v148 = vpop.f32.mrf.mxu0
    %v149 = vadd.f32 %v92, %v148
    %v150 = vpop.f32.mrf.mxu0
    %v151 = vpop.f32.mrf.mxu0
    %v152 = vadd.f32 %v92, %v151
    %v153 = vpop.f32.mrf.mxu0
    %154 = vdwg.mxu0
    %v155 = vmax.f32 %v141, 0.0
    %v156 = vmax.f32 %v144, 0.0
    %v157 = vmax.f32 %v149, 0.0
    %v158 = vmax.f32 %v152, 0.0
    %v159 = vld [vmem:[#allocation2] sm:$0xff]
    %v160 = vld [vmem:[#allocation2 + $0x10] sm:$0xff]
    %v161 = vld [vmem:[#allocation2 + $0x20] sm:$0xff]
    %v162 = vld [vmem:[#allocation2 + $0x30] sm:$0xff]
    %v163 = vld [vmem:[#allocation2 + $0x40] sm:$0xff]
    %v164 = vld [vmem:[#allocation2 + $0x50] sm:$0xff]
    %v165 = vld [vmem:[#allocation2 + $0x60] sm:$0xff]
    %v166 = vld [vmem:[#allocation2 + $0x70] sm:$0xff]
    %v167 = vld [vmem:[#allocation2 + $0x80] sm:$0xff]
    %v168 = vld [vmem:[#allocation2 + $0x90] sm:$0xff]
    %v169 = vld [vmem:[#allocation2 + $0xa0] sm:$0xff]
    %v170 = vld [vmem:[#allocation2 + $0xb0] sm:$0xff]
    %v171 = vld [vmem:[#allocation2 + $0xc0] sm:$0xff]
    %v172 = vld [vmem:[#allocation2 + $0xd0] sm:$0xff]
    %v173 = vld [vmem:[#allocation2 + $0xe0] sm:$0xff]
    %v174 = vld [vmem:[#allocation2 + $0xf0] sm:$0xff]
    %v175 = vpack.c.bf16 %v156, %v155
    %v176 = vpack.c.bf16 %v158, %v157
    %v177 = vlaneseq
    %v178 = vshrl.u32 %v177, 7
    %v179 = vsub.s32 1, %v178
    %v180 = vrot.slane %v71, %v179
    %v181 = vlaneseq
    %v182 = vshrl.u32 %v181, 7
    %v183 = vsub.s32 1, %v182
    %v184 = vrot.slane %v72, %v183
    %v201 = vunpack.c.l.b16 %v159
    %v202 = vunpack.c.h.b16 %v159
    %v203 = vunpack.c.l.b16 %v160
    %v204 = vunpack.c.h.b16 %v160
    %v205 = vunpack.c.l.b16 %v161
    %v206 = vunpack.c.h.b16 %v161
    %v207 = vunpack.c.l.b16 %v162
    %v208 = vunpack.c.h.b16 %v162
    %v209 = vunpack.c.l.b16 %v163
    %v210 = vunpack.c.h.b16 %v163
    %v211 = vunpack.c.l.b16 %v164
    %v212 = vunpack.c.h.b16 %v164
    %v213 = vunpack.c.l.b16 %v165
    %v214 = vunpack.c.h.b16 %v165
    %v215 = vunpack.c.l.b16 %v166
    %v216 = vunpack.c.h.b16 %v166
    %v217 = vunpack.c.l.b16 %v167
    %v218 = vunpack.c.h.b16 %v167
    %v219 = vunpack.c.l.b16 %v168
    %v220 = vunpack.c.h.b16 %v168
    %v221 = vunpack.c.l.b16 %v169
    %v222 = vunpack.c.h.b16 %v169
    %v223 = vunpack.c.l.b16 %v170
    %v224 = vunpack.c.h.b16 %v170
    %v225 = vunpack.c.l.b16 %v171
    %v226 = vunpack.c.h.b16 %v171
    %v227 = vunpack.c.l.b16 %v172
    %v228 = vunpack.c.h.b16 %v172
    %v229 = vunpack.c.l.b16 %v173
    %v230 = vunpack.c.h.b16 %v173
    %v231 = vunpack.c.l.b16 %v174
    %v232 = vunpack.c.h.b16 %v174
    %v233 = vpack.c.b16 %v203, %v201
    %v234 = vpack.c.b16 %v204, %v202
    %v235 = vpack.c.b16 %v207, %v205
    %v236 = vpack.c.b16 %v208, %v206
    %v237 = vpack.c.b16 %v211, %v209
    %v238 = vpack.c.b16 %v212, %v210
    %v239 = vpack.c.b16 %v215, %v213
    %v240 = vpack.c.b16 %v216, %v214
    %v241 = vpack.c.b16 %v219, %v217
    %v242 = vpack.c.b16 %v220, %v218
    %v243 = vpack.c.b16 %v223, %v221
    %v244 = vpack.c.b16 %v224, %v222
    %v245 = vpack.c.b16 %v227, %v225
    %v246 = vpack.c.b16 %v228, %v226
    %v247 = vpack.c.b16 %v231, %v229
    %v248 = vpack.c.b16 %v232, %v230
    %265 = vmatprep.subr.bf16.mxu0 %v248
    %266 = vmatpush1.bf16.msra.mxu0 %v247
    %267 = vmatprep.subr.bf16.mxu0 %v246
    %268 = vmatpush1.bf16.msra.mxu0 %v245
    %269 = vmatprep.subr.bf16.mxu0 %v244
    %270 = vmatpush1.bf16.msra.mxu0 %v243
    %271 = vmatprep.subr.bf16.mxu0 %v242
    %272 = vmatpush1.bf16.msra.mxu0 %v241
    %273 = vmatprep.subr.bf16.mxu0 %v240
    %274 = vmatpush1.bf16.msra.mxu0 %v239
    %275 = vmatprep.subr.bf16.mxu0 %v238
    %276 = vmatpush1.bf16.msra.mxu0 %v237
    %277 = vmatprep.subr.bf16.mxu0 %v236
    %278 = vmatpush1.bf16.msra.mxu0 %v235
    %279 = vmatprep.subr.bf16.mxu0 %v234
    %280 = vmatpush1.bf16.msra.mxu0 %v233
    %281 = vmatprep.subr.bf16.mxu0 0
    %282 = vmatpush2.bf16.msra.mxu0 0
    %283 = vmatprep.subr.bf16.mxu0 0
    %284 = vmatpush2.bf16.msra.mxu0 0
    %285 = vmatprep.subr.bf16.mxu0 0
    %286 = vmatpush2.bf16.msra.mxu0 0
    %287 = vmatprep.subr.bf16.mxu0 0
    %288 = vmatpush2.bf16.msra.mxu0 0
    %289 = vmatprep.subr.bf16.mxu0 0
    %290 = vmatpush2.bf16.msra.mxu0 0
    %291 = vmatprep.subr.bf16.mxu0 0
    %292 = vmatpush2.bf16.msra.mxu0 0
    %293 = vmatprep.subr.bf16.mxu0 0
    %294 = vmatpush2.bf16.msra.mxu0 0
    %295 = vmatprep.subr.bf16.mxu0 0
    %296 = vmatpush2.bf16.msra.mxu0 0
    %297 = vmatprep.mubr.bf16.mxu0 0
    %298 = vmatmul.mubr.bf16.gmra.mxu0 %v175
    %v299 = vpop.f32.mrf.mxu0
    %v300 = vadd.f32 %v180, %v299
    %v301 = vpop.f32.mrf.mxu0
    %v302 = vadd.f32 %v184, %v301
    %v303 = vpop.f32.mrf.mxu0
    %v304 = vadd.f32 %v180, %v303
    %v305 = vpop.f32.mrf.mxu0
    %v306 = vadd.f32 %v184, %v305
    %307 = vmatprep.mubr.bf16.mxu0 0
    %308 = vmatmul.mubr.bf16.gmra.mxu0 %v176
    %v309 = vpop.f32.mrf.mxu0
    %v310 = vadd.f32 %v180, %v309
    %v311 = vpop.f32.mrf.mxu0
    %v312 = vadd.f32 %v184, %v311
    %v313 = vpop.f32.mrf.mxu0
    %v314 = vadd.f32 %v180, %v313
    %v315 = vpop.f32.mrf.mxu0
    %v316 = vadd.f32 %v184, %v315
    %317 = vdwg.mxu0
    %v318 = vmax.f32 %v300, 0.0
    %v319 = vmax.f32 %v302, 0.0
    %v320 = vmax.f32 %v304, 0.0
    %v321 = vmax.f32 %v306, 0.0
    %v322 = vmax.f32 %v310, 0.0
    %v323 = vmax.f32 %v312, 0.0
    %v324 = vmax.f32 %v314, 0.0
    %v325 = vmax.f32 %v316, 0.0
    %v326 = vld [vmem:[#allocation2 + $0x100] sm:$0xff]
    %v327 = vld [vmem:[#allocation2 + $0x108] sm:$0xff]
    %v328 = vld [vmem:[#allocation2 + $0x110] sm:$0xff]
    %v329 = vld [vmem:[#allocation2 + $0x118] sm:$0xff]
    %v330 = vld [vmem:[#allocation2 + $0x120] sm:$0xff]
    %v331 = vld [vmem:[#allocation2 + $0x128] sm:$0xff]
    %v332 = vld [vmem:[#allocation2 + $0x130] sm:$0xff]
    %v333 = vld [vmem:[#allocation2 + $0x138] sm:$0xff]
    %v334 = vld [vmem:[#allocation2 + $0x140] sm:$0xff]
    %v335 = vld [vmem:[#allocation2 + $0x148] sm:$0xff]
    %v336 = vld [vmem:[#allocation2 + $0x150] sm:$0xff]
    %v337 = vld [vmem:[#allocation2 + $0x158] sm:$0xff]
    %v338 = vld [vmem:[#allocation2 + $0x160] sm:$0xff]
    %v339 = vld [vmem:[#allocation2 + $0x168] sm:$0xff]
    %v340 = vld [vmem:[#allocation2 + $0x170] sm:$0xff]
    %v341 = vld [vmem:[#allocation2 + $0x178] sm:$0xff]
    %v342 = vld [vmem:[#allocation2 + $0x180] sm:$0xff]
    %v343 = vld [vmem:[#allocation2 + $0x188] sm:$0xff]
    %v344 = vld [vmem:[#allocation2 + $0x190] sm:$0xff]
    %v345 = vld [vmem:[#allocation2 + $0x198] sm:$0xff]
    %v346 = vld [vmem:[#allocation2 + $0x1a0] sm:$0xff]
    %v347 = vld [vmem:[#allocation2 + $0x1a8] sm:$0xff]
    %v348 = vld [vmem:[#allocation2 + $0x1b0] sm:$0xff]
    %v349 = vld [vmem:[#allocation2 + $0x1b8] sm:$0xff]
    %v350 = vld [vmem:[#allocation2 + $0x1c0] sm:$0xff]
    %v351 = vld [vmem:[#allocation2 + $0x1c8] sm:$0xff]
    %v352 = vld [vmem:[#allocation2 + $0x1d0] sm:$0xff]
    %v353 = vld [vmem:[#allocation2 + $0x1d8] sm:$0xff]
    %v354 = vld [vmem:[#allocation2 + $0x1e0] sm:$0xff]
    %v355 = vld [vmem:[#allocation2 + $0x1e8] sm:$0xff]
    %v356 = vld [vmem:[#allocation2 + $0x1f0] sm:$0xff]
    %v357 = vld [vmem:[#allocation2 + $0x1f8] sm:$0xff]
    %v358 = vld [vmem:[#allocation2 + $0x200] sm:$0xff]
    %v359 = vld [vmem:[#allocation2 + $0x208] sm:$0xff]
    %v360 = vld [vmem:[#allocation2 + $0x210] sm:$0xff]
    %v361 = vld [vmem:[#allocation2 + $0x218] sm:$0xff]
    %v362 = vld [vmem:[#allocation2 + $0x220] sm:$0xff]
    %v363 = vld [vmem:[#allocation2 + $0x228] sm:$0xff]
    %v364 = vld [vmem:[#allocation2 + $0x230] sm:$0xff]
    %v365 = vld [vmem:[#allocation2 + $0x238] sm:$0xff]
    %v366 = vld [vmem:[#allocation2 + $0x240] sm:$0xff]
    %v367 = vld [vmem:[#allocation2 + $0x248] sm:$0xff]
    %v368 = vld [vmem:[#allocation2 + $0x250] sm:$0xff]
    %v369 = vld [vmem:[#allocation2 + $0x258] sm:$0xff]
    %v370 = vld [vmem:[#allocation2 + $0x260] sm:$0xff]
    %v371 = vld [vmem:[#allocation2 + $0x268] sm:$0xff]
    %v372 = vld [vmem:[#allocation2 + $0x270] sm:$0xff]
    %v373 = vld [vmem:[#allocation2 + $0x278] sm:$0xff]
    %v374 = vld [vmem:[#allocation2 + $0x280] sm:$0xff]
    %v375 = vld [vmem:[#allocation2 + $0x288] sm:$0xff]
    %v376 = vld [vmem:[#allocation2 + $0x290] sm:$0xff]
    %v377 = vld [vmem:[#allocation2 + $0x298] sm:$0xff]
    %v378 = vld [vmem:[#allocation2 + $0x2a0] sm:$0xff]
    %v379 = vld [vmem:[#allocation2 + $0x2a8] sm:$0xff]
    %v380 = vld [vmem:[#allocation2 + $0x2b0] sm:$0xff]
    %v381 = vld [vmem:[#allocation2 + $0x2b8] sm:$0xff]
    %v382 = vld [vmem:[#allocation2 + $0x2c0] sm:$0xff]
    %v383 = vld [vmem:[#allocation2 + $0x2c8] sm:$0xff]
    %v384 = vld [vmem:[#allocation2 + $0x2d0] sm:$0xff]
    %v385 = vld [vmem:[#allocation2 + $0x2d8] sm:$0xff]
    %v386 = vld [vmem:[#allocation2 + $0x2e0] sm:$0xff]
    %v387 = vld [vmem:[#allocation2 + $0x2e8] sm:$0xff]
    %v388 = vld [vmem:[#allocation2 + $0x2f0] sm:$0xff]
    %v389 = vld [vmem:[#allocation2 + $0x2f8] sm:$0xff]
    %v390 = vpack.c.bf16 %v320, %v318
    %v391 = vpack.c.bf16 %v321, %v319
    %v392 = vpack.c.bf16 %v324, %v322
    %v393 = vpack.c.bf16 %v325, %v323
    %v394 = vlaneseq
    %v395 = vshrl.u32 %v394, 7
    %v396 = vsub.s32 2, %v395
    %v397 = vrot.slane %v71, %v396
    %v398 = vlaneseq
    %v399 = vshrl.u32 %v398, 7
    %v400 = vsub.s32 2, %v399
    %v401 = vrot.slane %v72, %v400
    %v402 = vlaneseq
    %v403 = vshrl.u32 %v402, 7
    %v404 = vsub.s32 2, %v403
    %v405 = vrot.slane %v73, %v404
    %v406 = vlaneseq
    %v407 = vshrl.u32 %v406, 7
    %v408 = vsub.s32 2, %v407
    %v409 = vrot.slane %v74, %v408
    %v474 = vunpack.c.l.b16 %v326
    %v475 = vunpack.c.h.b16 %v326
    %v476 = vunpack.c.l.b16 %v327
    %v477 = vunpack.c.h.b16 %v327
    %v478 = vunpack.c.l.b16 %v328
    %v479 = vunpack.c.h.b16 %v328
    %v480 = vunpack.c.l.b16 %v329
    %v481 = vunpack.c.h.b16 %v329
    %v482 = vunpack.c.l.b16 %v330
    %v483 = vunpack.c.h.b16 %v330
    %v484 = vunpack.c.l.b16 %v331
    %v485 = vunpack.c.h.b16 %v331
    %v486 = vunpack.c.l.b16 %v332
    %v487 = vunpack.c.h.b16 %v332
    %v488 = vunpack.c.l.b16 %v333
    %v489 = vunpack.c.h.b16 %v333
    %v490 = vunpack.c.l.b16 %v334
    %v491 = vunpack.c.h.b16 %v334
    %v492 = vunpack.c.l.b16 %v335
    %v493 = vunpack.c.h.b16 %v335
    %v494 = vunpack.c.l.b16 %v336
    %v495 = vunpack.c.h.b16 %v336
    %v496 = vunpack.c.l.b16 %v337
    %v497 = vunpack.c.h.b16 %v337
    %v498 = vunpack.c.l.b16 %v338
    %v499 = vunpack.c.h.b16 %v338
    %v500 = vunpack.c.l.b16 %v339
    %v501 = vunpack.c.h.b16 %v339
    %v502 = vunpack.c.l.b16 %v340
    %v503 = vunpack.c.h.b16 %v340
    %v504 = vunpack.c.l.b16 %v341
    %v505 = vunpack.c.h.b16 %v341
    %v506 = vunpack.c.l.b16 %v342
    %v507 = vunpack.c.h.b16 %v342
    %v508 = vunpack.c.l.b16 %v343
    %v509 = vunpack.c.h.b16 %v343
    %v510 = vunpack.c.l.b16 %v344
    %v511 = vunpack.c.h.b16 %v344
    %v512 = vunpack.c.l.b16 %v345
    %v513 = vunpack.c.h.b16 %v345
    %v514 = vunpack.c.l.b16 %v346
    %v515 = vunpack.c.h.b16 %v346
    %v516 = vunpack.c.l.b16 %v347
    %v517 = vunpack.c.h.b16 %v347
    %v518 = vunpack.c.l.b16 %v348
    %v519 = vunpack.c.h.b16 %v348
    %v520 = vunpack.c.l.b16 %v349
    %v521 = vunpack.c.h.b16 %v349
    %v522 = vunpack.c.l.b16 %v350
    %v523 = vunpack.c.h.b16 %v350
    %v524 = vunpack.c.l.b16 %v351
    %v525 = vunpack.c.h.b16 %v351
    %v526 = vunpack.c.l.b16 %v352
    %v527 = vunpack.c.h.b16 %v352
    %v528 = vunpack.c.l.b16 %v353
    %v529 = vunpack.c.h.b16 %v353
    %v530 = vunpack.c.l.b16 %v354
    %v531 = vunpack.c.h.b16 %v354
    %v532 = vunpack.c.l.b16 %v355
    %v533 = vunpack.c.h.b16 %v355
    %v534 = vunpack.c.l.b16 %v356
    %v535 = vunpack.c.h.b16 %v356
    %v536 = vunpack.c.l.b16 %v357
    %v537 = vunpack.c.h.b16 %v357
    %v538 = vunpack.c.l.b16 %v358
    %v539 = vunpack.c.h.b16 %v358
    %v540 = vunpack.c.l.b16 %v359
    %v541 = vunpack.c.h.b16 %v359
    %v542 = vunpack.c.l.b16 %v360
    %v543 = vunpack.c.h.b16 %v360
    %v544 = vunpack.c.l.b16 %v361
    %v545 = vunpack.c.h.b16 %v361
    %v546 = vunpack.c.l.b16 %v362
    %v547 = vunpack.c.h.b16 %v362
    %v548 = vunpack.c.l.b16 %v363
    %v549 = vunpack.c.h.b16 %v363
    %v550 = vunpack.c.l.b16 %v364
    %v551 = vunpack.c.h.b16 %v364
    %v552 = vunpack.c.l.b16 %v365
    %v553 = vunpack.c.h.b16 %v365
    %v554 = vunpack.c.l.b16 %v366
    %v555 = vunpack.c.h.b16 %v366
    %v556 = vunpack.c.l.b16 %v367
    %v557 = vunpack.c.h.b16 %v367
    %v558 = vunpack.c.l.b16 %v368
    %v559 = vunpack.c.h.b16 %v368
    %v560 = vunpack.c.l.b16 %v369
    %v561 = vunpack.c.h.b16 %v369
    %v562 = vunpack.c.l.b16 %v370
    %v563 = vunpack.c.h.b16 %v370
    %v564 = vunpack.c.l.b16 %v371
    %v565 = vunpack.c.h.b16 %v371
    %v566 = vunpack.c.l.b16 %v372
    %v567 = vunpack.c.h.b16 %v372
    %v568 = vunpack.c.l.b16 %v373
    %v569 = vunpack.c.h.b16 %v373
    %v570 = vunpack.c.l.b16 %v374
    %v571 = vunpack.c.h.b16 %v374
    %v572 = vunpack.c.l.b16 %v375
    %v573 = vunpack.c.h.b16 %v375
    %v574 = vunpack.c.l.b16 %v376
    %v575 = vunpack.c.h.b16 %v376
    %v576 = vunpack.c.l.b16 %v377
    %v577 = vunpack.c.h.b16 %v377
    %v578 = vunpack.c.l.b16 %v378
    %v579 = vunpack.c.h.b16 %v378
    %v580 = vunpack.c.l.b16 %v379
    %v581 = vunpack.c.h.b16 %v379
    %v582 = vunpack.c.l.b16 %v380
    %v583 = vunpack.c.h.b16 %v380
    %v584 = vunpack.c.l.b16 %v381
    %v585 = vunpack.c.h.b16 %v381
    %v586 = vunpack.c.l.b16 %v382
    %v587 = vunpack.c.h.b16 %v382
    %v588 = vunpack.c.l.b16 %v383
    %v589 = vunpack.c.h.b16 %v383
    %v590 = vunpack.c.l.b16 %v384
    %v591 = vunpack.c.h.b16 %v384
    %v592 = vunpack.c.l.b16 %v385
    %v593 = vunpack.c.h.b16 %v385
    %v594 = vunpack.c.l.b16 %v386
    %v595 = vunpack.c.h.b16 %v386
    %v596 = vunpack.c.l.b16 %v387
    %v597 = vunpack.c.h.b16 %v387
    %v598 = vunpack.c.l.b16 %v388
    %v599 = vunpack.c.h.b16 %v388
    %v600 = vunpack.c.l.b16 %v389
    %v601 = vunpack.c.h.b16 %v389
    %v602 = vpack.c.b16 %v478, %v474
    %v603 = vpack.c.b16 %v479, %v475
    %v604 = vpack.c.b16 %v480, %v476
    %v605 = vpack.c.b16 %v481, %v477
    %v606 = vpack.c.b16 %v486, %v482
    %v607 = vpack.c.b16 %v487, %v483
    %v608 = vpack.c.b16 %v488, %v484
    %v609 = vpack.c.b16 %v489, %v485
    %v610 = vpack.c.b16 %v494, %v490
    %v611 = vpack.c.b16 %v495, %v491
    %v612 = vpack.c.b16 %v496, %v492
    %v613 = vpack.c.b16 %v497, %v493
    %v614 = vpack.c.b16 %v502, %v498
    %v615 = vpack.c.b16 %v503, %v499
    %v616 = vpack.c.b16 %v504, %v500
    %v617 = vpack.c.b16 %v505, %v501
    %v618 = vpack.c.b16 %v510, %v506
    %v619 = vpack.c.b16 %v511, %v507
    %v620 = vpack.c.b16 %v512, %v508
    %v621 = vpack.c.b16 %v513, %v509
    %v622 = vpack.c.b16 %v518, %v514
    %v623 = vpack.c.b16 %v519, %v515
    %v624 = vpack.c.b16 %v520, %v516
    %v625 = vpack.c.b16 %v521, %v517
    %v626 = vpack.c.b16 %v526, %v522
    %v627 = vpack.c.b16 %v527, %v523
    %v628 = vpack.c.b16 %v528, %v524
    %v629 = vpack.c.b16 %v529, %v525
    %v630 = vpack.c.b16 %v534, %v530
    %v631 = vpack.c.b16 %v535, %v531
    %v632 = vpack.c.b16 %v536, %v532
    %v633 = vpack.c.b16 %v537, %v533
    %v634 = vpack.c.b16 %v542, %v538
    %v635 = vpack.c.b16 %v543, %v539
    %v636 = vpack.c.b16 %v544, %v540
    %v637 = vpack.c.b16 %v545, %v541
    %v638 = vpack.c.b16 %v550, %v546
    %v639 = vpack.c.b16 %v551, %v547
    %v640 = vpack.c.b16 %v552, %v548
    %v641 = vpack.c.b16 %v553, %v549
    %v642 = vpack.c.b16 %v558, %v554
    %v643 = vpack.c.b16 %v559, %v555
    %v644 = vpack.c.b16 %v560, %v556
    %v645 = vpack.c.b16 %v561, %v557
    %v646 = vpack.c.b16 %v566, %v562
    %v647 = vpack.c.b16 %v567, %v563
    %v648 = vpack.c.b16 %v568, %v564
    %v649 = vpack.c.b16 %v569, %v565
    %v650 = vpack.c.b16 %v574, %v570
    %v651 = vpack.c.b16 %v575, %v571
    %v652 = vpack.c.b16 %v576, %v572
    %v653 = vpack.c.b16 %v577, %v573
    %v654 = vpack.c.b16 %v582, %v578
    %v655 = vpack.c.b16 %v583, %v579
    %v656 = vpack.c.b16 %v584, %v580
    %v657 = vpack.c.b16 %v585, %v581
    %v658 = vpack.c.b16 %v590, %v586
    %v659 = vpack.c.b16 %v591, %v587
    %v660 = vpack.c.b16 %v592, %v588
    %v661 = vpack.c.b16 %v593, %v589
    %v662 = vpack.c.b16 %v598, %v594
    %v663 = vpack.c.b16 %v599, %v595
    %v664 = vpack.c.b16 %v600, %v596
    %v665 = vpack.c.b16 %v601, %v597
    %730 = vmatprep.subr.bf16.mxu0 %v631
    %731 = vmatpush1.bf16.msra.mxu0 %v630
    %732 = vmatprep.subr.bf16.mxu0 %v627
    %733 = vmatpush1.bf16.msra.mxu0 %v626
    %734 = vmatprep.subr.bf16.mxu0 %v623
    %735 = vmatpush1.bf16.msra.mxu0 %v622
    %736 = vmatprep.subr.bf16.mxu0 %v619
    %737 = vmatpush1.bf16.msra.mxu0 %v618
    %738 = vmatprep.subr.bf16.mxu0 %v615
    %739 = vmatpush1.bf16.msra.mxu0 %v614
    %740 = vmatprep.subr.bf16.mxu0 %v611
    %741 = vmatpush1.bf16.msra.mxu0 %v610
    %742 = vmatprep.subr.bf16.mxu0 %v607
    %743 = vmatpush1.bf16.msra.mxu0 %v606
    %744 = vmatprep.subr.bf16.mxu0 %v603
    %745 = vmatpush1.bf16.msra.mxu0 %v602
    %746 = vmatprep.subr.bf16.mxu0 %v663
    %747 = vmatpush2.bf16.msra.mxu0 %v662
    %748 = vmatprep.subr.bf16.mxu0 %v659
    %749 = vmatpush2.bf16.msra.mxu0 %v658
    %750 = vmatprep.subr.bf16.mxu0 %v655
    %751 = vmatpush2.bf16.msra.mxu0 %v654
    %752 = vmatprep.subr.bf16.mxu0 %v651
    %753 = vmatpush2.bf16.msra.mxu0 %v650
    %754 = vmatprep.subr.bf16.mxu0 %v647
    %755 = vmatpush2.bf16.msra.mxu0 %v646
    %756 = vmatprep.subr.bf16.mxu0 %v643
    %757 = vmatpush2.bf16.msra.mxu0 %v642
    %758 = vmatprep.subr.bf16.mxu0 %v639
    %759 = vmatpush2.bf16.msra.mxu0 %v638
    %760 = vmatprep.subr.bf16.mxu0 %v635
    %761 = vmatpush2.bf16.msra.mxu0 %v634
    %762 = vmatprep.mubr.bf16.mxu0 %v391
    %763 = vmatmul.mubr.bf16.gmra.mxu0 %v390
    %v764 = vpop.f32.mrf.mxu0
    %v765 = vadd.f32 %v397, %v764
    %v766 = vpop.f32.mrf.mxu0
    %v767 = vadd.f32 %v401, %v766
    %v768 = vpop.f32.mrf.mxu0
    %v769 = vadd.f32 %v397, %v768
    %v770 = vpop.f32.mrf.mxu0
    %v771 = vadd.f32 %v401, %v770
    %772 = vmatprep.mubr.bf16.mxu0 %v393
    %773 = vmatmul.mubr.bf16.gmra.mxu0 %v392
    %v774 = vpop.f32.mrf.mxu0
    %v775 = vadd.f32 %v397, %v774
    %v776 = vpop.f32.mrf.mxu0
    %v777 = vadd.f32 %v401, %v776
    %v778 = vpop.f32.mrf.mxu0
    %v779 = vadd.f32 %v397, %v778
    %v780 = vpop.f32.mrf.mxu0
    %v781 = vadd.f32 %v401, %v780
    %782 = vdwg.mxu0
    %783 = vmatprep.subr.bf16.mxu0 %v633
    %784 = vmatpush1.bf16.msra.mxu0 %v632
    %785 = vmatprep.subr.bf16.mxu0 %v629
    %786 = vmatpush1.bf16.msra.mxu0 %v628
    %787 = vmatprep.subr.bf16.mxu0 %v625
    %788 = vmatpush1.bf16.msra.mxu0 %v624
    %789 = vmatprep.subr.bf16.mxu0 %v621
    %790 = vmatpush1.bf16.msra.mxu0 %v620
    %791 = vmatprep.subr.bf16.mxu0 %v617
    %792 = vmatpush1.bf16.msra.mxu0 %v616
    %793 = vmatprep.subr.bf16.mxu0 %v613
    %794 = vmatpush1.bf16.msra.mxu0 %v612
    %795 = vmatprep.subr.bf16.mxu0 %v609
    %796 = vmatpush1.bf16.msra.mxu0 %v608
    %797 = vmatprep.subr.bf16.mxu0 %v605
    %798 = vmatpush1.bf16.msra.mxu0 %v604
    %799 = vmatprep.subr.bf16.mxu0 %v665
    %800 = vmatpush2.bf16.msra.mxu0 %v664
    %801 = vmatprep.subr.bf16.mxu0 %v661
    %802 = vmatpush2.bf16.msra.mxu0 %v660
    %803 = vmatprep.subr.bf16.mxu0 %v657
    %804 = vmatpush2.bf16.msra.mxu0 %v656
    %805 = vmatprep.subr.bf16.mxu0 %v653
    %806 = vmatpush2.bf16.msra.mxu0 %v652
    %807 = vmatprep.subr.bf16.mxu0 %v649
    %808 = vmatpush2.bf16.msra.mxu0 %v648
    %809 = vmatprep.subr.bf16.mxu0 %v645
    %810 = vmatpush2.bf16.msra.mxu0 %v644
    %811 = vmatprep.subr.bf16.mxu0 %v641
    %812 = vmatpush2.bf16.msra.mxu0 %v640
    %813 = vmatprep.subr.bf16.mxu0 %v637
    %814 = vmatpush2.bf16.msra.mxu0 %v636
    %815 = vmatprep.mubr.bf16.mxu0 %v391
    %816 = vmatmul.mubr.bf16.gmra.mxu0 %v390
    %v817 = vpop.f32.mrf.mxu0
    %v818 = vadd.f32 %v405, %v817
    %v819 = vpop.f32.mrf.mxu0
    %v820 = vadd.f32 %v409, %v819
    %v821 = vpop.f32.mrf.mxu0
    %v822 = vadd.f32 %v405, %v821
    %v823 = vpop.f32.mrf.mxu0
    %v824 = vadd.f32 %v409, %v823
    %825 = vmatprep.mubr.bf16.mxu0 %v393
    %826 = vmatmul.mubr.bf16.gmra.mxu0 %v392
    %v827 = vpop.f32.mrf.mxu0
    %v828 = vadd.f32 %v405, %v827
    %v829 = vpop.f32.mrf.mxu0
    %v830 = vadd.f32 %v409, %v829
    %v831 = vpop.f32.mrf.mxu0
    %v832 = vadd.f32 %v405, %v831
    %v833 = vpop.f32.mrf.mxu0
    %v834 = vadd.f32 %v409, %v833
    %835 = vdwg.mxu0
    %v836 = vmax.f32 %v765, %v769
    %v837 = vrot.slane %v836, 4
    %v838 = vmax.f32 %v836, %v837
    %v839 = vrot.slane %v838, 2
    %v840 = vmax.f32 %v838, %v839
    %v841 = vrot.slane %v840, 1
    %v842 = vmax.f32 %v840, %v841
    %v843 = vmax.f32 %v767, %v771
    %v844 = vrot.slane %v843, 4
    %v845 = vmax.f32 %v843, %v844
    %v846 = vrot.slane %v845, 2
    %v847 = vmax.f32 %v845, %v846
    %v848 = vrot.slane %v847, 1
    %v849 = vmax.f32 %v847, %v848
    %v850 = vmax.f32 %v818, %v822
    %v851 = vrot.slane %v850, 4
    %v852 = vmax.f32 %v850, %v851
    %v853 = vrot.slane %v852, 2
    %v854 = vmax.f32 %v852, %v853
    %v855 = vrot.slane %v854, 1
    %v856 = vmax.f32 %v854, %v855
    %v857 = vmax.f32 %v820, %v824
    %v858 = vrot.slane %v857, 4
    %v859 = vmax.f32 %v857, %v858
    %v860 = vrot.slane %v859, 2
    %v861 = vmax.f32 %v859, %v860
    %v862 = vrot.slane %v861, 1
    %v863 = vmax.f32 %v861, %v862
    %v864 = vmax.f32 %v775, %v779
    %v865 = vrot.slane %v864, 4
    %v866 = vmax.f32 %v864, %v865
    %v867 = vrot.slane %v866, 2
    %v868 = vmax.f32 %v866, %v867
    %v869 = vrot.slane %v868, 1
    %v870 = vmax.f32 %v868, %v869
    %v871 = vmax.f32 %v777, %v781
    %v872 = vrot.slane %v871, 4
    %v873 = vmax.f32 %v871, %v872
    %v874 = vrot.slane %v873, 2
    %v875 = vmax.f32 %v873, %v874
    %v876 = vrot.slane %v875, 1
    %v877 = vmax.f32 %v875, %v876
    %v878 = vmax.f32 %v828, %v832
    %v879 = vrot.slane %v878, 4
    %v880 = vmax.f32 %v878, %v879
    %v881 = vrot.slane %v880, 2
    %v882 = vmax.f32 %v880, %v881
    %v883 = vrot.slane %v882, 1
    %v884 = vmax.f32 %v882, %v883
    %v885 = vmax.f32 %v830, %v834
    %v886 = vrot.slane %v885, 4
    %v887 = vmax.f32 %v885, %v886
    %v888 = vrot.slane %v887, 2
    %v889 = vmax.f32 %v887, %v888
    %v890 = vrot.slane %v889, 1
    %v891 = vmax.f32 %v889, %v890
    %vm892 = vcmask 1040384
    %v893 = vsel %vm892, %v842, %v870
    %v894 = vsel %vm892, %v849, %v877
    %v895 = vsel %vm892, %v856, %v884
    %v896 = vsel %vm892, %v863, %v891
    %s897 = smul.u32 4, 194
    %s898 = smul.u32 %s897, 4
    %s899 = sshll.u32 %s898, 4
    %900 = dma.done %s42, %s899
    %v901 = vld [vmem:[#allocation3 + $0x20] sm:$0xff]
    %v902 = vld [vmem:[#allocation3 + $0x28] sm:$0xff]
    %v903 = vld [vmem:[#allocation3 + $0x30] sm:$0xff]
    %v904 = vld [vmem:[#allocation3 + $0x38] sm:$0xff]
    %v905 = vld [vmem:[#allocation3 + $0x40] sm:$0xff]
    %v906 = vld [vmem:[#allocation3 + $0x48] sm:$0xff]
    %v907 = vld [vmem:[#allocation3 + $0x50] sm:$0xff]
    %v908 = vld [vmem:[#allocation3 + $0x58] sm:$0xff]
    %v909 = vld [vmem:[#allocation3 + $0x60] sm:$0xff]
    %v910 = vld [vmem:[#allocation3 + $0x68] sm:$0xff]
    %v911 = vld [vmem:[#allocation3 + $0x70] sm:$0xff]
    %v912 = vld [vmem:[#allocation3 + $0x78] sm:$0xff]
    %v913 = vld [vmem:[#allocation3 + $0x80] sm:$0xff]
    %v914 = vld [vmem:[#allocation3 + $0x88] sm:$0xff]
    %v915 = vld [vmem:[#allocation3 + $0x90] sm:$0xff]
    %v916 = vld [vmem:[#allocation3 + $0x98] sm:$0xff]
    %v917 = vld [vmem:[#allocation3 + $0xa0] sm:$0xff]
    %v918 = vld [vmem:[#allocation3 + $0xa8] sm:$0xff]
    %v919 = vld [vmem:[#allocation3 + $0xb0] sm:$0xff]
    %v920 = vld [vmem:[#allocation3 + $0xb8] sm:$0xff]
    %v921 = vld [vmem:[#allocation3 + $0xc0] sm:$0xff]
    %v922 = vld [vmem:[#allocation3 + $0xc8] sm:$0xff]
    %v923 = vld [vmem:[#allocation3 + $0xd0] sm:$0xff]
    %v924 = vld [vmem:[#allocation3 + $0xd8] sm:$0xff]
    %v925 = vld [vmem:[#allocation3 + $0xe0] sm:$0xff]
    %v926 = vld [vmem:[#allocation3 + $0xe8] sm:$0xff]
    %v927 = vld [vmem:[#allocation3 + $0xf0] sm:$0xff]
    %v928 = vld [vmem:[#allocation3 + $0xf8] sm:$0xff]
    %v929 = vld [vmem:[#allocation3 + $0x100] sm:$0xff]
    %v930 = vld [vmem:[#allocation3 + $0x108] sm:$0xff]
    %v931 = vld [vmem:[#allocation3 + $0x110] sm:$0xff]
    %v932 = vld [vmem:[#allocation3 + $0x118] sm:$0xff]
    %v933 = vld [vmem:[#allocation3 + $0x120] sm:$0xff]
    %v934 = vld [vmem:[#allocation3 + $0x128] sm:$0xff]
    %v935 = vld [vmem:[#allocation3 + $0x130] sm:$0xff]
    %v936 = vld [vmem:[#allocation3 + $0x138] sm:$0xff]
    %v937 = vld [vmem:[#allocation3 + $0x140] sm:$0xff]
    %v938 = vld [vmem:[#allocation3 + $0x148] sm:$0xff]
    %v939 = vld [vmem:[#allocation3 + $0x150] sm:$0xff]
    %v940 = vld [vmem:[#allocation3 + $0x158] sm:$0xff]
    %v941 = vld [vmem:[#allocation3 + $0x160] sm:$0xff]
    %v942 = vld [vmem:[#allocation3 + $0x168] sm:$0xff]
    %v943 = vld [vmem:[#allocation3 + $0x170] sm:$0xff]
    %v944 = vld [vmem:[#allocation3 + $0x178] sm:$0xff]
    %v945 = vld [vmem:[#allocation3 + $0x180] sm:$0xff]
    %v946 = vld [vmem:[#allocation3 + $0x188] sm:$0xff]
    %v947 = vld [vmem:[#allocation3 + $0x190] sm:$0xff]
    %v948 = vld [vmem:[#allocation3 + $0x198] sm:$0xff]
    %v949 = vld [vmem:[#allocation3 + $0x1a0] sm:$0xff]
    %v950 = vld [vmem:[#allocation3 + $0x1a8] sm:$0xff]
    %v951 = vld [vmem:[#allocation3 + $0x1b0] sm:$0xff]
    %v952 = vld [vmem:[#allocation3 + $0x1b8] sm:$0xff]
    %v953 = vld [vmem:[#allocation3 + $0x1c0] sm:$0xff]
    %v954 = vld [vmem:[#allocation3 + $0x1c8] sm:$0xff]
    %v955 = vld [vmem:[#allocation3 + $0x1d0] sm:$0xff]
    %v956 = vld [vmem:[#allocation3 + $0x1d8] sm:$0xff]
    %v957 = vld [vmem:[#allocation3 + $0x1e0] sm:$0xff]
    %v958 = vld [vmem:[#allocation3 + $0x1e8] sm:$0xff]
    %v959 = vld [vmem:[#allocation3 + $0x1f0] sm:$0xff]
    %v960 = vld [vmem:[#allocation3 + $0x1f8] sm:$0xff]
    %v961 = vld [vmem:[#allocation3 + $0x200] sm:$0xff]
    %v962 = vld [vmem:[#allocation3 + $0x208] sm:$0xff]
    %v963 = vld [vmem:[#allocation3 + $0x210] sm:$0xff]
    %v964 = vld [vmem:[#allocation3 + $0x218] sm:$0xff]
    %v965 = vld [vmem:[#allocation3 + $0x220] sm:$0xff]
    %v966 = vld [vmem:[#allocation3 + $0x228] sm:$0xff]
    %v967 = vld [vmem:[#allocation3 + $0x230] sm:$0xff]
    %v968 = vld [vmem:[#allocation3 + $0x238] sm:$0xff]
    %v969 = vld [vmem:[#allocation3 + $0x240] sm:$0xff]
    %v970 = vld [vmem:[#allocation3 + $0x248] sm:$0xff]
    %v971 = vld [vmem:[#allocation3 + $0x250] sm:$0xff]
    %v972 = vld [vmem:[#allocation3 + $0x258] sm:$0xff]
    %v973 = vld [vmem:[#allocation3 + $0x260] sm:$0xff]
    %v974 = vld [vmem:[#allocation3 + $0x268] sm:$0xff]
    %v975 = vld [vmem:[#allocation3 + $0x270] sm:$0xff]
    %v976 = vld [vmem:[#allocation3 + $0x278] sm:$0xff]
    %v977 = vld [vmem:[#allocation3 + $0x280] sm:$0xff]
    %v978 = vld [vmem:[#allocation3 + $0x288] sm:$0xff]
    %v979 = vld [vmem:[#allocation3 + $0x290] sm:$0xff]
    %v980 = vld [vmem:[#allocation3 + $0x298] sm:$0xff]
    %v981 = vld [vmem:[#allocation3 + $0x2a0] sm:$0xff]
    %v982 = vld [vmem:[#allocation3 + $0x2a8] sm:$0xff]
    %v983 = vld [vmem:[#allocation3 + $0x2b0] sm:$0xff]
    %v984 = vld [vmem:[#allocation3 + $0x2b8] sm:$0xff]
    %v985 = vld [vmem:[#allocation3 + $0x2c0] sm:$0xff]
    %v986 = vld [vmem:[#allocation3 + $0x2c8] sm:$0xff]
    %v987 = vld [vmem:[#allocation3 + $0x2d0] sm:$0xff]
    %v988 = vld [vmem:[#allocation3 + $0x2d8] sm:$0xff]
    %v989 = vld [vmem:[#allocation3 + $0x2e0] sm:$0xff]
    %v990 = vld [vmem:[#allocation3 + $0x2e8] sm:$0xff]
    %v991 = vld [vmem:[#allocation3 + $0x2f0] sm:$0xff]
    %v992 = vld [vmem:[#allocation3 + $0x2f8] sm:$0xff]
    %v993 = vld [vmem:[#allocation3 + $0x300] sm:$0xff]
    %v994 = vld [vmem:[#allocation3 + $0x308] sm:$0xff]
    %v995 = vld [vmem:[#allocation3 + $0x310] sm:$0xff]
    %v996 = vld [vmem:[#allocation3 + $0x318] sm:$0xff]
    %v997 = vld [vmem:[#allocation3 + $0x320] sm:$0xff]
    %v998 = vld [vmem:[#allocation3 + $0x328] sm:$0xff]
    %v999 = vld [vmem:[#allocation3 + $0x330] sm:$0xff]
    %v1000 = vld [vmem:[#allocation3 + $0x338] sm:$0xff]
    %v1001 = vld [vmem:[#allocation3 + $0x340] sm:$0xff]
    %v1002 = vld [vmem:[#allocation3 + $0x348] sm:$0xff]
    %v1003 = vld [vmem:[#allocation3 + $0x350] sm:$0xff]
    %v1004 = vld [vmem:[#allocation3 + $0x358] sm:$0xff]
    %v1005 = vld [vmem:[#allocation3 + $0x360] sm:$0xff]
    %v1006 = vld [vmem:[#allocation3 + $0x368] sm:$0xff]
    %v1007 = vld [vmem:[#allocation3 + $0x370] sm:$0xff]
    %v1008 = vld [vmem:[#allocation3 + $0x378] sm:$0xff]
    %v1009 = vld [vmem:[#allocation3 + $0x380] sm:$0xff]
    %v1010 = vld [vmem:[#allocation3 + $0x388] sm:$0xff]
    %v1011 = vld [vmem:[#allocation3 + $0x390] sm:$0xff]
    %v1012 = vld [vmem:[#allocation3 + $0x398] sm:$0xff]
    %v1013 = vld [vmem:[#allocation3 + $0x3a0] sm:$0xff]
    %v1014 = vld [vmem:[#allocation3 + $0x3a8] sm:$0xff]
    %v1015 = vld [vmem:[#allocation3 + $0x3b0] sm:$0xff]
    %v1016 = vld [vmem:[#allocation3 + $0x3b8] sm:$0xff]
    %v1017 = vld [vmem:[#allocation3 + $0x3c0] sm:$0xff]
    %v1018 = vld [vmem:[#allocation3 + $0x3c8] sm:$0xff]
    %v1019 = vld [vmem:[#allocation3 + $0x3d0] sm:$0xff]
    %v1020 = vld [vmem:[#allocation3 + $0x3d8] sm:$0xff]
    %v1021 = vld [vmem:[#allocation3 + $0x3e0] sm:$0xff]
    %v1022 = vld [vmem:[#allocation3 + $0x3e8] sm:$0xff]
    %v1023 = vld [vmem:[#allocation3 + $0x3f0] sm:$0xff]
    %v1024 = vld [vmem:[#allocation3 + $0x3f8] sm:$0xff]
    %v1025 = vld [vmem:[#allocation3 + $0x400] sm:$0xff]
    %v1026 = vld [vmem:[#allocation3 + $0x408] sm:$0xff]
    %v1027 = vld [vmem:[#allocation3 + $0x410] sm:$0xff]
    %v1028 = vld [vmem:[#allocation3 + $0x418] sm:$0xff]
    %v1029 = vpack.c.bf16 %v893, %v893
    %v1030 = vpack.c.bf16 %v894, %v894
    %v1031 = vpack.c.bf16 %v895, %v895
    %v1032 = vpack.c.bf16 %v896, %v896
    %v1161 = vunpack.c.l.b16 %v901
    %v1162 = vunpack.c.h.b16 %v901
    %v1163 = vunpack.c.l.b16 %v902
    %v1164 = vunpack.c.h.b16 %v902
    %v1165 = vunpack.c.l.b16 %v903
    %v1166 = vunpack.c.h.b16 %v903
    %v1167 = vunpack.c.l.b16 %v904
    %v1168 = vunpack.c.h.b16 %v904
    %v1169 = vunpack.c.l.b16 %v905
    %v1170 = vunpack.c.h.b16 %v905
    %v1171 = vunpack.c.l.b16 %v906
    %v1172 = vunpack.c.h.b16 %v906
    %v1173 = vunpack.c.l.b16 %v907
    %v1174 = vunpack.c.h.b16 %v907
    %v1175 = vunpack.c.l.b16 %v908
    %v1176 = vunpack.c.h.b16 %v908
    %v1177 = vunpack.c.l.b16 %v909
    %v1178 = vunpack.c.h.b16 %v909
    %v1179 = vunpack.c.l.b16 %v910
    %v1180 = vunpack.c.h.b16 %v910
    %v1181 = vunpack.c.l.b16 %v911
    %v1182 = vunpack.c.h.b16 %v911
    %v1183 = vunpack.c.l.b16 %v912
    %v1184 = vunpack.c.h.b16 %v912
    %v1185 = vunpack.c.l.b16 %v913
    %v1186 = vunpack.c.h.b16 %v913
    %v1187 = vunpack.c.l.b16 %v914
    %v1188 = vunpack.c.h.b16 %v914
    %v1189 = vunpack.c.l.b16 %v915
    %v1190 = vunpack.c.h.b16 %v915
    %v1191 = vunpack.c.l.b16 %v916
    %v1192 = vunpack.c.h.b16 %v916
    %v1193 = vunpack.c.l.b16 %v917
    %v1194 = vunpack.c.h.b16 %v917
    %v1195 = vunpack.c.l.b16 %v918
    %v1196 = vunpack.c.h.b16 %v918
    %v1197 = vunpack.c.l.b16 %v919
    %v1198 = vunpack.c.h.b16 %v919
    %v1199 = vunpack.c.l.b16 %v920
    %v1200 = vunpack.c.h.b16 %v920
    %v1201 = vunpack.c.l.b16 %v921
    %v1202 = vunpack.c.h.b16 %v921
    %v1203 = vunpack.c.l.b16 %v922
    %v1204 = vunpack.c.h.b16 %v922
    %v1205 = vunpack.c.l.b16 %v923
    %v1206 = vunpack.c.h.b16 %v923
    %v1207 = vunpack.c.l.b16 %v924
    %v1208 = vunpack.c.h.b16 %v924
    %v1209 = vunpack.c.l.b16 %v925
    %v1210 = vunpack.c.h.b16 %v925
    %v1211 = vunpack.c.l.b16 %v926
    %v1212 = vunpack.c.h.b16 %v926
    %v1213 = vunpack.c.l.b16 %v927
    %v1214 = vunpack.c.h.b16 %v927
    %v1215 = vunpack.c.l.b16 %v928
    %v1216 = vunpack.c.h.b16 %v928
    %v1217 = vunpack.c.l.b16 %v929
    %v1218 = vunpack.c.h.b16 %v929
    %v1219 = vunpack.c.l.b16 %v930
    %v1220 = vunpack.c.h.b16 %v930
    %v1221 = vunpack.c.l.b16 %v931
    %v1222 = vunpack.c.h.b16 %v931
    %v1223 = vunpack.c.l.b16 %v932
    %v1224 = vunpack.c.h.b16 %v932
    %v1225 = vunpack.c.l.b16 %v933
    %v1226 = vunpack.c.h.b16 %v933
    %v1227 = vunpack.c.l.b16 %v934
    %v1228 = vunpack.c.h.b16 %v934
    %v1229 = vunpack.c.l.b16 %v935
    %v1230 = vunpack.c.h.b16 %v935
    %v1231 = vunpack.c.l.b16 %v936
    %v1232 = vunpack.c.h.b16 %v936
    %v1233 = vunpack.c.l.b16 %v937
    %v1234 = vunpack.c.h.b16 %v937
    %v1235 = vunpack.c.l.b16 %v938
    %v1236 = vunpack.c.h.b16 %v938
    %v1237 = vunpack.c.l.b16 %v939
    %v1238 = vunpack.c.h.b16 %v939
    %v1239 = vunpack.c.l.b16 %v940
    %v1240 = vunpack.c.h.b16 %v940
    %v1241 = vunpack.c.l.b16 %v941
    %v1242 = vunpack.c.h.b16 %v941
    %v1243 = vunpack.c.l.b16 %v942
    %v1244 = vunpack.c.h.b16 %v942
    %v1245 = vunpack.c.l.b16 %v943
    %v1246 = vunpack.c.h.b16 %v943
    %v1247 = vunpack.c.l.b16 %v944
    %v1248 = vunpack.c.h.b16 %v944
    %v1249 = vunpack.c.l.b16 %v945
    %v1250 = vunpack.c.h.b16 %v945
    %v1251 = vunpack.c.l.b16 %v946
    %v1252 = vunpack.c.h.b16 %v946
    %v1253 = vunpack.c.l.b16 %v947
    %v1254 = vunpack.c.h.b16 %v947
    %v1255 = vunpack.c.l.b16 %v948
    %v1256 = vunpack.c.h.b16 %v948
    %v1257 = vunpack.c.l.b16 %v949
    %v1258 = vunpack.c.h.b16 %v949
    %v1259 = vunpack.c.l.b16 %v950
    %v1260 = vunpack.c.h.b16 %v950
    %v1261 = vunpack.c.l.b16 %v951
    %v1262 = vunpack.c.h.b16 %v951
    %v1263 = vunpack.c.l.b16 %v952
    %v1264 = vunpack.c.h.b16 %v952
    %v1265 = vunpack.c.l.b16 %v953
    %v1266 = vunpack.c.h.b16 %v953
    %v1267 = vunpack.c.l.b16 %v954
    %v1268 = vunpack.c.h.b16 %v954
    %v1269 = vunpack.c.l.b16 %v955
    %v1270 = vunpack.c.h.b16 %v955
    %v1271 = vunpack.c.l.b16 %v956
    %v1272 = vunpack.c.h.b16 %v956
    %v1273 = vunpack.c.l.b16 %v957
    %v1274 = vunpack.c.h.b16 %v957
    %v1275 = vunpack.c.l.b16 %v958
    %v1276 = vunpack.c.h.b16 %v958
    %v1277 = vunpack.c.l.b16 %v959
    %v1278 = vunpack.c.h.b16 %v959
    %v1279 = vunpack.c.l.b16 %v960
    %v1280 = vunpack.c.h.b16 %v960
    %v1281 = vunpack.c.l.b16 %v961
    %v1282 = vunpack.c.h.b16 %v961
    %v1283 = vunpack.c.l.b16 %v962
    %v1284 = vunpack.c.h.b16 %v962
    %v1285 = vunpack.c.l.b16 %v963
    %v1286 = vunpack.c.h.b16 %v963
    %v1287 = vunpack.c.l.b16 %v964
    %v1288 = vunpack.c.h.b16 %v964
    %v1289 = vunpack.c.l.b16 %v965
    %v1290 = vunpack.c.h.b16 %v965
    %v1291 = vunpack.c.l.b16 %v966
    %v1292 = vunpack.c.h.b16 %v966
    %v1293 = vunpack.c.l.b16 %v967
    %v1294 = vunpack.c.h.b16 %v967
    %v1295 = vunpack.c.l.b16 %v968
    %v1296 = vunpack.c.h.b16 %v968
    %v1297 = vunpack.c.l.b16 %v969
    %v1298 = vunpack.c.h.b16 %v969
    %v1299 = vunpack.c.l.b16 %v970
    %v1300 = vunpack.c.h.b16 %v970
    %v1301 = vunpack.c.l.b16 %v971
    %v1302 = vunpack.c.h.b16 %v971
    %v1303 = vunpack.c.l.b16 %v972
    %v1304 = vunpack.c.h.b16 %v972
    %v1305 = vunpack.c.l.b16 %v973
    %v1306 = vunpack.c.h.b16 %v973
    %v1307 = vunpack.c.l.b16 %v974
    %v1308 = vunpack.c.h.b16 %v974
    %v1309 = vunpack.c.l.b16 %v975
    %v1310 = vunpack.c.h.b16 %v975
    %v1311 = vunpack.c.l.b16 %v976
    %v1312 = vunpack.c.h.b16 %v976
    %v1313 = vunpack.c.l.b16 %v977
    %v1314 = vunpack.c.h.b16 %v977
    %v1315 = vunpack.c.l.b16 %v978
    %v1316 = vunpack.c.h.b16 %v978
    %v1317 = vunpack.c.l.b16 %v979
    %v1318 = vunpack.c.h.b16 %v979
    %v1319 = vunpack.c.l.b16 %v980
    %v1320 = vunpack.c.h.b16 %v980
    %v1321 = vunpack.c.l.b16 %v981
    %v1322 = vunpack.c.h.b16 %v981
    %v1323 = vunpack.c.l.b16 %v982
    %v1324 = vunpack.c.h.b16 %v982
    %v1325 = vunpack.c.l.b16 %v983
    %v1326 = vunpack.c.h.b16 %v983
    %v1327 = vunpack.c.l.b16 %v984
    %v1328 = vunpack.c.h.b16 %v984
    %v1329 = vunpack.c.l.b16 %v985
    %v1330 = vunpack.c.h.b16 %v985
    %v1331 = vunpack.c.l.b16 %v986
    %v1332 = vunpack.c.h.b16 %v986
    %v1333 = vunpack.c.l.b16 %v987
    %v1334 = vunpack.c.h.b16 %v987
    %v1335 = vunpack.c.l.b16 %v988
    %v1336 = vunpack.c.h.b16 %v988
    %v1337 = vunpack.c.l.b16 %v989
    %v1338 = vunpack.c.h.b16 %v989
    %v1339 = vunpack.c.l.b16 %v990
    %v1340 = vunpack.c.h.b16 %v990
    %v1341 = vunpack.c.l.b16 %v991
    %v1342 = vunpack.c.h.b16 %v991
    %v1343 = vunpack.c.l.b16 %v992
    %v1344 = vunpack.c.h.b16 %v992
    %v1345 = vunpack.c.l.b16 %v993
    %v1346 = vunpack.c.h.b16 %v993
    %v1347 = vunpack.c.l.b16 %v994
    %v1348 = vunpack.c.h.b16 %v994
    %v1349 = vunpack.c.l.b16 %v995
    %v1350 = vunpack.c.h.b16 %v995
    %v1351 = vunpack.c.l.b16 %v996
    %v1352 = vunpack.c.h.b16 %v996
    %v1353 = vunpack.c.l.b16 %v997
    %v1354 = vunpack.c.h.b16 %v997
    %v1355 = vunpack.c.l.b16 %v998
    %v1356 = vunpack.c.h.b16 %v998
    %v1357 = vunpack.c.l.b16 %v999
    %v1358 = vunpack.c.h.b16 %v999
    %v1359 = vunpack.c.l.b16 %v1000
    %v1360 = vunpack.c.h.b16 %v1000
    %v1361 = vunpack.c.l.b16 %v1001
    %v1362 = vunpack.c.h.b16 %v1001
    %v1363 = vunpack.c.l.b16 %v1002
    %v1364 = vunpack.c.h.b16 %v1002
    %v1365 = vunpack.c.l.b16 %v1003
    %v1366 = vunpack.c.h.b16 %v1003
    %v1367 = vunpack.c.l.b16 %v1004
    %v1368 = vunpack.c.h.b16 %v1004
    %v1369 = vunpack.c.l.b16 %v1005
    %v1370 = vunpack.c.h.b16 %v1005
    %v1371 = vunpack.c.l.b16 %v1006
    %v1372 = vunpack.c.h.b16 %v1006
    %v1373 = vunpack.c.l.b16 %v1007
    %v1374 = vunpack.c.h.b16 %v1007
    %v1375 = vunpack.c.l.b16 %v1008
    %v1376 = vunpack.c.h.b16 %v1008
    %v1377 = vunpack.c.l.b16 %v1009
    %v1378 = vunpack.c.h.b16 %v1009
    %v1379 = vunpack.c.l.b16 %v1010
    %v1380 = vunpack.c.h.b16 %v1010
    %v1381 = vunpack.c.l.b16 %v1011
    %v1382 = vunpack.c.h.b16 %v1011
    %v1383 = vunpack.c.l.b16 %v1012
    %v1384 = vunpack.c.h.b16 %v1012
    %v1385 = vunpack.c.l.b16 %v1013
    %v1386 = vunpack.c.h.b16 %v1013
    %v1387 = vunpack.c.l.b16 %v1014
    %v1388 = vunpack.c.h.b16 %v1014
    %v1389 = vunpack.c.l.b16 %v1015
    %v1390 = vunpack.c.h.b16 %v1015
    %v1391 = vunpack.c.l.b16 %v1016
    %v1392 = vunpack.c.h.b16 %v1016
    %v1393 = vunpack.c.l.b16 %v1017
    %v1394 = vunpack.c.h.b16 %v1017
    %v1395 = vunpack.c.l.b16 %v1018
    %v1396 = vunpack.c.h.b16 %v1018
    %v1397 = vunpack.c.l.b16 %v1019
    %v1398 = vunpack.c.h.b16 %v1019
    %v1399 = vunpack.c.l.b16 %v1020
    %v1400 = vunpack.c.h.b16 %v1020
    %v1401 = vunpack.c.l.b16 %v1021
    %v1402 = vunpack.c.h.b16 %v1021
    %v1403 = vunpack.c.l.b16 %v1022
    %v1404 = vunpack.c.h.b16 %v1022
    %v1405 = vunpack.c.l.b16 %v1023
    %v1406 = vunpack.c.h.b16 %v1023
    %v1407 = vunpack.c.l.b16 %v1024
    %v1408 = vunpack.c.h.b16 %v1024
    %v1409 = vunpack.c.l.b16 %v1025
    %v1410 = vunpack.c.h.b16 %v1025
    %v1411 = vunpack.c.l.b16 %v1026
    %v1412 = vunpack.c.h.b16 %v1026
    %v1413 = vunpack.c.l.b16 %v1027
    %v1414 = vunpack.c.h.b16 %v1027
    %v1415 = vunpack.c.l.b16 %v1028
    %v1416 = vunpack.c.h.b16 %v1028
    %v1417 = vpack.c.b16 %v1165, %v1161
    %v1418 = vpack.c.b16 %v1166, %v1162
    %v1419 = vpack.c.b16 %v1167, %v1163
    %v1420 = vpack.c.b16 %v1168, %v1164
    %v1421 = vpack.c.b16 %v1173, %v1169
    %v1422 = vpack.c.b16 %v1174, %v1170
    %v1423 = vpack.c.b16 %v1175, %v1171
    %v1424 = vpack.c.b16 %v1176, %v1172
    %v1425 = vpack.c.b16 %v1181, %v1177
    %v1426 = vpack.c.b16 %v1182, %v1178
    %v1427 = vpack.c.b16 %v1183, %v1179
    %v1428 = vpack.c.b16 %v1184, %v1180
    %v1429 = vpack.c.b16 %v1189, %v1185
    %v1430 = vpack.c.b16 %v1190, %v1186
    %v1431 = vpack.c.b16 %v1191, %v1187
    %v1432 = vpack.c.b16 %v1192, %v1188
    %v1433 = vpack.c.b16 %v1197, %v1193
    %v1434 = vpack.c.b16 %v1198, %v1194
    %v1435 = vpack.c.b16 %v1199, %v1195
    %v1436 = vpack.c.b16 %v1200, %v1196
    %v1437 = vpack.c.b16 %v1205, %v1201
    %v1438 = vpack.c.b16 %v1206, %v1202
    %v1439 = vpack.c.b16 %v1207, %v1203
    %v1440 = vpack.c.b16 %v1208, %v1204
    %v1441 = vpack.c.b16 %v1213, %v1209
    %v1442 = vpack.c.b16 %v1214, %v1210
    %v1443 = vpack.c.b16 %v1215, %v1211
    %v1444 = vpack.c.b16 %v1216, %v1212
    %v1445 = vpack.c.b16 %v1221, %v1217
    %v1446 = vpack.c.b16 %v1222, %v1218
    %v1447 = vpack.c.b16 %v1223, %v1219
    %v1448 = vpack.c.b16 %v1224, %v1220
    %v1449 = vpack.c.b16 %v1229, %v1225
    %v1450 = vpack.c.b16 %v1230, %v1226
    %v1451 = vpack.c.b16 %v1231, %v1227
    %v1452 = vpack.c.b16 %v1232, %v1228
    %v1453 = vpack.c.b16 %v1237, %v1233
    %v1454 = vpack.c.b16 %v1238, %v1234
    %v1455 = vpack.c.b16 %v1239, %v1235
    %v1456 = vpack.c.b16 %v1240, %v1236
    %v1457 = vpack.c.b16 %v1245, %v1241
    %v1458 = vpack.c.b16 %v1246, %v1242
    %v1459 = vpack.c.b16 %v1247, %v1243
    %v1460 = vpack.c.b16 %v1248, %v1244
    %v1461 = vpack.c.b16 %v1253, %v1249
    %v1462 = vpack.c.b16 %v1254, %v1250
    %v1463 = vpack.c.b16 %v1255, %v1251
    %v1464 = vpack.c.b16 %v1256, %v1252
    %v1465 = vpack.c.b16 %v1261, %v1257
    %v1466 = vpack.c.b16 %v1262, %v1258
    %v1467 = vpack.c.b16 %v1263, %v1259
    %v1468 = vpack.c.b16 %v1264, %v1260
    %v1469 = vpack.c.b16 %v1269, %v1265
    %v1470 = vpack.c.b16 %v1270, %v1266
    %v1471 = vpack.c.b16 %v1271, %v1267
    %v1472 = vpack.c.b16 %v1272, %v1268
    %v1473 = vpack.c.b16 %v1277, %v1273
    %v1474 = vpack.c.b16 %v1278, %v1274
    %v1475 = vpack.c.b16 %v1279, %v1275
    %v1476 = vpack.c.b16 %v1280, %v1276
    %v1477 = vpack.c.b16 %v1285, %v1281
    %v1478 = vpack.c.b16 %v1286, %v1282
    %v1479 = vpack.c.b16 %v1287, %v1283
    %v1480 = vpack.c.b16 %v1288, %v1284
    %v1481 = vpack.c.b16 %v1293, %v1289
    %v1482 = vpack.c.b16 %v1294, %v1290
    %v1483 = vpack.c.b16 %v1295, %v1291
    %v1484 = vpack.c.b16 %v1296, %v1292
    %v1485 = vpack.c.b16 %v1301, %v1297
    %v1486 = vpack.c.b16 %v1302, %v1298
    %v1487 = vpack.c.b16 %v1303, %v1299
    %v1488 = vpack.c.b16 %v1304, %v1300
    %v1489 = vpack.c.b16 %v1309, %v1305
    %v1490 = vpack.c.b16 %v1310, %v1306
    %v1491 = vpack.c.b16 %v1311, %v1307
    %v1492 = vpack.c.b16 %v1312, %v1308
    %v1493 = vpack.c.b16 %v1317, %v1313
    %v1494 = vpack.c.b16 %v1318, %v1314
    %v1495 = vpack.c.b16 %v1319, %v1315
    %v1496 = vpack.c.b16 %v1320, %v1316
    %v1497 = vpack.c.b16 %v1325, %v1321
    %v1498 = vpack.c.b16 %v1326, %v1322
    %v1499 = vpack.c.b16 %v1327, %v1323
    %v1500 = vpack.c.b16 %v1328, %v1324
    %v1501 = vpack.c.b16 %v1333, %v1329
    %v1502 = vpack.c.b16 %v1334, %v1330
    %v1503 = vpack.c.b16 %v1335, %v1331
    %v1504 = vpack.c.b16 %v1336, %v1332
    %v1505 = vpack.c.b16 %v1341, %v1337
    %v1506 = vpack.c.b16 %v1342, %v1338
    %v1507 = vpack.c.b16 %v1343, %v1339
    %v1508 = vpack.c.b16 %v1344, %v1340
    %v1509 = vpack.c.b16 %v1349, %v1345
    %v1510 = vpack.c.b16 %v1350, %v1346
    %v1511 = vpack.c.b16 %v1351, %v1347
    %v1512 = vpack.c.b16 %v1352, %v1348
    %v1513 = vpack.c.b16 %v1357, %v1353
    %v1514 = vpack.c.b16 %v1358, %v1354
    %v1515 = vpack.c.b16 %v1359, %v1355
    %v1516 = vpack.c.b16 %v1360, %v1356
    %v1517 = vpack.c.b16 %v1365, %v1361
    %v1518 = vpack.c.b16 %v1366, %v1362
    %v1519 = vpack.c.b16 %v1367, %v1363
    %v1520 = vpack.c.b16 %v1368, %v1364
    %v1521 = vpack.c.b16 %v1373, %v1369
    %v1522 = vpack.c.b16 %v1374, %v1370
    %v1523 = vpack.c.b16 %v1375, %v1371
    %v1524 = vpack.c.b16 %v1376, %v1372
    %v1525 = vpack.c.b16 %v1381, %v1377
    %v1526 = vpack.c.b16 %v1382, %v1378
    %v1527 = vpack.c.b16 %v1383, %v1379
    %v1528 = vpack.c.b16 %v1384, %v1380
    %v1529 = vpack.c.b16 %v1389, %v1385
    %v1530 = vpack.c.b16 %v1390, %v1386
    %v1531 = vpack.c.b16 %v1391, %v1387
    %v1532 = vpack.c.b16 %v1392, %v1388
    %v1533 = vpack.c.b16 %v1397, %v1393
    %v1534 = vpack.c.b16 %v1398, %v1394
    %v1535 = vpack.c.b16 %v1399, %v1395
    %v1536 = vpack.c.b16 %v1400, %v1396
    %v1537 = vpack.c.b16 %v1405, %v1401
    %v1538 = vpack.c.b16 %v1406, %v1402
    %v1539 = vpack.c.b16 %v1407, %v1403
    %v1540 = vpack.c.b16 %v1408, %v1404
    %v1541 = vpack.c.b16 %v1413, %v1409
    %v1542 = vpack.c.b16 %v1414, %v1410
    %v1543 = vpack.c.b16 %v1415, %v1411
    %v1544 = vpack.c.b16 %v1416, %v1412
    %1673 = vmatprep.subr.bf16.mxu0 %v1446
    %1674 = vmatpush1.bf16.msra.mxu0 %v1445
    %1675 = vmatprep.subr.bf16.mxu0 %v1442
    %1676 = vmatpush1.bf16.msra.mxu0 %v1441
    %1677 = vmatprep.subr.bf16.mxu0 %v1438
    %1678 = vmatpush1.bf16.msra.mxu0 %v1437
    %1679 = vmatprep.subr.bf16.mxu0 %v1434
    %1680 = vmatpush1.bf16.msra.mxu0 %v1433
    %1681 = vmatprep.subr.bf16.mxu0 %v1430
    %1682 = vmatpush1.bf16.msra.mxu0 %v1429
    %1683 = vmatprep.subr.bf16.mxu0 %v1426
    %1684 = vmatpush1.bf16.msra.mxu0 %v1425
    %1685 = vmatprep.subr.bf16.mxu0 %v1422
    %1686 = vmatpush1.bf16.msra.mxu0 %v1421
    %1687 = vmatprep.subr.bf16.mxu0 %v1418
    %1688 = vmatpush1.bf16.msra.mxu0 %v1417
    %1689 = vmatprep.subr.bf16.mxu0 %v1478
    %1690 = vmatpush2.bf16.msra.mxu0 %v1477
    %1691 = vmatprep.subr.bf16.mxu0 %v1474
    %1692 = vmatpush2.bf16.msra.mxu0 %v1473
    %1693 = vmatprep.subr.bf16.mxu0 %v1470
    %1694 = vmatpush2.bf16.msra.mxu0 %v1469
    %1695 = vmatprep.subr.bf16.mxu0 %v1466
    %1696 = vmatpush2.bf16.msra.mxu0 %v1465
    %1697 = vmatprep.subr.bf16.mxu0 %v1462
    %1698 = vmatpush2.bf16.msra.mxu0 %v1461
    %1699 = vmatprep.subr.bf16.mxu0 %v1458
    %1700 = vmatpush2.bf16.msra.mxu0 %v1457
    %1701 = vmatprep.subr.bf16.mxu0 %v1454
    %1702 = vmatpush2.bf16.msra.mxu0 %v1453
    %1703 = vmatprep.subr.bf16.mxu0 %v1450
    %1704 = vmatpush2.bf16.msra.mxu0 %v1449
    %1705 = vmatprep.mubr.bf16.mxu0 %v1030
    %1706 = vmatmul.mubr.bf16.gmra.mxu0 %v1029
    %v1707 = vpop.f32.mrf.mxu0
    %v1708 = vadd.f32 0.0, %v1707
    %v1709 = vpop.f32.mrf.mxu0
    %v1710 = vadd.f32 0.0, %v1709
    %v1711 = vpop.f32.mrf.mxu0
    %v1712 = vpop.f32.mrf.mxu0
    %1713 = vdwg.mxu0
    %1714 = vmatprep.subr.bf16.mxu0 %v1510
    %1715 = vmatpush1.bf16.msra.mxu0 %v1509
    %1716 = vmatprep.subr.bf16.mxu0 %v1506
    %1717 = vmatpush1.bf16.msra.mxu0 %v1505
    %1718 = vmatprep.subr.bf16.mxu0 %v1502
    %1719 = vmatpush1.bf16.msra.mxu0 %v1501
    %1720 = vmatprep.subr.bf16.mxu0 %v1498
    %1721 = vmatpush1.bf16.msra.mxu0 %v1497
    %1722 = vmatprep.subr.bf16.mxu0 %v1494
    %1723 = vmatpush1.bf16.msra.mxu0 %v1493
    %1724 = vmatprep.subr.bf16.mxu0 %v1490
    %1725 = vmatpush1.bf16.msra.mxu0 %v1489
    %1726 = vmatprep.subr.bf16.mxu0 %v1486
    %1727 = vmatpush1.bf16.msra.mxu0 %v1485
    %1728 = vmatprep.subr.bf16.mxu0 %v1482
    %1729 = vmatpush1.bf16.msra.mxu0 %v1481
    %1730 = vmatprep.subr.bf16.mxu0 %v1542
    %1731 = vmatpush2.bf16.msra.mxu0 %v1541
    %1732 = vmatprep.subr.bf16.mxu0 %v1538
    %1733 = vmatpush2.bf16.msra.mxu0 %v1537
    %1734 = vmatprep.subr.bf16.mxu0 %v1534
    %1735 = vmatpush2.bf16.msra.mxu0 %v1533
    %1736 = vmatprep.subr.bf16.mxu0 %v1530
    %1737 = vmatpush2.bf16.msra.mxu0 %v1529
    %1738 = vmatprep.subr.bf16.mxu0 %v1526
    %1739 = vmatpush2.bf16.msra.mxu0 %v1525
    %1740 = vmatprep.subr.bf16.mxu0 %v1522
    %1741 = vmatpush2.bf16.msra.mxu0 %v1521
    %1742 = vmatprep.subr.bf16.mxu0 %v1518
    %1743 = vmatpush2.bf16.msra.mxu0 %v1517
    %1744 = vmatprep.subr.bf16.mxu0 %v1514
    %1745 = vmatpush2.bf16.msra.mxu0 %v1513
    %1746 = vmatprep.mubr.bf16.mxu0 %v1032
    %1747 = vmatmul.mubr.bf16.gmra.mxu0 %v1031
    %v1748 = vpop.f32.mrf.mxu0
    %v1749 = vadd.f32 %v1708, %v1748
    %v1750 = vpop.f32.mrf.mxu0
    %v1751 = vadd.f32 %v1710, %v1750
    %v1752 = vpop.f32.mrf.mxu0
    %v1753 = vpop.f32.mrf.mxu0
    %1754 = vdwg.mxu0
    %1755 = vmatprep.subr.bf16.mxu0 %v1448
    %1756 = vmatpush1.bf16.msra.mxu0 %v1447
    %1757 = vmatprep.subr.bf16.mxu0 %v1444
    %1758 = vmatpush1.bf16.msra.mxu0 %v1443
    %1759 = vmatprep.subr.bf16.mxu0 %v1440
    %1760 = vmatpush1.bf16.msra.mxu0 %v1439
    %1761 = vmatprep.subr.bf16.mxu0 %v1436
    %1762 = vmatpush1.bf16.msra.mxu0 %v1435
    %1763 = vmatprep.subr.bf16.mxu0 %v1432
    %1764 = vmatpush1.bf16.msra.mxu0 %v1431
    %1765 = vmatprep.subr.bf16.mxu0 %v1428
    %1766 = vmatpush1.bf16.msra.mxu0 %v1427
    %1767 = vmatprep.subr.bf16.mxu0 %v1424
    %1768 = vmatpush1.bf16.msra.mxu0 %v1423
    %1769 = vmatprep.subr.bf16.mxu0 %v1420
    %1770 = vmatpush1.bf16.msra.mxu0 %v1419
    %1771 = vmatprep.subr.bf16.mxu0 %v1480
    %1772 = vmatpush2.bf16.msra.mxu0 %v1479
    %1773 = vmatprep.subr.bf16.mxu0 %v1476
    %1774 = vmatpush2.bf16.msra.mxu0 %v1475
    %1775 = vmatprep.subr.bf16.mxu0 %v1472
    %1776 = vmatpush2.bf16.msra.mxu0 %v1471
    %1777 = vmatprep.subr.bf16.mxu0 %v1468
    %1778 = vmatpush2.bf16.msra.mxu0 %v1467
    %1779 = vmatprep.subr.bf16.mxu0 %v1464
    %1780 = vmatpush2.bf16.msra.mxu0 %v1463
    %1781 = vmatprep.subr.bf16.mxu0 %v1460
    %1782 = vmatpush2.bf16.msra.mxu0 %v1459
    %1783 = vmatprep.subr.bf16.mxu0 %v1456
    %1784 = vmatpush2.bf16.msra.mxu0 %v1455
    %1785 = vmatprep.subr.bf16.mxu0 %v1452
    %1786 = vmatpush2.bf16.msra.mxu0 %v1451
    %1787 = vmatprep.mubr.bf16.mxu0 %v1030
    %1788 = vmatmul.mubr.bf16.gmra.mxu0 %v1029
    %v1789 = vpop.f32.mrf.mxu0
    %v1790 = vadd.f32 0.0, %v1789
    %v1791 = vpop.f32.mrf.mxu0
    %v1792 = vadd.f32 0.0, %v1791
    %v1793 = vpop.f32.mrf.mxu0
    %v1794 = vpop.f32.mrf.mxu0
    %1795 = vdwg.mxu0
    %1796 = vmatprep.subr.bf16.mxu0 %v1512
    %1797 = vmatpush1.bf16.msra.mxu0 %v1511
    %1798 = vmatprep.subr.bf16.mxu0 %v1508
    %1799 = vmatpush1.bf16.msra.mxu0 %v1507
    %1800 = vmatprep.subr.bf16.mxu0 %v1504
    %1801 = vmatpush1.bf16.msra.mxu0 %v1503
    %1802 = vmatprep.subr.bf16.mxu0 %v1500
    %1803 = vmatpush1.bf16.msra.mxu0 %v1499
    %1804 = vmatprep.subr.bf16.mxu0 %v1496
    %1805 = vmatpush1.bf16.msra.mxu0 %v1495
    %1806 = vmatprep.subr.bf16.mxu0 %v1492
    %1807 = vmatpush1.bf16.msra.mxu0 %v1491
    %1808 = vmatprep.subr.bf16.mxu0 %v1488
    %1809 = vmatpush1.bf16.msra.mxu0 %v1487
    %1810 = vmatprep.subr.bf16.mxu0 %v1484
    %1811 = vmatpush1.bf16.msra.mxu0 %v1483
    %1812 = vmatprep.subr.bf16.mxu0 %v1544
    %1813 = vmatpush2.bf16.msra.mxu0 %v1543
    %1814 = vmatprep.subr.bf16.mxu0 %v1540
    %1815 = vmatpush2.bf16.msra.mxu0 %v1539
    %1816 = vmatprep.subr.bf16.mxu0 %v1536
    %1817 = vmatpush2.bf16.msra.mxu0 %v1535
    %1818 = vmatprep.subr.bf16.mxu0 %v1532
    %1819 = vmatpush2.bf16.msra.mxu0 %v1531
    %1820 = vmatprep.subr.bf16.mxu0 %v1528
    %1821 = vmatpush2.bf16.msra.mxu0 %v1527
    %1822 = vmatprep.subr.bf16.mxu0 %v1524
    %1823 = vmatpush2.bf16.msra.mxu0 %v1523
    %1824 = vmatprep.subr.bf16.mxu0 %v1520
    %1825 = vmatpush2.bf16.msra.mxu0 %v1519
    %1826 = vmatprep.subr.bf16.mxu0 %v1516
    %1827 = vmatpush2.bf16.msra.mxu0 %v1515
    %1828 = vmatprep.mubr.bf16.mxu0 %v1032
    %1829 = vmatmul.mubr.bf16.gmra.mxu0 %v1031
    %v1830 = vpop.f32.mrf.mxu0
    %v1831 = vadd.f32 %v1790, %v1830
    %v1832 = vpop.f32.mrf.mxu0
    %v1833 = vadd.f32 %v1792, %v1832
    %v1834 = vpop.f32.mrf.mxu0
    %v1835 = vpop.f32.mrf.mxu0
    %1836 = vdwg.mxu0
    %v1837 = vlaneseq
    %v1838 = vshrl.u32 %v1837, 7
    %v1839 = vsub.s32 0, %v1838
    %v1840 = vrot.slane %v1749, %v1839
    %v1841 = vlaneseq
    %v1842 = vshrl.u32 %v1841, 7
    %v1843 = vsub.s32 0, %v1842
    %v1844 = vrot.slane %v1751, %v1843
    %v1845 = vlaneseq
    %v1846 = vshrl.u32 %v1845, 7
    %v1847 = vsub.s32 0, %v1846
    %v1848 = vrot.slane %v1831, %v1847
    %v1849 = vlaneseq
    %v1850 = vshrl.u32 %v1849, 7
    %v1851 = vsub.s32 0, %v1850
    %v1852 = vrot.slane %v1833, %v1851
    %v1853 = vlaneseq
    %v1854 = vshrl.u32 %v1853, 7
    %v1855 = vsub.s32 1, %v1854
    %v1856 = vrot.slane %v1749, %v1855
    %v1857 = vlaneseq
    %v1858 = vshrl.u32 %v1857, 7
    %v1859 = vsub.s32 1, %v1858
    %v1860 = vrot.slane %v1751, %v1859
    %v1861 = vlaneseq
    %v1862 = vshrl.u32 %v1861, 7
    %v1863 = vsub.s32 1, %v1862
    %v1864 = vrot.slane %v1831, %v1863
    %v1865 = vlaneseq
    %v1866 = vshrl.u32 %v1865, 7
    %v1867 = vsub.s32 1, %v1866
    %v1868 = vrot.slane %v1833, %v1867
    %v1869 = vld [vmem:[#allocation3] sm:$0xff]
    %v1870 = vld [vmem:[#allocation3 + $0x8] sm:$0xff]
    %v1871 = vld [vmem:[#allocation3 + $0x10] sm:$0xff]
    %v1872 = vld [vmem:[#allocation3 + $0x18] sm:$0xff]
    %v1877 = vunpack.c.l.b16 %v1869
    %v1878 = vunpack.c.h.b16 %v1869
    %v1879 = vunpack.c.l.b16 %v1870
    %v1880 = vunpack.c.h.b16 %v1870
    %v1881 = vunpack.c.l.b16 %v1871
    %v1882 = vunpack.c.h.b16 %v1871
    %v1883 = vunpack.c.l.b16 %v1872
    %v1884 = vunpack.c.h.b16 %v1872
    %v1885 = vpack.c.b16 %v1881, %v1877
    %v1886 = vpack.c.b16 %v1882, %v1878
    %v1887 = vpack.c.b16 %v1883, %v1879
    %v1888 = vpack.c.b16 %v1884, %v1880
    %1893 = vmatprep.subr.bf16.mxu0 0
    %1894 = vmatpush1.bf16.msra.mxu0 0
    %1895 = vmatprep.subr.bf16.mxu0 0
    %1896 = vmatpush1.bf16.msra.mxu0 0
    %1897 = vmatprep.subr.bf16.mxu0 0
    %1898 = vmatpush1.bf16.msra.mxu0 0
    %1899 = vmatprep.subr.bf16.mxu0 0
    %1900 = vmatpush1.bf16.msra.mxu0 0
    %1901 = vmatprep.subr.bf16.mxu0 0
    %1902 = vmatpush1.bf16.msra.mxu0 0
    %1903 = vmatprep.subr.bf16.mxu0 0
    %1904 = vmatpush1.bf16.msra.mxu0 0
    %1905 = vmatprep.subr.bf16.mxu0 0
    %1906 = vmatpush1.bf16.msra.mxu0 0
    %1907 = vmatprep.subr.bf16.mxu0 %v1886
    %1908 = vmatpush1.bf16.msra.mxu0 %v1885
    %1909 = vmatprep.subr.bf16.mxu0 0
    %1910 = vmatpush2.bf16.msra.mxu0 0
    %1911 = vmatprep.subr.bf16.mxu0 0
    %1912 = vmatpush2.bf16.msra.mxu0 0
    %1913 = vmatprep.subr.bf16.mxu0 0
    %1914 = vmatpush2.bf16.msra.mxu0 0
    %1915 = vmatprep.subr.bf16.mxu0 0
    %1916 = vmatpush2.bf16.msra.mxu0 0
    %1917 = vmatprep.subr.bf16.mxu0 0
    %1918 = vmatpush2.bf16.msra.mxu0 0
    %1919 = vmatprep.subr.bf16.mxu0 0
    %1920 = vmatpush2.bf16.msra.mxu0 0
    %1921 = vmatprep.subr.bf16.mxu0 0
    %1922 = vmatpush2.bf16.msra.mxu0 0
    %1923 = vmatprep.subr.bf16.mxu0 0
    %1924 = vmatpush2.bf16.msra.mxu0 0
    %1925 = vmatprep.mubr.bf16.mxu0 0
    %1926 = vmatmul.mubr.bf16.gmra.mxu0 %v101
    %v1927 = vpop.f32.mrf.mxu0
    %v1928 = vadd.f32 %v1840, %v1927
    %v1929 = vpop.f32.mrf.mxu0
    %v1930 = vadd.f32 %v1844, %v1929
    %v1931 = vpop.f32.mrf.mxu0
    %v1932 = vadd.f32 %v1840, %v1931
    %v1933 = vpop.f32.mrf.mxu0
    %v1934 = vadd.f32 %v1844, %v1933
    %1935 = vmatprep.mubr.bf16.mxu0 0
    %1936 = vmatmul.mubr.bf16.gmra.mxu0 %v104
    %v1937 = vpop.f32.mrf.mxu0
    %v1938 = vadd.f32 %v1856, %v1937
    %v1939 = vpop.f32.mrf.mxu0
    %v1940 = vadd.f32 %v1860, %v1939
    %v1941 = vpop.f32.mrf.mxu0
    %v1942 = vadd.f32 %v1856, %v1941
    %v1943 = vpop.f32.mrf.mxu0
    %v1944 = vadd.f32 %v1860, %v1943
    %1945 = vdwg.mxu0
    %1946 = vmatprep.subr.bf16.mxu0 0
    %1947 = vmatpush1.bf16.msra.mxu0 0
    %1948 = vmatprep.subr.bf16.mxu0 0
    %1949 = vmatpush1.bf16.msra.mxu0 0
    %1950 = vmatprep.subr.bf16.mxu0 0
    %1951 = vmatpush1.bf16.msra.mxu0 0
    %1952 = vmatprep.subr.bf16.mxu0 0
    %1953 = vmatpush1.bf16.msra.mxu0 0
    %1954 = vmatprep.subr.bf16.mxu0 0
    %1955 = vmatpush1.bf16.msra.mxu0 0
    %1956 = vmatprep.subr.bf16.mxu0 0
    %1957 = vmatpush1.bf16.msra.mxu0 0
    %1958 = vmatprep.subr.bf16.mxu0 0
    %1959 = vmatpush1.bf16.msra.mxu0 0
    %1960 = vmatprep.subr.bf16.mxu0 %v1888
    %1961 = vmatpush1.bf16.msra.mxu0 %v1887
    %1962 = vmatprep.subr.bf16.mxu0 0
    %1963 = vmatpush2.bf16.msra.mxu0 0
    %1964 = vmatprep.subr.bf16.mxu0 0
    %1965 = vmatpush2.bf16.msra.mxu0 0
    %1966 = vmatprep.subr.bf16.mxu0 0
    %1967 = vmatpush2.bf16.msra.mxu0 0
    %1968 = vmatprep.subr.bf16.mxu0 0
    %1969 = vmatpush2.bf16.msra.mxu0 0
    %1970 = vmatprep.subr.bf16.mxu0 0
    %1971 = vmatpush2.bf16.msra.mxu0 0
    %1972 = vmatprep.subr.bf16.mxu0 0
    %1973 = vmatpush2.bf16.msra.mxu0 0
    %1974 = vmatprep.subr.bf16.mxu0 0
    %1975 = vmatpush2.bf16.msra.mxu0 0
    %1976 = vmatprep.subr.bf16.mxu0 0
    %1977 = vmatpush2.bf16.msra.mxu0 0
    %1978 = vmatprep.mubr.bf16.mxu0 0
    %1979 = vmatmul.mubr.bf16.gmra.mxu0 %v101
    %v1980 = vpop.f32.mrf.mxu0
    %v1981 = vadd.f32 %v1848, %v1980
    %v1982 = vpop.f32.mrf.mxu0
    %v1983 = vadd.f32 %v1852, %v1982
    %v1984 = vpop.f32.mrf.mxu0
    %v1985 = vadd.f32 %v1848, %v1984
    %v1986 = vpop.f32.mrf.mxu0
    %v1987 = vadd.f32 %v1852, %v1986
    %1988 = vmatprep.mubr.bf16.mxu0 0
    %1989 = vmatmul.mubr.bf16.gmra.mxu0 %v104
    %v1990 = vpop.f32.mrf.mxu0
    %v1991 = vadd.f32 %v1864, %v1990
    %v1992 = vpop.f32.mrf.mxu0
    %v1993 = vadd.f32 %v1868, %v1992
    %v1994 = vpop.f32.mrf.mxu0
    %v1995 = vadd.f32 %v1864, %v1994
    %v1996 = vpop.f32.mrf.mxu0
    %v1997 = vadd.f32 %v1868, %v1996
    %1998 = vdwg.mxu0
    %v1999 = vlaneseq
    %v2000 = vshrl.u32 %v1999, 7
    %v2001 = vsub.s32 3, %v2000
    %v2002 = vrot.slane %v71, %v2001
    %v2003 = vlaneseq
    %v2004 = vshrl.u32 %v2003, 7
    %v2005 = vsub.s32 3, %v2004
    %v2006 = vrot.slane %v72, %v2005
    %v2007 = vlaneseq
    %v2008 = vshrl.u32 %v2007, 7
    %v2009 = vsub.s32 3, %v2008
    %v2010 = vrot.slane %v73, %v2009
    %v2011 = vlaneseq
    %v2012 = vshrl.u32 %v2011, 7
    %v2013 = vsub.s32 3, %v2012
    %v2014 = vrot.slane %v74, %v2013
    %v2015 = vadd.f32 %v1928, %v2002
    %v2016 = vadd.f32 %v1930, %v2006
    %v2017 = vadd.f32 %v1981, %v2010
    %v2018 = vadd.f32 %v1983, %v2014
    %v2019 = vadd.f32 %v1932, %v2002
    %v2020 = vadd.f32 %v1934, %v2006
    %v2021 = vadd.f32 %v1985, %v2010
    %v2022 = vadd.f32 %v1987, %v2014
    %v2023 = vadd.f32 %v1938, %v2002
    %v2024 = vadd.f32 %v1940, %v2006
    %v2025 = vadd.f32 %v1991, %v2010
    %v2026 = vadd.f32 %v1993, %v2014
    %v2027 = vadd.f32 %v1942, %v2002
    %v2028 = vadd.f32 %v1944, %v2006
    %v2029 = vadd.f32 %v1995, %v2010
    %v2030 = vadd.f32 %v1997, %v2014
    %v2031 = vmax.f32 %v2015, 0.0
    %v2032 = vmax.f32 %v2016, 0.0
    %v2033 = vmax.f32 %v2017, 0.0
    %v2034 = vmax.f32 %v2018, 0.0
    %v2035 = vmax.f32 %v2019, 0.0
    %v2036 = vmax.f32 %v2020, 0.0
    %v2037 = vmax.f32 %v2021, 0.0
    %v2038 = vmax.f32 %v2022, 0.0
    %v2039 = vmax.f32 %v2023, 0.0
    %v2040 = vmax.f32 %v2024, 0.0
    %v2041 = vmax.f32 %v2025, 0.0
    %v2042 = vmax.f32 %v2026, 0.0
    %v2043 = vmax.f32 %v2027, 0.0
    %v2044 = vmax.f32 %v2028, 0.0
    %v2045 = vmax.f32 %v2029, 0.0
    %v2046 = vmax.f32 %v2030, 0.0
    %v2047 = vld [vmem:[#allocation3 + $0x420] sm:$0xff]
    %v2048 = vld [vmem:[#allocation3 + $0x428] sm:$0xff]
    %v2049 = vld [vmem:[#allocation3 + $0x430] sm:$0xff]
    %v2050 = vld [vmem:[#allocation3 + $0x438] sm:$0xff]
    %v2051 = vld [vmem:[#allocation3 + $0x440] sm:$0xff]
    %v2052 = vld [vmem:[#allocation3 + $0x448] sm:$0xff]
    %v2053 = vld [vmem:[#allocation3 + $0x450] sm:$0xff]
    %v2054 = vld [vmem:[#allocation3 + $0x458] sm:$0xff]
    %v2055 = vld [vmem:[#allocation3 + $0x460] sm:$0xff]
    %v2056 = vld [vmem:[#allocation3 + $0x468] sm:$0xff]
    %v2057 = vld [vmem:[#allocation3 + $0x470] sm:$0xff]
    %v2058 = vld [vmem:[#allocation3 + $0x478] sm:$0xff]
    %v2059 = vld [vmem:[#allocation3 + $0x480] sm:$0xff]
    %v2060 = vld [vmem:[#allocation3 + $0x488] sm:$0xff]
    %v2061 = vld [vmem:[#allocation3 + $0x490] sm:$0xff]
    %v2062 = vld [vmem:[#allocation3 + $0x498] sm:$0xff]
    %v2063 = vld [vmem:[#allocation3 + $0x4a0] sm:$0xff]
    %v2064 = vld [vmem:[#allocation3 + $0x4a8] sm:$0xff]
    %v2065 = vld [vmem:[#allocation3 + $0x4b0] sm:$0xff]
    %v2066 = vld [vmem:[#allocation3 + $0x4b8] sm:$0xff]
    %v2067 = vld [vmem:[#allocation3 + $0x4c0] sm:$0xff]
    %v2068 = vld [vmem:[#allocation3 + $0x4c8] sm:$0xff]
    %v2069 = vld [vmem:[#allocation3 + $0x4d0] sm:$0xff]
    %v2070 = vld [vmem:[#allocation3 + $0x4d8] sm:$0xff]
    %v2071 = vld [vmem:[#allocation3 + $0x4e0] sm:$0xff]
    %v2072 = vld [vmem:[#allocation3 + $0x4e8] sm:$0xff]
    %v2073 = vld [vmem:[#allocation3 + $0x4f0] sm:$0xff]
    %v2074 = vld [vmem:[#allocation3 + $0x4f8] sm:$0xff]
    %v2075 = vld [vmem:[#allocation3 + $0x500] sm:$0xff]
    %v2076 = vld [vmem:[#allocation3 + $0x508] sm:$0xff]
    %v2077 = vld [vmem:[#allocation3 + $0x510] sm:$0xff]
    %v2078 = vld [vmem:[#allocation3 + $0x518] sm:$0xff]
    %v2079 = vld [vmem:[#allocation3 + $0x520] sm:$0xff]
    %v2080 = vld [vmem:[#allocation3 + $0x528] sm:$0xff]
    %v2081 = vld [vmem:[#allocation3 + $0x530] sm:$0xff]
    %v2082 = vld [vmem:[#allocation3 + $0x538] sm:$0xff]
    %v2083 = vld [vmem:[#allocation3 + $0x540] sm:$0xff]
    %v2084 = vld [vmem:[#allocation3 + $0x548] sm:$0xff]
    %v2085 = vld [vmem:[#allocation3 + $0x550] sm:$0xff]
    %v2086 = vld [vmem:[#allocation3 + $0x558] sm:$0xff]
    %v2087 = vld [vmem:[#allocation3 + $0x560] sm:$0xff]
    %v2088 = vld [vmem:[#allocation3 + $0x568] sm:$0xff]
    %v2089 = vld [vmem:[#allocation3 + $0x570] sm:$0xff]
    %v2090 = vld [vmem:[#allocation3 + $0x578] sm:$0xff]
    %v2091 = vld [vmem:[#allocation3 + $0x580] sm:$0xff]
    %v2092 = vld [vmem:[#allocation3 + $0x588] sm:$0xff]
    %v2093 = vld [vmem:[#allocation3 + $0x590] sm:$0xff]
    %v2094 = vld [vmem:[#allocation3 + $0x598] sm:$0xff]
    %v2095 = vld [vmem:[#allocation3 + $0x5a0] sm:$0xff]
    %v2096 = vld [vmem:[#allocation3 + $0x5a8] sm:$0xff]
    %v2097 = vld [vmem:[#allocation3 + $0x5b0] sm:$0xff]
    %v2098 = vld [vmem:[#allocation3 + $0x5b8] sm:$0xff]
    %v2099 = vld [vmem:[#allocation3 + $0x5c0] sm:$0xff]
    %v2100 = vld [vmem:[#allocation3 + $0x5c8] sm:$0xff]
    %v2101 = vld [vmem:[#allocation3 + $0x5d0] sm:$0xff]
    %v2102 = vld [vmem:[#allocation3 + $0x5d8] sm:$0xff]
    %v2103 = vld [vmem:[#allocation3 + $0x5e0] sm:$0xff]
    %v2104 = vld [vmem:[#allocation3 + $0x5e8] sm:$0xff]
    %v2105 = vld [vmem:[#allocation3 + $0x5f0] sm:$0xff]
    %v2106 = vld [vmem:[#allocation3 + $0x5f8] sm:$0xff]
    %v2107 = vld [vmem:[#allocation3 + $0x600] sm:$0xff]
    %v2108 = vld [vmem:[#allocation3 + $0x608] sm:$0xff]
    %v2109 = vld [vmem:[#allocation3 + $0x610] sm:$0xff]
    %v2110 = vld [vmem:[#allocation3 + $0x618] sm:$0xff]
    %v2111 = vld [vmem:[#allocation3 + $0x620] sm:$0xff]
    %v2112 = vld [vmem:[#allocation3 + $0x628] sm:$0xff]
    %v2113 = vld [vmem:[#allocation3 + $0x630] sm:$0xff]
    %v2114 = vld [vmem:[#allocation3 + $0x638] sm:$0xff]
    %v2115 = vld [vmem:[#allocation3 + $0x640] sm:$0xff]
    %v2116 = vld [vmem:[#allocation3 + $0x648] sm:$0xff]
    %v2117 = vld [vmem:[#allocation3 + $0x650] sm:$0xff]
    %v2118 = vld [vmem:[#allocation3 + $0x658] sm:$0xff]
    %v2119 = vld [vmem:[#allocation3 + $0x660] sm:$0xff]
    %v2120 = vld [vmem:[#allocation3 + $0x668] sm:$0xff]
    %v2121 = vld [vmem:[#allocation3 + $0x670] sm:$0xff]
    %v2122 = vld [vmem:[#allocation3 + $0x678] sm:$0xff]
    %v2123 = vld [vmem:[#allocation3 + $0x680] sm:$0xff]
    %v2124 = vld [vmem:[#allocation3 + $0x688] sm:$0xff]
    %v2125 = vld [vmem:[#allocation3 + $0x690] sm:$0xff]
    %v2126 = vld [vmem:[#allocation3 + $0x698] sm:$0xff]
    %v2127 = vld [vmem:[#allocation3 + $0x6a0] sm:$0xff]
    %v2128 = vld [vmem:[#allocation3 + $0x6a8] sm:$0xff]
    %v2129 = vld [vmem:[#allocation3 + $0x6b0] sm:$0xff]
    %v2130 = vld [vmem:[#allocation3 + $0x6b8] sm:$0xff]
    %v2131 = vld [vmem:[#allocation3 + $0x6c0] sm:$0xff]
    %v2132 = vld [vmem:[#allocation3 + $0x6c8] sm:$0xff]
    %v2133 = vld [vmem:[#allocation3 + $0x6d0] sm:$0xff]
    %v2134 = vld [vmem:[#allocation3 + $0x6d8] sm:$0xff]
    %v2135 = vld [vmem:[#allocation3 + $0x6e0] sm:$0xff]
    %v2136 = vld [vmem:[#allocation3 + $0x6e8] sm:$0xff]
    %v2137 = vld [vmem:[#allocation3 + $0x6f0] sm:$0xff]
    %v2138 = vld [vmem:[#allocation3 + $0x6f8] sm:$0xff]
    %v2139 = vld [vmem:[#allocation3 + $0x700] sm:$0xff]
    %v2140 = vld [vmem:[#allocation3 + $0x708] sm:$0xff]
    %v2141 = vld [vmem:[#allocation3 + $0x710] sm:$0xff]
    %v2142 = vld [vmem:[#allocation3 + $0x718] sm:$0xff]
    %v2143 = vld [vmem:[#allocation3 + $0x720] sm:$0xff]
    %v2144 = vld [vmem:[#allocation3 + $0x728] sm:$0xff]
    %v2145 = vld [vmem:[#allocation3 + $0x730] sm:$0xff]
    %v2146 = vld [vmem:[#allocation3 + $0x738] sm:$0xff]
    %v2147 = vld [vmem:[#allocation3 + $0x740] sm:$0xff]
    %v2148 = vld [vmem:[#allocation3 + $0x748] sm:$0xff]
    %v2149 = vld [vmem:[#allocation3 + $0x750] sm:$0xff]
    %v2150 = vld [vmem:[#allocation3 + $0x758] sm:$0xff]
    %v2151 = vld [vmem:[#allocation3 + $0x760] sm:$0xff]
    %v2152 = vld [vmem:[#allocation3 + $0x768] sm:$0xff]
    %v2153 = vld [vmem:[#allocation3 + $0x770] sm:$0xff]
    %v2154 = vld [vmem:[#allocation3 + $0x778] sm:$0xff]
    %v2155 = vld [vmem:[#allocation3 + $0x780] sm:$0xff]
    %v2156 = vld [vmem:[#allocation3 + $0x788] sm:$0xff]
    %v2157 = vld [vmem:[#allocation3 + $0x790] sm:$0xff]
    %v2158 = vld [vmem:[#allocation3 + $0x798] sm:$0xff]
    %v2159 = vld [vmem:[#allocation3 + $0x7a0] sm:$0xff]
    %v2160 = vld [vmem:[#allocation3 + $0x7a8] sm:$0xff]
    %v2161 = vld [vmem:[#allocation3 + $0x7b0] sm:$0xff]
    %v2162 = vld [vmem:[#allocation3 + $0x7b8] sm:$0xff]
    %v2163 = vld [vmem:[#allocation3 + $0x7c0] sm:$0xff]
    %v2164 = vld [vmem:[#allocation3 + $0x7c8] sm:$0xff]
    %v2165 = vld [vmem:[#allocation3 + $0x7d0] sm:$0xff]
    %v2166 = vld [vmem:[#allocation3 + $0x7d8] sm:$0xff]
    %v2167 = vld [vmem:[#allocation3 + $0x7e0] sm:$0xff]
    %v2168 = vld [vmem:[#allocation3 + $0x7e8] sm:$0xff]
    %v2169 = vld [vmem:[#allocation3 + $0x7f0] sm:$0xff]
    %v2170 = vld [vmem:[#allocation3 + $0x7f8] sm:$0xff]
    %v2171 = vld [vmem:[#allocation3 + $0x800] sm:$0xff]
    %v2172 = vld [vmem:[#allocation3 + $0x808] sm:$0xff]
    %v2173 = vld [vmem:[#allocation3 + $0x810] sm:$0xff]
    %v2174 = vld [vmem:[#allocation3 + $0x818] sm:$0xff]
    %v2175 = vpack.c.bf16 %v2035, %v2031
    %v2176 = vpack.c.bf16 %v2036, %v2032
    %v2177 = vpack.c.bf16 %v2037, %v2033
    %v2178 = vpack.c.bf16 %v2038, %v2034
    %v2179 = vpack.c.bf16 %v2043, %v2039
    %v2180 = vpack.c.bf16 %v2044, %v2040
    %v2181 = vpack.c.bf16 %v2045, %v2041
    %v2182 = vpack.c.bf16 %v2046, %v2042
    %v2183 = vlaneseq
    %v2184 = vshrl.u32 %v2183, 7
    %v2185 = vsub.s32 4, %v2184
    %v2186 = vrot.slane %v71, %v2185
    %v2187 = vlaneseq
    %v2188 = vshrl.u32 %v2187, 7
    %v2189 = vsub.s32 4, %v2188
    %v2190 = vrot.slane %v72, %v2189
    %v2191 = vlaneseq
    %v2192 = vshrl.u32 %v2191, 7
    %v2193 = vsub.s32 4, %v2192
    %v2194 = vrot.slane %v73, %v2193
    %v2195 = vlaneseq
    %v2196 = vshrl.u32 %v2195, 7
    %v2197 = vsub.s32 4, %v2196
    %v2198 = vrot.slane %v74, %v2197
    %v2327 = vunpack.c.l.b16 %v2047
    %v2328 = vunpack.c.h.b16 %v2047
    %v2329 = vunpack.c.l.b16 %v2048
    %v2330 = vunpack.c.h.b16 %v2048
    %v2331 = vunpack.c.l.b16 %v2049
    %v2332 = vunpack.c.h.b16 %v2049
    %v2333 = vunpack.c.l.b16 %v2050
    %v2334 = vunpack.c.h.b16 %v2050
    %v2335 = vunpack.c.l.b16 %v2051
    %v2336 = vunpack.c.h.b16 %v2051
    %v2337 = vunpack.c.l.b16 %v2052
    %v2338 = vunpack.c.h.b16 %v2052
    %v2339 = vunpack.c.l.b16 %v2053
    %v2340 = vunpack.c.h.b16 %v2053
    %v2341 = vunpack.c.l.b16 %v2054
    %v2342 = vunpack.c.h.b16 %v2054
    %v2343 = vunpack.c.l.b16 %v2055
    %v2344 = vunpack.c.h.b16 %v2055
    %v2345 = vunpack.c.l.b16 %v2056
    %v2346 = vunpack.c.h.b16 %v2056
    %v2347 = vunpack.c.l.b16 %v2057
    %v2348 = vunpack.c.h.b16 %v2057
    %v2349 = vunpack.c.l.b16 %v2058
    %v2350 = vunpack.c.h.b16 %v2058
    %v2351 = vunpack.c.l.b16 %v2059
    %v2352 = vunpack.c.h.b16 %v2059
    %v2353 = vunpack.c.l.b16 %v2060
    %v2354 = vunpack.c.h.b16 %v2060
    %v2355 = vunpack.c.l.b16 %v2061
    %v2356 = vunpack.c.h.b16 %v2061
    %v2357 = vunpack.c.l.b16 %v2062
    %v2358 = vunpack.c.h.b16 %v2062
    %v2359 = vunpack.c.l.b16 %v2063
    %v2360 = vunpack.c.h.b16 %v2063
    %v2361 = vunpack.c.l.b16 %v2064
    %v2362 = vunpack.c.h.b16 %v2064
    %v2363 = vunpack.c.l.b16 %v2065
    %v2364 = vunpack.c.h.b16 %v2065
    %v2365 = vunpack.c.l.b16 %v2066
    %v2366 = vunpack.c.h.b16 %v2066
    %v2367 = vunpack.c.l.b16 %v2067
    %v2368 = vunpack.c.h.b16 %v2067
    %v2369 = vunpack.c.l.b16 %v2068
    %v2370 = vunpack.c.h.b16 %v2068
    %v2371 = vunpack.c.l.b16 %v2069
    %v2372 = vunpack.c.h.b16 %v2069
    %v2373 = vunpack.c.l.b16 %v2070
    %v2374 = vunpack.c.h.b16 %v2070
    %v2375 = vunpack.c.l.b16 %v2071
    %v2376 = vunpack.c.h.b16 %v2071
    %v2377 = vunpack.c.l.b16 %v2072
    %v2378 = vunpack.c.h.b16 %v2072
    %v2379 = vunpack.c.l.b16 %v2073
    %v2380 = vunpack.c.h.b16 %v2073
    %v2381 = vunpack.c.l.b16 %v2074
    %v2382 = vunpack.c.h.b16 %v2074
    %v2383 = vunpack.c.l.b16 %v2075
    %v2384 = vunpack.c.h.b16 %v2075
    %v2385 = vunpack.c.l.b16 %v2076
    %v2386 = vunpack.c.h.b16 %v2076
    %v2387 = vunpack.c.l.b16 %v2077
    %v2388 = vunpack.c.h.b16 %v2077
    %v2389 = vunpack.c.l.b16 %v2078
    %v2390 = vunpack.c.h.b16 %v2078
    %v2391 = vunpack.c.l.b16 %v2079
    %v2392 = vunpack.c.h.b16 %v2079
    %v2393 = vunpack.c.l.b16 %v2080
    %v2394 = vunpack.c.h.b16 %v2080
    %v2395 = vunpack.c.l.b16 %v2081
    %v2396 = vunpack.c.h.b16 %v2081
    %v2397 = vunpack.c.l.b16 %v2082
    %v2398 = vunpack.c.h.b16 %v2082
    %v2399 = vunpack.c.l.b16 %v2083
    %v2400 = vunpack.c.h.b16 %v2083
    %v2401 = vunpack.c.l.b16 %v2084
    %v2402 = vunpack.c.h.b16 %v2084
    %v2403 = vunpack.c.l.b16 %v2085
    %v2404 = vunpack.c.h.b16 %v2085
    %v2405 = vunpack.c.l.b16 %v2086
    %v2406 = vunpack.c.h.b16 %v2086
    %v2407 = vunpack.c.l.b16 %v2087
    %v2408 = vunpack.c.h.b16 %v2087
    %v2409 = vunpack.c.l.b16 %v2088
    %v2410 = vunpack.c.h.b16 %v2088
    %v2411 = vunpack.c.l.b16 %v2089
    %v2412 = vunpack.c.h.b16 %v2089
    %v2413 = vunpack.c.l.b16 %v2090
    %v2414 = vunpack.c.h.b16 %v2090
    %v2415 = vunpack.c.l.b16 %v2091
    %v2416 = vunpack.c.h.b16 %v2091
    %v2417 = vunpack.c.l.b16 %v2092
    %v2418 = vunpack.c.h.b16 %v2092
    %v2419 = vunpack.c.l.b16 %v2093
    %v2420 = vunpack.c.h.b16 %v2093
    %v2421 = vunpack.c.l.b16 %v2094
    %v2422 = vunpack.c.h.b16 %v2094
    %v2423 = vunpack.c.l.b16 %v2095
    %v2424 = vunpack.c.h.b16 %v2095
    %v2425 = vunpack.c.l.b16 %v2096
    %v2426 = vunpack.c.h.b16 %v2096
    %v2427 = vunpack.c.l.b16 %v2097
    %v2428 = vunpack.c.h.b16 %v2097
    %v2429 = vunpack.c.l.b16 %v2098
    %v2430 = vunpack.c.h.b16 %v2098
    %v2431 = vunpack.c.l.b16 %v2099
    %v2432 = vunpack.c.h.b16 %v2099
    %v2433 = vunpack.c.l.b16 %v2100
    %v2434 = vunpack.c.h.b16 %v2100
    %v2435 = vunpack.c.l.b16 %v2101
    %v2436 = vunpack.c.h.b16 %v2101
    %v2437 = vunpack.c.l.b16 %v2102
    %v2438 = vunpack.c.h.b16 %v2102
    %v2439 = vunpack.c.l.b16 %v2103
    %v2440 = vunpack.c.h.b16 %v2103
    %v2441 = vunpack.c.l.b16 %v2104
    %v2442 = vunpack.c.h.b16 %v2104
    %v2443 = vunpack.c.l.b16 %v2105
    %v2444 = vunpack.c.h.b16 %v2105
    %v2445 = vunpack.c.l.b16 %v2106
    %v2446 = vunpack.c.h.b16 %v2106
    %v2447 = vunpack.c.l.b16 %v2107
    %v2448 = vunpack.c.h.b16 %v2107
    %v2449 = vunpack.c.l.b16 %v2108
    %v2450 = vunpack.c.h.b16 %v2108
    %v2451 = vunpack.c.l.b16 %v2109
    %v2452 = vunpack.c.h.b16 %v2109
    %v2453 = vunpack.c.l.b16 %v2110
    %v2454 = vunpack.c.h.b16 %v2110
    %v2455 = vunpack.c.l.b16 %v2111
    %v2456 = vunpack.c.h.b16 %v2111
    %v2457 = vunpack.c.l.b16 %v2112
    %v2458 = vunpack.c.h.b16 %v2112
    %v2459 = vunpack.c.l.b16 %v2113
    %v2460 = vunpack.c.h.b16 %v2113
    %v2461 = vunpack.c.l.b16 %v2114
    %v2462 = vunpack.c.h.b16 %v2114
    %v2463 = vunpack.c.l.b16 %v2115
    %v2464 = vunpack.c.h.b16 %v2115
    %v2465 = vunpack.c.l.b16 %v2116
    %v2466 = vunpack.c.h.b16 %v2116
    %v2467 = vunpack.c.l.b16 %v2117
    %v2468 = vunpack.c.h.b16 %v2117
    %v2469 = vunpack.c.l.b16 %v2118
    %v2470 = vunpack.c.h.b16 %v2118
    %v2471 = vunpack.c.l.b16 %v2119
    %v2472 = vunpack.c.h.b16 %v2119
    %v2473 = vunpack.c.l.b16 %v2120
    %v2474 = vunpack.c.h.b16 %v2120
    %v2475 = vunpack.c.l.b16 %v2121
    %v2476 = vunpack.c.h.b16 %v2121
    %v2477 = vunpack.c.l.b16 %v2122
    %v2478 = vunpack.c.h.b16 %v2122
    %v2479 = vunpack.c.l.b16 %v2123
    %v2480 = vunpack.c.h.b16 %v2123
    %v2481 = vunpack.c.l.b16 %v2124
    %v2482 = vunpack.c.h.b16 %v2124
    %v2483 = vunpack.c.l.b16 %v2125
    %v2484 = vunpack.c.h.b16 %v2125
    %v2485 = vunpack.c.l.b16 %v2126
    %v2486 = vunpack.c.h.b16 %v2126
    %v2487 = vunpack.c.l.b16 %v2127
    %v2488 = vunpack.c.h.b16 %v2127
    %v2489 = vunpack.c.l.b16 %v2128
    %v2490 = vunpack.c.h.b16 %v2128
    %v2491 = vunpack.c.l.b16 %v2129
    %v2492 = vunpack.c.h.b16 %v2129
    %v2493 = vunpack.c.l.b16 %v2130
    %v2494 = vunpack.c.h.b16 %v2130
    %v2495 = vunpack.c.l.b16 %v2131
    %v2496 = vunpack.c.h.b16 %v2131
    %v2497 = vunpack.c.l.b16 %v2132
    %v2498 = vunpack.c.h.b16 %v2132
    %v2499 = vunpack.c.l.b16 %v2133
    %v2500 = vunpack.c.h.b16 %v2133
    %v2501 = vunpack.c.l.b16 %v2134
    %v2502 = vunpack.c.h.b16 %v2134
    %v2503 = vunpack.c.l.b16 %v2135
    %v2504 = vunpack.c.h.b16 %v2135
    %v2505 = vunpack.c.l.b16 %v2136
    %v2506 = vunpack.c.h.b16 %v2136
    %v2507 = vunpack.c.l.b16 %v2137
    %v2508 = vunpack.c.h.b16 %v2137
    %v2509 = vunpack.c.l.b16 %v2138
    %v2510 = vunpack.c.h.b16 %v2138
    %v2511 = vunpack.c.l.b16 %v2139
    %v2512 = vunpack.c.h.b16 %v2139
    %v2513 = vunpack.c.l.b16 %v2140
    %v2514 = vunpack.c.h.b16 %v2140
    %v2515 = vunpack.c.l.b16 %v2141
    %v2516 = vunpack.c.h.b16 %v2141
    %v2517 = vunpack.c.l.b16 %v2142
    %v2518 = vunpack.c.h.b16 %v2142
    %v2519 = vunpack.c.l.b16 %v2143
    %v2520 = vunpack.c.h.b16 %v2143
    %v2521 = vunpack.c.l.b16 %v2144
    %v2522 = vunpack.c.h.b16 %v2144
    %v2523 = vunpack.c.l.b16 %v2145
    %v2524 = vunpack.c.h.b16 %v2145
    %v2525 = vunpack.c.l.b16 %v2146
    %v2526 = vunpack.c.h.b16 %v2146
    %v2527 = vunpack.c.l.b16 %v2147
    %v2528 = vunpack.c.h.b16 %v2147
    %v2529 = vunpack.c.l.b16 %v2148
    %v2530 = vunpack.c.h.b16 %v2148
    %v2531 = vunpack.c.l.b16 %v2149
    %v2532 = vunpack.c.h.b16 %v2149
    %v2533 = vunpack.c.l.b16 %v2150
    %v2534 = vunpack.c.h.b16 %v2150
    %v2535 = vunpack.c.l.b16 %v2151
    %v2536 = vunpack.c.h.b16 %v2151
    %v2537 = vunpack.c.l.b16 %v2152
    %v2538 = vunpack.c.h.b16 %v2152
    %v2539 = vunpack.c.l.b16 %v2153
    %v2540 = vunpack.c.h.b16 %v2153
    %v2541 = vunpack.c.l.b16 %v2154
    %v2542 = vunpack.c.h.b16 %v2154
    %v2543 = vunpack.c.l.b16 %v2155
    %v2544 = vunpack.c.h.b16 %v2155
    %v2545 = vunpack.c.l.b16 %v2156
    %v2546 = vunpack.c.h.b16 %v2156
    %v2547 = vunpack.c.l.b16 %v2157
    %v2548 = vunpack.c.h.b16 %v2157
    %v2549 = vunpack.c.l.b16 %v2158
    %v2550 = vunpack.c.h.b16 %v2158
    %v2551 = vunpack.c.l.b16 %v2159
    %v2552 = vunpack.c.h.b16 %v2159
    %v2553 = vunpack.c.l.b16 %v2160
    %v2554 = vunpack.c.h.b16 %v2160
    %v2555 = vunpack.c.l.b16 %v2161
    %v2556 = vunpack.c.h.b16 %v2161
    %v2557 = vunpack.c.l.b16 %v2162
    %v2558 = vunpack.c.h.b16 %v2162
    %v2559 = vunpack.c.l.b16 %v2163
    %v2560 = vunpack.c.h.b16 %v2163
    %v2561 = vunpack.c.l.b16 %v2164
    %v2562 = vunpack.c.h.b16 %v2164
    %v2563 = vunpack.c.l.b16 %v2165
    %v2564 = vunpack.c.h.b16 %v2165
    %v2565 = vunpack.c.l.b16 %v2166
    %v2566 = vunpack.c.h.b16 %v2166
    %v2567 = vunpack.c.l.b16 %v2167
    %v2568 = vunpack.c.h.b16 %v2167
    %v2569 = vunpack.c.l.b16 %v2168
    %v2570 = vunpack.c.h.b16 %v2168
    %v2571 = vunpack.c.l.b16 %v2169
    %v2572 = vunpack.c.h.b16 %v2169
    %v2573 = vunpack.c.l.b16 %v2170
    %v2574 = vunpack.c.h.b16 %v2170
    %v2575 = vunpack.c.l.b16 %v2171
    %v2576 = vunpack.c.h.b16 %v2171
    %v2577 = vunpack.c.l.b16 %v2172
    %v2578 = vunpack.c.h.b16 %v2172
    %v2579 = vunpack.c.l.b16 %v2173
    %v2580 = vunpack.c.h.b16 %v2173
    %v2581 = vunpack.c.l.b16 %v2174
    %v2582 = vunpack.c.h.b16 %v2174
    %v2583 = vpack.c.b16 %v2331, %v2327
    %v2584 = vpack.c.b16 %v2332, %v2328
    %v2585 = vpack.c.b16 %v2333, %v2329
    %v2586 = vpack.c.b16 %v2334, %v2330
    %v2587 = vpack.c.b16 %v2339, %v2335
    %v2588 = vpack.c.b16 %v2340, %v2336
    %v2589 = vpack.c.b16 %v2341, %v2337
    %v2590 = vpack.c.b16 %v2342, %v2338
    %v2591 = vpack.c.b16 %v2347, %v2343
    %v2592 = vpack.c.b16 %v2348, %v2344
    %v2593 = vpack.c.b16 %v2349, %v2345
    %v2594 = vpack.c.b16 %v2350, %v2346
    %v2595 = vpack.c.b16 %v2355, %v2351
    %v2596 = vpack.c.b16 %v2356, %v2352
    %v2597 = vpack.c.b16 %v2357, %v2353
    %v2598 = vpack.c.b16 %v2358, %v2354
    %v2599 = vpack.c.b16 %v2363, %v2359
    %v2600 = vpack.c.b16 %v2364, %v2360
    %v2601 = vpack.c.b16 %v2365, %v2361
    %v2602 = vpack.c.b16 %v2366, %v2362
    %v2603 = vpack.c.b16 %v2371, %v2367
    %v2604 = vpack.c.b16 %v2372, %v2368
    %v2605 = vpack.c.b16 %v2373, %v2369
    %v2606 = vpack.c.b16 %v2374, %v2370
    %v2607 = vpack.c.b16 %v2379, %v2375
    %v2608 = vpack.c.b16 %v2380, %v2376
    %v2609 = vpack.c.b16 %v2381, %v2377
    %v2610 = vpack.c.b16 %v2382, %v2378
    %v2611 = vpack.c.b16 %v2387, %v2383
    %v2612 = vpack.c.b16 %v2388, %v2384
    %v2613 = vpack.c.b16 %v2389, %v2385
    %v2614 = vpack.c.b16 %v2390, %v2386
    %v2615 = vpack.c.b16 %v2395, %v2391
    %v2616 = vpack.c.b16 %v2396, %v2392
    %v2617 = vpack.c.b16 %v2397, %v2393
    %v2618 = vpack.c.b16 %v2398, %v2394
    %v2619 = vpack.c.b16 %v2403, %v2399
    %v2620 = vpack.c.b16 %v2404, %v2400
    %v2621 = vpack.c.b16 %v2405, %v2401
    %v2622 = vpack.c.b16 %v2406, %v2402
    %v2623 = vpack.c.b16 %v2411, %v2407
    %v2624 = vpack.c.b16 %v2412, %v2408
    %v2625 = vpack.c.b16 %v2413, %v2409
    %v2626 = vpack.c.b16 %v2414, %v2410
    %v2627 = vpack.c.b16 %v2419, %v2415
    %v2628 = vpack.c.b16 %v2420, %v2416
    %v2629 = vpack.c.b16 %v2421, %v2417
    %v2630 = vpack.c.b16 %v2422, %v2418
    %v2631 = vpack.c.b16 %v2427, %v2423
    %v2632 = vpack.c.b16 %v2428, %v2424
    %v2633 = vpack.c.b16 %v2429, %v2425
    %v2634 = vpack.c.b16 %v2430, %v2426
    %v2635 = vpack.c.b16 %v2435, %v2431
    %v2636 = vpack.c.b16 %v2436, %v2432
    %v2637 = vpack.c.b16 %v2437, %v2433
    %v2638 = vpack.c.b16 %v2438, %v2434
    %v2639 = vpack.c.b16 %v2443, %v2439
    %v2640 = vpack.c.b16 %v2444, %v2440
    %v2641 = vpack.c.b16 %v2445, %v2441
    %v2642 = vpack.c.b16 %v2446, %v2442
    %v2643 = vpack.c.b16 %v2451, %v2447
    %v2644 = vpack.c.b16 %v2452, %v2448
    %v2645 = vpack.c.b16 %v2453, %v2449
    %v2646 = vpack.c.b16 %v2454, %v2450
    %v2647 = vpack.c.b16 %v2459, %v2455
    %v2648 = vpack.c.b16 %v2460, %v2456
    %v2649 = vpack.c.b16 %v2461, %v2457
    %v2650 = vpack.c.b16 %v2462, %v2458
    %v2651 = vpack.c.b16 %v2467, %v2463
    %v2652 = vpack.c.b16 %v2468, %v2464
    %v2653 = vpack.c.b16 %v2469, %v2465
    %v2654 = vpack.c.b16 %v2470, %v2466
    %v2655 = vpack.c.b16 %v2475, %v2471
    %v2656 = vpack.c.b16 %v2476, %v2472
    %v2657 = vpack.c.b16 %v2477, %v2473
    %v2658 = vpack.c.b16 %v2478, %v2474
    %v2659 = vpack.c.b16 %v2483, %v2479
    %v2660 = vpack.c.b16 %v2484, %v2480
    %v2661 = vpack.c.b16 %v2485, %v2481
    %v2662 = vpack.c.b16 %v2486, %v2482
    %v2663 = vpack.c.b16 %v2491, %v2487
    %v2664 = vpack.c.b16 %v2492, %v2488
    %v2665 = vpack.c.b16 %v2493, %v2489
    %v2666 = vpack.c.b16 %v2494, %v2490
    %v2667 = vpack.c.b16 %v2499, %v2495
    %v2668 = vpack.c.b16 %v2500, %v2496
    %v2669 = vpack.c.b16 %v2501, %v2497
    %v2670 = vpack.c.b16 %v2502, %v2498
    %v2671 = vpack.c.b16 %v2507, %v2503
    %v2672 = vpack.c.b16 %v2508, %v2504
    %v2673 = vpack.c.b16 %v2509, %v2505
    %v2674 = vpack.c.b16 %v2510, %v2506
    %v2675 = vpack.c.b16 %v2515, %v2511
    %v2676 = vpack.c.b16 %v2516, %v2512
    %v2677 = vpack.c.b16 %v2517, %v2513
    %v2678 = vpack.c.b16 %v2518, %v2514
    %v2679 = vpack.c.b16 %v2523, %v2519
    %v2680 = vpack.c.b16 %v2524, %v2520
    %v2681 = vpack.c.b16 %v2525, %v2521
    %v2682 = vpack.c.b16 %v2526, %v2522
    %v2683 = vpack.c.b16 %v2531, %v2527
    %v2684 = vpack.c.b16 %v2532, %v2528
    %v2685 = vpack.c.b16 %v2533, %v2529
    %v2686 = vpack.c.b16 %v2534, %v2530
    %v2687 = vpack.c.b16 %v2539, %v2535
    %v2688 = vpack.c.b16 %v2540, %v2536
    %v2689 = vpack.c.b16 %v2541, %v2537
    %v2690 = vpack.c.b16 %v2542, %v2538
    %v2691 = vpack.c.b16 %v2547, %v2543
    %v2692 = vpack.c.b16 %v2548, %v2544
    %v2693 = vpack.c.b16 %v2549, %v2545
    %v2694 = vpack.c.b16 %v2550, %v2546
    %v2695 = vpack.c.b16 %v2555, %v2551
    %v2696 = vpack.c.b16 %v2556, %v2552
    %v2697 = vpack.c.b16 %v2557, %v2553
    %v2698 = vpack.c.b16 %v2558, %v2554
    %v2699 = vpack.c.b16 %v2563, %v2559
    %v2700 = vpack.c.b16 %v2564, %v2560
    %v2701 = vpack.c.b16 %v2565, %v2561
    %v2702 = vpack.c.b16 %v2566, %v2562
    %v2703 = vpack.c.b16 %v2571, %v2567
    %v2704 = vpack.c.b16 %v2572, %v2568
    %v2705 = vpack.c.b16 %v2573, %v2569
    %v2706 = vpack.c.b16 %v2574, %v2570
    %v2707 = vpack.c.b16 %v2579, %v2575
    %v2708 = vpack.c.b16 %v2580, %v2576
    %v2709 = vpack.c.b16 %v2581, %v2577
    %v2710 = vpack.c.b16 %v2582, %v2578
    %2839 = vmatprep.subr.bf16.mxu0 %v2612
    %2840 = vmatpush1.bf16.msra.mxu0 %v2611
    %2841 = vmatprep.subr.bf16.mxu0 %v2608
    %2842 = vmatpush1.bf16.msra.mxu0 %v2607
    %2843 = vmatprep.subr.bf16.mxu0 %v2604
    %2844 = vmatpush1.bf16.msra.mxu0 %v2603
    %2845 = vmatprep.subr.bf16.mxu0 %v2600
    %2846 = vmatpush1.bf16.msra.mxu0 %v2599
    %2847 = vmatprep.subr.bf16.mxu0 %v2596
    %2848 = vmatpush1.bf16.msra.mxu0 %v2595
    %2849 = vmatprep.subr.bf16.mxu0 %v2592
    %2850 = vmatpush1.bf16.msra.mxu0 %v2591
    %2851 = vmatprep.subr.bf16.mxu0 %v2588
    %2852 = vmatpush1.bf16.msra.mxu0 %v2587
    %2853 = vmatprep.subr.bf16.mxu0 %v2584
    %2854 = vmatpush1.bf16.msra.mxu0 %v2583
    %2855 = vmatprep.subr.bf16.mxu0 %v2644
    %2856 = vmatpush2.bf16.msra.mxu0 %v2643
    %2857 = vmatprep.subr.bf16.mxu0 %v2640
    %2858 = vmatpush2.bf16.msra.mxu0 %v2639
    %2859 = vmatprep.subr.bf16.mxu0 %v2636
    %2860 = vmatpush2.bf16.msra.mxu0 %v2635
    %2861 = vmatprep.subr.bf16.mxu0 %v2632
    %2862 = vmatpush2.bf16.msra.mxu0 %v2631
    %2863 = vmatprep.subr.bf16.mxu0 %v2628
    %2864 = vmatpush2.bf16.msra.mxu0 %v2627
    %2865 = vmatprep.subr.bf16.mxu0 %v2624
    %2866 = vmatpush2.bf16.msra.mxu0 %v2623
    %2867 = vmatprep.subr.bf16.mxu0 %v2620
    %2868 = vmatpush2.bf16.msra.mxu0 %v2619
    %2869 = vmatprep.subr.bf16.mxu0 %v2616
    %2870 = vmatpush2.bf16.msra.mxu0 %v2615
    %2871 = vmatprep.mubr.bf16.mxu0 %v2176
    %2872 = vmatmul.mubr.bf16.gmra.mxu0 %v2175
    %v2873 = vpop.f32.mrf.mxu0
    %v2874 = vadd.f32 %v2186, %v2873
    %v2875 = vpop.f32.mrf.mxu0
    %v2876 = vadd.f32 %v2190, %v2875
    %v2877 = vpop.f32.mrf.mxu0
    %v2878 = vadd.f32 %v2186, %v2877
    %v2879 = vpop.f32.mrf.mxu0
    %v2880 = vadd.f32 %v2190, %v2879
    %2881 = vmatprep.mubr.bf16.mxu0 %v2180
    %2882 = vmatmul.mubr.bf16.gmra.mxu0 %v2179
    %v2883 = vpop.f32.mrf.mxu0
    %v2884 = vadd.f32 %v2186, %v2883
    %v2885 = vpop.f32.mrf.mxu0
    %v2886 = vadd.f32 %v2190, %v2885
    %v2887 = vpop.f32.mrf.mxu0
    %v2888 = vadd.f32 %v2186, %v2887
    %v2889 = vpop.f32.mrf.mxu0
    %v2890 = vadd.f32 %v2190, %v2889
    %2891 = vdwg.mxu0
    %2892 = vmatprep.subr.bf16.mxu0 %v2676
    %2893 = vmatpush1.bf16.msra.mxu0 %v2675
    %2894 = vmatprep.subr.bf16.mxu0 %v2672
    %2895 = vmatpush1.bf16.msra.mxu0 %v2671
    %2896 = vmatprep.subr.bf16.mxu0 %v2668
    %2897 = vmatpush1.bf16.msra.mxu0 %v2667
    %2898 = vmatprep.subr.bf16.mxu0 %v2664
    %2899 = vmatpush1.bf16.msra.mxu0 %v2663
    %2900 = vmatprep.subr.bf16.mxu0 %v2660
    %2901 = vmatpush1.bf16.msra.mxu0 %v2659
    %2902 = vmatprep.subr.bf16.mxu0 %v2656
    %2903 = vmatpush1.bf16.msra.mxu0 %v2655
    %2904 = vmatprep.subr.bf16.mxu0 %v2652
    %2905 = vmatpush1.bf16.msra.mxu0 %v2651
    %2906 = vmatprep.subr.bf16.mxu0 %v2648
    %2907 = vmatpush1.bf16.msra.mxu0 %v2647
    %2908 = vmatprep.subr.bf16.mxu0 %v2708
    %2909 = vmatpush2.bf16.msra.mxu0 %v2707
    %2910 = vmatprep.subr.bf16.mxu0 %v2704
    %2911 = vmatpush2.bf16.msra.mxu0 %v2703
    %2912 = vmatprep.subr.bf16.mxu0 %v2700
    %2913 = vmatpush2.bf16.msra.mxu0 %v2699
    %2914 = vmatprep.subr.bf16.mxu0 %v2696
    %2915 = vmatpush2.bf16.msra.mxu0 %v2695
    %2916 = vmatprep.subr.bf16.mxu0 %v2692
    %2917 = vmatpush2.bf16.msra.mxu0 %v2691
    %2918 = vmatprep.subr.bf16.mxu0 %v2688
    %2919 = vmatpush2.bf16.msra.mxu0 %v2687
    %2920 = vmatprep.subr.bf16.mxu0 %v2684
    %2921 = vmatpush2.bf16.msra.mxu0 %v2683
    %2922 = vmatprep.subr.bf16.mxu0 %v2680
    %2923 = vmatpush2.bf16.msra.mxu0 %v2679
    %2924 = vmatprep.mubr.bf16.mxu0 %v2178
    %2925 = vmatmul.mubr.bf16.gmra.mxu0 %v2177
    %v2926 = vpop.f32.mrf.mxu0
    %v2927 = vadd.f32 %v2874, %v2926
    %v2928 = vpop.f32.mrf.mxu0
    %v2929 = vadd.f32 %v2876, %v2928
    %v2930 = vpop.f32.mrf.mxu0
    %v2931 = vadd.f32 %v2878, %v2930
    %v2932 = vpop.f32.mrf.mxu0
    %v2933 = vadd.f32 %v2880, %v2932
    %2934 = vmatprep.mubr.bf16.mxu0 %v2182
    %2935 = vmatmul.mubr.bf16.gmra.mxu0 %v2181
    %v2936 = vpop.f32.mrf.mxu0
    %v2937 = vadd.f32 %v2884, %v2936
    %v2938 = vpop.f32.mrf.mxu0
    %v2939 = vadd.f32 %v2886, %v2938
    %v2940 = vpop.f32.mrf.mxu0
    %v2941 = vadd.f32 %v2888, %v2940
    %v2942 = vpop.f32.mrf.mxu0
    %v2943 = vadd.f32 %v2890, %v2942
    %2944 = vdwg.mxu0
    %2945 = vmatprep.subr.bf16.mxu0 %v2614
    %2946 = vmatpush1.bf16.msra.mxu0 %v2613
    %2947 = vmatprep.subr.bf16.mxu0 %v2610
    %2948 = vmatpush1.bf16.msra.mxu0 %v2609
    %2949 = vmatprep.subr.bf16.mxu0 %v2606
    %2950 = vmatpush1.bf16.msra.mxu0 %v2605
    %2951 = vmatprep.subr.bf16.mxu0 %v2602
    %2952 = vmatpush1.bf16.msra.mxu0 %v2601
    %2953 = vmatprep.subr.bf16.mxu0 %v2598
    %2954 = vmatpush1.bf16.msra.mxu0 %v2597
    %2955 = vmatprep.subr.bf16.mxu0 %v2594
    %2956 = vmatpush1.bf16.msra.mxu0 %v2593
    %2957 = vmatprep.subr.bf16.mxu0 %v2590
    %2958 = vmatpush1.bf16.msra.mxu0 %v2589
    %2959 = vmatprep.subr.bf16.mxu0 %v2586
    %2960 = vmatpush1.bf16.msra.mxu0 %v2585
    %2961 = vmatprep.subr.bf16.mxu0 %v2646
    %2962 = vmatpush2.bf16.msra.mxu0 %v2645
    %2963 = vmatprep.subr.bf16.mxu0 %v2642
    %2964 = vmatpush2.bf16.msra.mxu0 %v2641
    %2965 = vmatprep.subr.bf16.mxu0 %v2638
    %2966 = vmatpush2.bf16.msra.mxu0 %v2637
    %2967 = vmatprep.subr.bf16.mxu0 %v2634
    %2968 = vmatpush2.bf16.msra.mxu0 %v2633
    %2969 = vmatprep.subr.bf16.mxu0 %v2630
    %2970 = vmatpush2.bf16.msra.mxu0 %v2629
    %2971 = vmatprep.subr.bf16.mxu0 %v2626
    %2972 = vmatpush2.bf16.msra.mxu0 %v2625
    %2973 = vmatprep.subr.bf16.mxu0 %v2622
    %2974 = vmatpush2.bf16.msra.mxu0 %v2621
    %2975 = vmatprep.subr.bf16.mxu0 %v2618
    %2976 = vmatpush2.bf16.msra.mxu0 %v2617
    %2977 = vmatprep.mubr.bf16.mxu0 %v2176
    %2978 = vmatmul.mubr.bf16.gmra.mxu0 %v2175
    %v2979 = vpop.f32.mrf.mxu0
    %v2980 = vadd.f32 %v2194, %v2979
    %v2981 = vpop.f32.mrf.mxu0
    %v2982 = vadd.f32 %v2198, %v2981
    %v2983 = vpop.f32.mrf.mxu0
    %v2984 = vadd.f32 %v2194, %v2983
    %v2985 = vpop.f32.mrf.mxu0
    %v2986 = vadd.f32 %v2198, %v2985
    %2987 = vmatprep.mubr.bf16.mxu0 %v2180
    %2988 = vmatmul.mubr.bf16.gmra.mxu0 %v2179
    %v2989 = vpop.f32.mrf.mxu0
    %v2990 = vadd.f32 %v2194, %v2989
    %v2991 = vpop.f32.mrf.mxu0
    %v2992 = vadd.f32 %v2198, %v2991
    %v2993 = vpop.f32.mrf.mxu0
    %v2994 = vadd.f32 %v2194, %v2993
    %v2995 = vpop.f32.mrf.mxu0
    %v2996 = vadd.f32 %v2198, %v2995
    %2997 = vdwg.mxu0
    %2998 = vmatprep.subr.bf16.mxu0 %v2678
    %2999 = vmatpush1.bf16.msra.mxu0 %v2677
    %3000 = vmatprep.subr.bf16.mxu0 %v2674
    %3001 = vmatpush1.bf16.msra.mxu0 %v2673
    %3002 = vmatprep.subr.bf16.mxu0 %v2670
    %3003 = vmatpush1.bf16.msra.mxu0 %v2669
    %3004 = vmatprep.subr.bf16.mxu0 %v2666
    %3005 = vmatpush1.bf16.msra.mxu0 %v2665
    %3006 = vmatprep.subr.bf16.mxu0 %v2662
    %3007 = vmatpush1.bf16.msra.mxu0 %v2661
    %3008 = vmatprep.subr.bf16.mxu0 %v2658
    %3009 = vmatpush1.bf16.msra.mxu0 %v2657
    %3010 = vmatprep.subr.bf16.mxu0 %v2654
    %3011 = vmatpush1.bf16.msra.mxu0 %v2653
    %3012 = vmatprep.subr.bf16.mxu0 %v2650
    %3013 = vmatpush1.bf16.msra.mxu0 %v2649
    %3014 = vmatprep.subr.bf16.mxu0 %v2710
    %3015 = vmatpush2.bf16.msra.mxu0 %v2709
    %3016 = vmatprep.subr.bf16.mxu0 %v2706
    %3017 = vmatpush2.bf16.msra.mxu0 %v2705
    %3018 = vmatprep.subr.bf16.mxu0 %v2702
    %3019 = vmatpush2.bf16.msra.mxu0 %v2701
    %3020 = vmatprep.subr.bf16.mxu0 %v2698
    %3021 = vmatpush2.bf16.msra.mxu0 %v2697
    %3022 = vmatprep.subr.bf16.mxu0 %v2694
    %3023 = vmatpush2.bf16.msra.mxu0 %v2693
    %3024 = vmatprep.subr.bf16.mxu0 %v2690
    %3025 = vmatpush2.bf16.msra.mxu0 %v2689
    %3026 = vmatprep.subr.bf16.mxu0 %v2686
    %3027 = vmatpush2.bf16.msra.mxu0 %v2685
    %3028 = vmatprep.subr.bf16.mxu0 %v2682
    %3029 = vmatpush2.bf16.msra.mxu0 %v2681
    %3030 = vmatprep.mubr.bf16.mxu0 %v2178
    %3031 = vmatmul.mubr.bf16.gmra.mxu0 %v2177
    %v3032 = vpop.f32.mrf.mxu0
    %v3033 = vadd.f32 %v2980, %v3032
    %v3034 = vpop.f32.mrf.mxu0
    %v3035 = vadd.f32 %v2982, %v3034
    %v3036 = vpop.f32.mrf.mxu0
    %v3037 = vadd.f32 %v2984, %v3036
    %v3038 = vpop.f32.mrf.mxu0
    %v3039 = vadd.f32 %v2986, %v3038
    %3040 = vmatprep.mubr.bf16.mxu0 %v2182
    %3041 = vmatmul.mubr.bf16.gmra.mxu0 %v2181
    %v3042 = vpop.f32.mrf.mxu0
    %v3043 = vadd.f32 %v2990, %v3042
    %v3044 = vpop.f32.mrf.mxu0
    %v3045 = vadd.f32 %v2992, %v3044
    %v3046 = vpop.f32.mrf.mxu0
    %v3047 = vadd.f32 %v2994, %v3046
    %v3048 = vpop.f32.mrf.mxu0
    %v3049 = vadd.f32 %v2996, %v3048
    %3050 = vdwg.mxu0
    %v3051 = vmax.f32 %v2927, 0.0
    %v3052 = vmax.f32 %v2929, 0.0
    %v3053 = vmax.f32 %v3033, 0.0
    %v3054 = vmax.f32 %v3035, 0.0
    %v3055 = vmax.f32 %v2931, 0.0
    %v3056 = vmax.f32 %v2933, 0.0
    %v3057 = vmax.f32 %v3037, 0.0
    %v3058 = vmax.f32 %v3039, 0.0
    %v3059 = vmax.f32 %v2937, 0.0
    %v3060 = vmax.f32 %v2939, 0.0
    %v3061 = vmax.f32 %v3043, 0.0
    %v3062 = vmax.f32 %v3045, 0.0
    %v3063 = vmax.f32 %v2941, 0.0
    %v3064 = vmax.f32 %v2943, 0.0
    %v3065 = vmax.f32 %v3047, 0.0
    %v3066 = vmax.f32 %v3049, 0.0
    %v3067 = vld [vmem:[#allocation3 + $0x820] sm:$0xff]
    %v3068 = vld [vmem:[#allocation3 + $0x828] sm:$0xff]
    %v3069 = vld [vmem:[#allocation3 + $0x830] sm:$0xff]
    %v3070 = vld [vmem:[#allocation3 + $0x838] sm:$0xff]
    %v3071 = vld [vmem:[#allocation3 + $0x840] sm:$0xff]
    %v3072 = vld [vmem:[#allocation3 + $0x848] sm:$0xff]
    %v3073 = vld [vmem:[#allocation3 + $0x850] sm:$0xff]
    %v3074 = vld [vmem:[#allocation3 + $0x858] sm:$0xff]
    %v3075 = vld [vmem:[#allocation3 + $0x860] sm:$0xff]
    %v3076 = vld [vmem:[#allocation3 + $0x868] sm:$0xff]
    %v3077 = vld [vmem:[#allocation3 + $0x870] sm:$0xff]
    %v3078 = vld [vmem:[#allocation3 + $0x878] sm:$0xff]
    %v3079 = vld [vmem:[#allocation3 + $0x880] sm:$0xff]
    %v3080 = vld [vmem:[#allocation3 + $0x888] sm:$0xff]
    %v3081 = vld [vmem:[#allocation3 + $0x890] sm:$0xff]
    %v3082 = vld [vmem:[#allocation3 + $0x898] sm:$0xff]
    %v3083 = vld [vmem:[#allocation3 + $0x8a0] sm:$0xff]
    %v3084 = vld [vmem:[#allocation3 + $0x8a8] sm:$0xff]
    %v3085 = vld [vmem:[#allocation3 + $0x8b0] sm:$0xff]
    %v3086 = vld [vmem:[#allocation3 + $0x8b8] sm:$0xff]
    %v3087 = vld [vmem:[#allocation3 + $0x8c0] sm:$0xff]
    %v3088 = vld [vmem:[#allocation3 + $0x8c8] sm:$0xff]
    %v3089 = vld [vmem:[#allocation3 + $0x8d0] sm:$0xff]
    %v3090 = vld [vmem:[#allocation3 + $0x8d8] sm:$0xff]
    %v3091 = vld [vmem:[#allocation3 + $0x8e0] sm:$0xff]
    %v3092 = vld [vmem:[#allocation3 + $0x8e8] sm:$0xff]
    %v3093 = vld [vmem:[#allocation3 + $0x8f0] sm:$0xff]
    %v3094 = vld [vmem:[#allocation3 + $0x8f8] sm:$0xff]
    %v3095 = vld [vmem:[#allocation3 + $0x900] sm:$0xff]
    %v3096 = vld [vmem:[#allocation3 + $0x908] sm:$0xff]
    %v3097 = vld [vmem:[#allocation3 + $0x910] sm:$0xff]
    %v3098 = vld [vmem:[#allocation3 + $0x918] sm:$0xff]
    %v3099 = vld [vmem:[#allocation3 + $0x920] sm:$0xff]
    %v3100 = vld [vmem:[#allocation3 + $0x928] sm:$0xff]
    %v3101 = vld [vmem:[#allocation3 + $0x930] sm:$0xff]
    %v3102 = vld [vmem:[#allocation3 + $0x938] sm:$0xff]
    %v3103 = vld [vmem:[#allocation3 + $0x940] sm:$0xff]
    %v3104 = vld [vmem:[#allocation3 + $0x948] sm:$0xff]
    %v3105 = vld [vmem:[#allocation3 + $0x950] sm:$0xff]
    %v3106 = vld [vmem:[#allocation3 + $0x958] sm:$0xff]
    %v3107 = vld [vmem:[#allocation3 + $0x960] sm:$0xff]
    %v3108 = vld [vmem:[#allocation3 + $0x968] sm:$0xff]
    %v3109 = vld [vmem:[#allocation3 + $0x970] sm:$0xff]
    %v3110 = vld [vmem:[#allocation3 + $0x978] sm:$0xff]
    %v3111 = vld [vmem:[#allocation3 + $0x980] sm:$0xff]
    %v3112 = vld [vmem:[#allocation3 + $0x988] sm:$0xff]
    %v3113 = vld [vmem:[#allocation3 + $0x990] sm:$0xff]
    %v3114 = vld [vmem:[#allocation3 + $0x998] sm:$0xff]
    %v3115 = vld [vmem:[#allocation3 + $0x9a0] sm:$0xff]
    %v3116 = vld [vmem:[#allocation3 + $0x9a8] sm:$0xff]
    %v3117 = vld [vmem:[#allocation3 + $0x9b0] sm:$0xff]
    %v3118 = vld [vmem:[#allocation3 + $0x9b8] sm:$0xff]
    %v3119 = vld [vmem:[#allocation3 + $0x9c0] sm:$0xff]
    %v3120 = vld [vmem:[#allocation3 + $0x9c8] sm:$0xff]
    %v3121 = vld [vmem:[#allocation3 + $0x9d0] sm:$0xff]
    %v3122 = vld [vmem:[#allocation3 + $0x9d8] sm:$0xff]
    %v3123 = vld [vmem:[#allocation3 + $0x9e0] sm:$0xff]
    %v3124 = vld [vmem:[#allocation3 + $0x9e8] sm:$0xff]
    %v3125 = vld [vmem:[#allocation3 + $0x9f0] sm:$0xff]
    %v3126 = vld [vmem:[#allocation3 + $0x9f8] sm:$0xff]
    %v3127 = vld [vmem:[#allocation3 + $0xa00] sm:$0xff]
    %v3128 = vld [vmem:[#allocation3 + $0xa08] sm:$0xff]
    %v3129 = vld [vmem:[#allocation3 + $0xa10] sm:$0xff]
    %v3130 = vld [vmem:[#allocation3 + $0xa18] sm:$0xff]
    %v3131 = vld [vmem:[#allocation3 + $0xa20] sm:$0xff]
    %v3132 = vld [vmem:[#allocation3 + $0xa28] sm:$0xff]
    %v3133 = vld [vmem:[#allocation3 + $0xa30] sm:$0xff]
    %v3134 = vld [vmem:[#allocation3 + $0xa38] sm:$0xff]
    %v3135 = vld [vmem:[#allocation3 + $0xa40] sm:$0xff]
    %v3136 = vld [vmem:[#allocation3 + $0xa48] sm:$0xff]
    %v3137 = vld [vmem:[#allocation3 + $0xa50] sm:$0xff]
    %v3138 = vld [vmem:[#allocation3 + $0xa58] sm:$0xff]
    %v3139 = vld [vmem:[#allocation3 + $0xa60] sm:$0xff]
    %v3140 = vld [vmem:[#allocation3 + $0xa68] sm:$0xff]
    %v3141 = vld [vmem:[#allocation3 + $0xa70] sm:$0xff]
    %v3142 = vld [vmem:[#allocation3 + $0xa78] sm:$0xff]
    %v3143 = vld [vmem:[#allocation3 + $0xa80] sm:$0xff]
    %v3144 = vld [vmem:[#allocation3 + $0xa88] sm:$0xff]
    %v3145 = vld [vmem:[#allocation3 + $0xa90] sm:$0xff]
    %v3146 = vld [vmem:[#allocation3 + $0xa98] sm:$0xff]
    %v3147 = vld [vmem:[#allocation3 + $0xaa0] sm:$0xff]
    %v3148 = vld [vmem:[#allocation3 + $0xaa8] sm:$0xff]
    %v3149 = vld [vmem:[#allocation3 + $0xab0] sm:$0xff]
    %v3150 = vld [vmem:[#allocation3 + $0xab8] sm:$0xff]
    %v3151 = vld [vmem:[#allocation3 + $0xac0] sm:$0xff]
    %v3152 = vld [vmem:[#allocation3 + $0xac8] sm:$0xff]
    %v3153 = vld [vmem:[#allocation3 + $0xad0] sm:$0xff]
    %v3154 = vld [vmem:[#allocation3 + $0xad8] sm:$0xff]
    %v3155 = vld [vmem:[#allocation3 + $0xae0] sm:$0xff]
    %v3156 = vld [vmem:[#allocation3 + $0xae8] sm:$0xff]
    %v3157 = vld [vmem:[#allocation3 + $0xaf0] sm:$0xff]
    %v3158 = vld [vmem:[#allocation3 + $0xaf8] sm:$0xff]
    %v3159 = vld [vmem:[#allocation3 + $0xb00] sm:$0xff]
    %v3160 = vld [vmem:[#allocation3 + $0xb08] sm:$0xff]
    %v3161 = vld [vmem:[#allocation3 + $0xb10] sm:$0xff]
    %v3162 = vld [vmem:[#allocation3 + $0xb18] sm:$0xff]
    %v3163 = vld [vmem:[#allocation3 + $0xb20] sm:$0xff]
    %v3164 = vld [vmem:[#allocation3 + $0xb28] sm:$0xff]
    %v3165 = vld [vmem:[#allocation3 + $0xb30] sm:$0xff]
    %v3166 = vld [vmem:[#allocation3 + $0xb38] sm:$0xff]
    %v3167 = vld [vmem:[#allocation3 + $0xb40] sm:$0xff]
    %v3168 = vld [vmem:[#allocation3 + $0xb48] sm:$0xff]
    %v3169 = vld [vmem:[#allocation3 + $0xb50] sm:$0xff]
    %v3170 = vld [vmem:[#allocation3 + $0xb58] sm:$0xff]
    %v3171 = vld [vmem:[#allocation3 + $0xb60] sm:$0xff]
    %v3172 = vld [vmem:[#allocation3 + $0xb68] sm:$0xff]
    %v3173 = vld [vmem:[#allocation3 + $0xb70] sm:$0xff]
    %v3174 = vld [vmem:[#allocation3 + $0xb78] sm:$0xff]
    %v3175 = vld [vmem:[#allocation3 + $0xb80] sm:$0xff]
    %v3176 = vld [vmem:[#allocation3 + $0xb88] sm:$0xff]
    %v3177 = vld [vmem:[#allocation3 + $0xb90] sm:$0xff]
    %v3178 = vld [vmem:[#allocation3 + $0xb98] sm:$0xff]
    %v3179 = vld [vmem:[#allocation3 + $0xba0] sm:$0xff]
    %v3180 = vld [vmem:[#allocation3 + $0xba8] sm:$0xff]
    %v3181 = vld [vmem:[#allocation3 + $0xbb0] sm:$0xff]
    %v3182 = vld [vmem:[#allocation3 + $0xbb8] sm:$0xff]
    %v3183 = vld [vmem:[#allocation3 + $0xbc0] sm:$0xff]
    %v3184 = vld [vmem:[#allocation3 + $0xbc8] sm:$0xff]
    %v3185 = vld [vmem:[#allocation3 + $0xbd0] sm:$0xff]
    %v3186 = vld [vmem:[#allocation3 + $0xbd8] sm:$0xff]
    %v3187 = vld [vmem:[#allocation3 + $0xbe0] sm:$0xff]
    %v3188 = vld [vmem:[#allocation3 + $0xbe8] sm:$0xff]
    %v3189 = vld [vmem:[#allocation3 + $0xbf0] sm:$0xff]
    %v3190 = vld [vmem:[#allocation3 + $0xbf8] sm:$0xff]
    %v3191 = vld [vmem:[#allocation3 + $0xc00] sm:$0xff]
    %v3192 = vld [vmem:[#allocation3 + $0xc08] sm:$0xff]
    %v3193 = vld [vmem:[#allocation3 + $0xc10] sm:$0xff]
    %v3194 = vld [vmem:[#allocation3 + $0xc18] sm:$0xff]
    %v3195 = vpack.c.bf16 %v3055, %v3051
    %v3196 = vpack.c.bf16 %v3056, %v3052
    %v3197 = vpack.c.bf16 %v3057, %v3053
    %v3198 = vpack.c.bf16 %v3058, %v3054
    %v3199 = vpack.c.bf16 %v3063, %v3059
    %v3200 = vpack.c.bf16 %v3064, %v3060
    %v3201 = vpack.c.bf16 %v3065, %v3061
    %v3202 = vpack.c.bf16 %v3066, %v3062
    %v3203 = vlaneseq
    %v3204 = vshrl.u32 %v3203, 7
    %v3205 = vsub.s32 5, %v3204
    %v3206 = vrot.slane %v71, %v3205
    %v3207 = vlaneseq
    %v3208 = vshrl.u32 %v3207, 7
    %v3209 = vsub.s32 5, %v3208
    %v3210 = vrot.slane %v72, %v3209
    %v3211 = vlaneseq
    %v3212 = vshrl.u32 %v3211, 7
    %v3213 = vsub.s32 5, %v3212
    %v3214 = vrot.slane %v73, %v3213
    %v3215 = vlaneseq
    %v3216 = vshrl.u32 %v3215, 7
    %v3217 = vsub.s32 5, %v3216
    %v3218 = vrot.slane %v74, %v3217
    %v3347 = vunpack.c.l.b16 %v3067
    %v3348 = vunpack.c.h.b16 %v3067
    %v3349 = vunpack.c.l.b16 %v3068
    %v3350 = vunpack.c.h.b16 %v3068
    %v3351 = vunpack.c.l.b16 %v3069
    %v3352 = vunpack.c.h.b16 %v3069
    %v3353 = vunpack.c.l.b16 %v3070
    %v3354 = vunpack.c.h.b16 %v3070
    %v3355 = vunpack.c.l.b16 %v3071
    %v3356 = vunpack.c.h.b16 %v3071
    %v3357 = vunpack.c.l.b16 %v3072
    %v3358 = vunpack.c.h.b16 %v3072
    %v3359 = vunpack.c.l.b16 %v3073
    %v3360 = vunpack.c.h.b16 %v3073
    %v3361 = vunpack.c.l.b16 %v3074
    %v3362 = vunpack.c.h.b16 %v3074
    %v3363 = vunpack.c.l.b16 %v3075
    %v3364 = vunpack.c.h.b16 %v3075
    %v3365 = vunpack.c.l.b16 %v3076
    %v3366 = vunpack.c.h.b16 %v3076
    %v3367 = vunpack.c.l.b16 %v3077
    %v3368 = vunpack.c.h.b16 %v3077
    %v3369 = vunpack.c.l.b16 %v3078
    %v3370 = vunpack.c.h.b16 %v3078
    %v3371 = vunpack.c.l.b16 %v3079
    %v3372 = vunpack.c.h.b16 %v3079
    %v3373 = vunpack.c.l.b16 %v3080
    %v3374 = vunpack.c.h.b16 %v3080
    %v3375 = vunpack.c.l.b16 %v3081
    %v3376 = vunpack.c.h.b16 %v3081
    %v3377 = vunpack.c.l.b16 %v3082
    %v3378 = vunpack.c.h.b16 %v3082
    %v3379 = vunpack.c.l.b16 %v3083
    %v3380 = vunpack.c.h.b16 %v3083
    %v3381 = vunpack.c.l.b16 %v3084
    %v3382 = vunpack.c.h.b16 %v3084
    %v3383 = vunpack.c.l.b16 %v3085
    %v3384 = vunpack.c.h.b16 %v3085
    %v3385 = vunpack.c.l.b16 %v3086
    %v3386 = vunpack.c.h.b16 %v3086
    %v3387 = vunpack.c.l.b16 %v3087
    %v3388 = vunpack.c.h.b16 %v3087
    %v3389 = vunpack.c.l.b16 %v3088
    %v3390 = vunpack.c.h.b16 %v3088
    %v3391 = vunpack.c.l.b16 %v3089
    %v3392 = vunpack.c.h.b16 %v3089
    %v3393 = vunpack.c.l.b16 %v3090
    %v3394 = vunpack.c.h.b16 %v3090
    %v3395 = vunpack.c.l.b16 %v3091
    %v3396 = vunpack.c.h.b16 %v3091
    %v3397 = vunpack.c.l.b16 %v3092
    %v3398 = vunpack.c.h.b16 %v3092
    %v3399 = vunpack.c.l.b16 %v3093
    %v3400 = vunpack.c.h.b16 %v3093
    %v3401 = vunpack.c.l.b16 %v3094
    %v3402 = vunpack.c.h.b16 %v3094
    %v3403 = vunpack.c.l.b16 %v3095
    %v3404 = vunpack.c.h.b16 %v3095
    %v3405 = vunpack.c.l.b16 %v3096
    %v3406 = vunpack.c.h.b16 %v3096
    %v3407 = vunpack.c.l.b16 %v3097
    %v3408 = vunpack.c.h.b16 %v3097
    %v3409 = vunpack.c.l.b16 %v3098
    %v3410 = vunpack.c.h.b16 %v3098
    %v3411 = vunpack.c.l.b16 %v3099
    %v3412 = vunpack.c.h.b16 %v3099
    %v3413 = vunpack.c.l.b16 %v3100
    %v3414 = vunpack.c.h.b16 %v3100
    %v3415 = vunpack.c.l.b16 %v3101
    %v3416 = vunpack.c.h.b16 %v3101
    %v3417 = vunpack.c.l.b16 %v3102
    %v3418 = vunpack.c.h.b16 %v3102
    %v3419 = vunpack.c.l.b16 %v3103
    %v3420 = vunpack.c.h.b16 %v3103
    %v3421 = vunpack.c.l.b16 %v3104
    %v3422 = vunpack.c.h.b16 %v3104
    %v3423 = vunpack.c.l.b16 %v3105
    %v3424 = vunpack.c.h.b16 %v3105
    %v3425 = vunpack.c.l.b16 %v3106
    %v3426 = vunpack.c.h.b16 %v3106
    %v3427 = vunpack.c.l.b16 %v3107
    %v3428 = vunpack.c.h.b16 %v3107
    %v3429 = vunpack.c.l.b16 %v3108
    %v3430 = vunpack.c.h.b16 %v3108
    %v3431 = vunpack.c.l.b16 %v3109
    %v3432 = vunpack.c.h.b16 %v3109
    %v3433 = vunpack.c.l.b16 %v3110
    %v3434 = vunpack.c.h.b16 %v3110
    %v3435 = vunpack.c.l.b16 %v3111
    %v3436 = vunpack.c.h.b16 %v3111
    %v3437 = vunpack.c.l.b16 %v3112
    %v3438 = vunpack.c.h.b16 %v3112
    %v3439 = vunpack.c.l.b16 %v3113
    %v3440 = vunpack.c.h.b16 %v3113
    %v3441 = vunpack.c.l.b16 %v3114
    %v3442 = vunpack.c.h.b16 %v3114
    %v3443 = vunpack.c.l.b16 %v3115
    %v3444 = vunpack.c.h.b16 %v3115
    %v3445 = vunpack.c.l.b16 %v3116
    %v3446 = vunpack.c.h.b16 %v3116
    %v3447 = vunpack.c.l.b16 %v3117
    %v3448 = vunpack.c.h.b16 %v3117
    %v3449 = vunpack.c.l.b16 %v3118
    %v3450 = vunpack.c.h.b16 %v3118
    %v3451 = vunpack.c.l.b16 %v3119
    %v3452 = vunpack.c.h.b16 %v3119
    %v3453 = vunpack.c.l.b16 %v3120
    %v3454 = vunpack.c.h.b16 %v3120
    %v3455 = vunpack.c.l.b16 %v3121
    %v3456 = vunpack.c.h.b16 %v3121
    %v3457 = vunpack.c.l.b16 %v3122
    %v3458 = vunpack.c.h.b16 %v3122
    %v3459 = vunpack.c.l.b16 %v3123
    %v3460 = vunpack.c.h.b16 %v3123
    %v3461 = vunpack.c.l.b16 %v3124
    %v3462 = vunpack.c.h.b16 %v3124
    %v3463 = vunpack.c.l.b16 %v3125
    %v3464 = vunpack.c.h.b16 %v3125
    %v3465 = vunpack.c.l.b16 %v3126
    %v3466 = vunpack.c.h.b16 %v3126
    %v3467 = vunpack.c.l.b16 %v3127
    %v3468 = vunpack.c.h.b16 %v3127
    %v3469 = vunpack.c.l.b16 %v3128
    %v3470 = vunpack.c.h.b16 %v3128
    %v3471 = vunpack.c.l.b16 %v3129
    %v3472 = vunpack.c.h.b16 %v3129
    %v3473 = vunpack.c.l.b16 %v3130
    %v3474 = vunpack.c.h.b16 %v3130
    %v3475 = vunpack.c.l.b16 %v3131
    %v3476 = vunpack.c.h.b16 %v3131
    %v3477 = vunpack.c.l.b16 %v3132
    %v3478 = vunpack.c.h.b16 %v3132
    %v3479 = vunpack.c.l.b16 %v3133
    %v3480 = vunpack.c.h.b16 %v3133
    %v3481 = vunpack.c.l.b16 %v3134
    %v3482 = vunpack.c.h.b16 %v3134
    %v3483 = vunpack.c.l.b16 %v3135
    %v3484 = vunpack.c.h.b16 %v3135
    %v3485 = vunpack.c.l.b16 %v3136
    %v3486 = vunpack.c.h.b16 %v3136
    %v3487 = vunpack.c.l.b16 %v3137
    %v3488 = vunpack.c.h.b16 %v3137
    %v3489 = vunpack.c.l.b16 %v3138
    %v3490 = vunpack.c.h.b16 %v3138
    %v3491 = vunpack.c.l.b16 %v3139
    %v3492 = vunpack.c.h.b16 %v3139
    %v3493 = vunpack.c.l.b16 %v3140
    %v3494 = vunpack.c.h.b16 %v3140
    %v3495 = vunpack.c.l.b16 %v3141
    %v3496 = vunpack.c.h.b16 %v3141
    %v3497 = vunpack.c.l.b16 %v3142
    %v3498 = vunpack.c.h.b16 %v3142
    %v3499 = vunpack.c.l.b16 %v3143
    %v3500 = vunpack.c.h.b16 %v3143
    %v3501 = vunpack.c.l.b16 %v3144
    %v3502 = vunpack.c.h.b16 %v3144
    %v3503 = vunpack.c.l.b16 %v3145
    %v3504 = vunpack.c.h.b16 %v3145
    %v3505 = vunpack.c.l.b16 %v3146
    %v3506 = vunpack.c.h.b16 %v3146
    %v3507 = vunpack.c.l.b16 %v3147
    %v3508 = vunpack.c.h.b16 %v3147
    %v3509 = vunpack.c.l.b16 %v3148
    %v3510 = vunpack.c.h.b16 %v3148
    %v3511 = vunpack.c.l.b16 %v3149
    %v3512 = vunpack.c.h.b16 %v3149
    %v3513 = vunpack.c.l.b16 %v3150
    %v3514 = vunpack.c.h.b16 %v3150
    %v3515 = vunpack.c.l.b16 %v3151
    %v3516 = vunpack.c.h.b16 %v3151
    %v3517 = vunpack.c.l.b16 %v3152
    %v3518 = vunpack.c.h.b16 %v3152
    %v3519 = vunpack.c.l.b16 %v3153
    %v3520 = vunpack.c.h.b16 %v3153
    %v3521 = vunpack.c.l.b16 %v3154
    %v3522 = vunpack.c.h.b16 %v3154
    %v3523 = vunpack.c.l.b16 %v3155
    %v3524 = vunpack.c.h.b16 %v3155
    %v3525 = vunpack.c.l.b16 %v3156
    %v3526 = vunpack.c.h.b16 %v3156
    %v3527 = vunpack.c.l.b16 %v3157
    %v3528 = vunpack.c.h.b16 %v3157
    %v3529 = vunpack.c.l.b16 %v3158
    %v3530 = vunpack.c.h.b16 %v3158
    %v3531 = vunpack.c.l.b16 %v3159
    %v3532 = vunpack.c.h.b16 %v3159
    %v3533 = vunpack.c.l.b16 %v3160
    %v3534 = vunpack.c.h.b16 %v3160
    %v3535 = vunpack.c.l.b16 %v3161
    %v3536 = vunpack.c.h.b16 %v3161
    %v3537 = vunpack.c.l.b16 %v3162
    %v3538 = vunpack.c.h.b16 %v3162
    %v3539 = vunpack.c.l.b16 %v3163
    %v3540 = vunpack.c.h.b16 %v3163
    %v3541 = vunpack.c.l.b16 %v3164
    %v3542 = vunpack.c.h.b16 %v3164
    %v3543 = vunpack.c.l.b16 %v3165
    %v3544 = vunpack.c.h.b16 %v3165
    %v3545 = vunpack.c.l.b16 %v3166
    %v3546 = vunpack.c.h.b16 %v3166
    %v3547 = vunpack.c.l.b16 %v3167
    %v3548 = vunpack.c.h.b16 %v3167
    %v3549 = vunpack.c.l.b16 %v3168
    %v3550 = vunpack.c.h.b16 %v3168
    %v3551 = vunpack.c.l.b16 %v3169
    %v3552 = vunpack.c.h.b16 %v3169
    %v3553 = vunpack.c.l.b16 %v3170
    %v3554 = vunpack.c.h.b16 %v3170
    %v3555 = vunpack.c.l.b16 %v3171
    %v3556 = vunpack.c.h.b16 %v3171
    %v3557 = vunpack.c.l.b16 %v3172
    %v3558 = vunpack.c.h.b16 %v3172
    %v3559 = vunpack.c.l.b16 %v3173
    %v3560 = vunpack.c.h.b16 %v3173
    %v3561 = vunpack.c.l.b16 %v3174
    %v3562 = vunpack.c.h.b16 %v3174
    %v3563 = vunpack.c.l.b16 %v3175
    %v3564 = vunpack.c.h.b16 %v3175
    %v3565 = vunpack.c.l.b16 %v3176
    %v3566 = vunpack.c.h.b16 %v3176
    %v3567 = vunpack.c.l.b16 %v3177
    %v3568 = vunpack.c.h.b16 %v3177
    %v3569 = vunpack.c.l.b16 %v3178
    %v3570 = vunpack.c.h.b16 %v3178
    %v3571 = vunpack.c.l.b16 %v3179
    %v3572 = vunpack.c.h.b16 %v3179
    %v3573 = vunpack.c.l.b16 %v3180
    %v3574 = vunpack.c.h.b16 %v3180
    %v3575 = vunpack.c.l.b16 %v3181
    %v3576 = vunpack.c.h.b16 %v3181
    %v3577 = vunpack.c.l.b16 %v3182
    %v3578 = vunpack.c.h.b16 %v3182
    %v3579 = vunpack.c.l.b16 %v3183
    %v3580 = vunpack.c.h.b16 %v3183
    %v3581 = vunpack.c.l.b16 %v3184
    %v3582 = vunpack.c.h.b16 %v3184
    %v3583 = vunpack.c.l.b16 %v3185
    %v3584 = vunpack.c.h.b16 %v3185
    %v3585 = vunpack.c.l.b16 %v3186
    %v3586 = vunpack.c.h.b16 %v3186
    %v3587 = vunpack.c.l.b16 %v3187
    %v3588 = vunpack.c.h.b16 %v3187
    %v3589 = vunpack.c.l.b16 %v3188
    %v3590 = vunpack.c.h.b16 %v3188
    %v3591 = vunpack.c.l.b16 %v3189
    %v3592 = vunpack.c.h.b16 %v3189
    %v3593 = vunpack.c.l.b16 %v3190
    %v3594 = vunpack.c.h.b16 %v3190
    %v3595 = vunpack.c.l.b16 %v3191
    %v3596 = vunpack.c.h.b16 %v3191
    %v3597 = vunpack.c.l.b16 %v3192
    %v3598 = vunpack.c.h.b16 %v3192
    %v3599 = vunpack.c.l.b16 %v3193
    %v3600 = vunpack.c.h.b16 %v3193
    %v3601 = vunpack.c.l.b16 %v3194
    %v3602 = vunpack.c.h.b16 %v3194
    %v3603 = vpack.c.b16 %v3351, %v3347
    %v3604 = vpack.c.b16 %v3352, %v3348
    %v3605 = vpack.c.b16 %v3353, %v3349
    %v3606 = vpack.c.b16 %v3354, %v3350
    %v3607 = vpack.c.b16 %v3359, %v3355
    %v3608 = vpack.c.b16 %v3360, %v3356
    %v3609 = vpack.c.b16 %v3361, %v3357
    %v3610 = vpack.c.b16 %v3362, %v3358
    %v3611 = vpack.c.b16 %v3367, %v3363
    %v3612 = vpack.c.b16 %v3368, %v3364
    %v3613 = vpack.c.b16 %v3369, %v3365
    %v3614 = vpack.c.b16 %v3370, %v3366
    %v3615 = vpack.c.b16 %v3375, %v3371
    %v3616 = vpack.c.b16 %v3376, %v3372
    %v3617 = vpack.c.b16 %v3377, %v3373
    %v3618 = vpack.c.b16 %v3378, %v3374
    %v3619 = vpack.c.b16 %v3383, %v3379
    %v3620 = vpack.c.b16 %v3384, %v3380
    %v3621 = vpack.c.b16 %v3385, %v3381
    %v3622 = vpack.c.b16 %v3386, %v3382
    %v3623 = vpack.c.b16 %v3391, %v3387
    %v3624 = vpack.c.b16 %v3392, %v3388
    %v3625 = vpack.c.b16 %v3393, %v3389
    %v3626 = vpack.c.b16 %v3394, %v3390
    %v3627 = vpack.c.b16 %v3399, %v3395
    %v3628 = vpack.c.b16 %v3400, %v3396
    %v3629 = vpack.c.b16 %v3401, %v3397
    %v3630 = vpack.c.b16 %v3402, %v3398
    %v3631 = vpack.c.b16 %v3407, %v3403
    %v3632 = vpack.c.b16 %v3408, %v3404
    %v3633 = vpack.c.b16 %v3409, %v3405
    %v3634 = vpack.c.b16 %v3410, %v3406
    %v3635 = vpack.c.b16 %v3415, %v3411
    %v3636 = vpack.c.b16 %v3416, %v3412
    %v3637 = vpack.c.b16 %v3417, %v3413
    %v3638 = vpack.c.b16 %v3418, %v3414
    %v3639 = vpack.c.b16 %v3423, %v3419
    %v3640 = vpack.c.b16 %v3424, %v3420
    %v3641 = vpack.c.b16 %v3425, %v3421
    %v3642 = vpack.c.b16 %v3426, %v3422
    %v3643 = vpack.c.b16 %v3431, %v3427
    %v3644 = vpack.c.b16 %v3432, %v3428
    %v3645 = vpack.c.b16 %v3433, %v3429
    %v3646 = vpack.c.b16 %v3434, %v3430
    %v3647 = vpack.c.b16 %v3439, %v3435
    %v3648 = vpack.c.b16 %v3440, %v3436
    %v3649 = vpack.c.b16 %v3441, %v3437
    %v3650 = vpack.c.b16 %v3442, %v3438
    %v3651 = vpack.c.b16 %v3447, %v3443
    %v3652 = vpack.c.b16 %v3448, %v3444
    %v3653 = vpack.c.b16 %v3449, %v3445
    %v3654 = vpack.c.b16 %v3450, %v3446
    %v3655 = vpack.c.b16 %v3455, %v3451
    %v3656 = vpack.c.b16 %v3456, %v3452
    %v3657 = vpack.c.b16 %v3457, %v3453
    %v3658 = vpack.c.b16 %v3458, %v3454
    %v3659 = vpack.c.b16 %v3463, %v3459
    %v3660 = vpack.c.b16 %v3464, %v3460
    %v3661 = vpack.c.b16 %v3465, %v3461
    %v3662 = vpack.c.b16 %v3466, %v3462
    %v3663 = vpack.c.b16 %v3471, %v3467
    %v3664 = vpack.c.b16 %v3472, %v3468
    %v3665 = vpack.c.b16 %v3473, %v3469
    %v3666 = vpack.c.b16 %v3474, %v3470
    %v3667 = vpack.c.b16 %v3479, %v3475
    %v3668 = vpack.c.b16 %v3480, %v3476
    %v3669 = vpack.c.b16 %v3481, %v3477
    %v3670 = vpack.c.b16 %v3482, %v3478
    %v3671 = vpack.c.b16 %v3487, %v3483
    %v3672 = vpack.c.b16 %v3488, %v3484
    %v3673 = vpack.c.b16 %v3489, %v3485
    %v3674 = vpack.c.b16 %v3490, %v3486
    %v3675 = vpack.c.b16 %v3495, %v3491
    %v3676 = vpack.c.b16 %v3496, %v3492
    %v3677 = vpack.c.b16 %v3497, %v3493
    %v3678 = vpack.c.b16 %v3498, %v3494
    %v3679 = vpack.c.b16 %v3503, %v3499
    %v3680 = vpack.c.b16 %v3504, %v3500
    %v3681 = vpack.c.b16 %v3505, %v3501
    %v3682 = vpack.c.b16 %v3506, %v3502
    %v3683 = vpack.c.b16 %v3511, %v3507
    %v3684 = vpack.c.b16 %v3512, %v3508
    %v3685 = vpack.c.b16 %v3513, %v3509
    %v3686 = vpack.c.b16 %v3514, %v3510
    %v3687 = vpack.c.b16 %v3519, %v3515
    %v3688 = vpack.c.b16 %v3520, %v3516
    %v3689 = vpack.c.b16 %v3521, %v3517
    %v3690 = vpack.c.b16 %v3522, %v3518
    %v3691 = vpack.c.b16 %v3527, %v3523
    %v3692 = vpack.c.b16 %v3528, %v3524
    %v3693 = vpack.c.b16 %v3529, %v3525
    %v3694 = vpack.c.b16 %v3530, %v3526
    %v3695 = vpack.c.b16 %v3535, %v3531
    %v3696 = vpack.c.b16 %v3536, %v3532
    %v3697 = vpack.c.b16 %v3537, %v3533
    %v3698 = vpack.c.b16 %v3538, %v3534
    %v3699 = vpack.c.b16 %v3543, %v3539
    %v3700 = vpack.c.b16 %v3544, %v3540
    %v3701 = vpack.c.b16 %v3545, %v3541
    %v3702 = vpack.c.b16 %v3546, %v3542
    %v3703 = vpack.c.b16 %v3551, %v3547
    %v3704 = vpack.c.b16 %v3552, %v3548
    %v3705 = vpack.c.b16 %v3553, %v3549
    %v3706 = vpack.c.b16 %v3554, %v3550
    %v3707 = vpack.c.b16 %v3559, %v3555
    %v3708 = vpack.c.b16 %v3560, %v3556
    %v3709 = vpack.c.b16 %v3561, %v3557
    %v3710 = vpack.c.b16 %v3562, %v3558
    %v3711 = vpack.c.b16 %v3567, %v3563
    %v3712 = vpack.c.b16 %v3568, %v3564
    %v3713 = vpack.c.b16 %v3569, %v3565
    %v3714 = vpack.c.b16 %v3570, %v3566
    %v3715 = vpack.c.b16 %v3575, %v3571
    %v3716 = vpack.c.b16 %v3576, %v3572
    %v3717 = vpack.c.b16 %v3577, %v3573
    %v3718 = vpack.c.b16 %v3578, %v3574
    %v3719 = vpack.c.b16 %v3583, %v3579
    %v3720 = vpack.c.b16 %v3584, %v3580
    %v3721 = vpack.c.b16 %v3585, %v3581
    %v3722 = vpack.c.b16 %v3586, %v3582
    %v3723 = vpack.c.b16 %v3591, %v3587
    %v3724 = vpack.c.b16 %v3592, %v3588
    %v3725 = vpack.c.b16 %v3593, %v3589
    %v3726 = vpack.c.b16 %v3594, %v3590
    %v3727 = vpack.c.b16 %v3599, %v3595
    %v3728 = vpack.c.b16 %v3600, %v3596
    %v3729 = vpack.c.b16 %v3601, %v3597
    %v3730 = vpack.c.b16 %v3602, %v3598
    %3859 = vmatprep.subr.bf16.mxu0 %v3632
    %3860 = vmatpush1.bf16.msra.mxu0 %v3631
    %3861 = vmatprep.subr.bf16.mxu0 %v3628
    %3862 = vmatpush1.bf16.msra.mxu0 %v3627
    %3863 = vmatprep.subr.bf16.mxu0 %v3624
    %3864 = vmatpush1.bf16.msra.mxu0 %v3623
    %3865 = vmatprep.subr.bf16.mxu0 %v3620
    %3866 = vmatpush1.bf16.msra.mxu0 %v3619
    %3867 = vmatprep.subr.bf16.mxu0 %v3616
    %3868 = vmatpush1.bf16.msra.mxu0 %v3615
    %3869 = vmatprep.subr.bf16.mxu0 %v3612
    %3870 = vmatpush1.bf16.msra.mxu0 %v3611
    %3871 = vmatprep.subr.bf16.mxu0 %v3608
    %3872 = vmatpush1.bf16.msra.mxu0 %v3607
    %3873 = vmatprep.subr.bf16.mxu0 %v3604
    %3874 = vmatpush1.bf16.msra.mxu0 %v3603
    %3875 = vmatprep.subr.bf16.mxu0 %v3664
    %3876 = vmatpush2.bf16.msra.mxu0 %v3663
    %3877 = vmatprep.subr.bf16.mxu0 %v3660
    %3878 = vmatpush2.bf16.msra.mxu0 %v3659
    %3879 = vmatprep.subr.bf16.mxu0 %v3656
    %3880 = vmatpush2.bf16.msra.mxu0 %v3655
    %3881 = vmatprep.subr.bf16.mxu0 %v3652
    %3882 = vmatpush2.bf16.msra.mxu0 %v3651
    %3883 = vmatprep.subr.bf16.mxu0 %v3648
    %3884 = vmatpush2.bf16.msra.mxu0 %v3647
    %3885 = vmatprep.subr.bf16.mxu0 %v3644
    %3886 = vmatpush2.bf16.msra.mxu0 %v3643
    %3887 = vmatprep.subr.bf16.mxu0 %v3640
    %3888 = vmatpush2.bf16.msra.mxu0 %v3639
    %3889 = vmatprep.subr.bf16.mxu0 %v3636
    %3890 = vmatpush2.bf16.msra.mxu0 %v3635
    %3891 = vmatprep.mubr.bf16.mxu0 %v3196
    %3892 = vmatmul.mubr.bf16.gmra.mxu0 %v3195
    %v3893 = vpop.f32.mrf.mxu0
    %v3894 = vadd.f32 %v3206, %v3893
    %v3895 = vpop.f32.mrf.mxu0
    %v3896 = vadd.f32 %v3210, %v3895
    %v3897 = vpop.f32.mrf.mxu0
    %v3898 = vadd.f32 %v3206, %v3897
    %v3899 = vpop.f32.mrf.mxu0
    %v3900 = vadd.f32 %v3210, %v3899
    %3901 = vmatprep.mubr.bf16.mxu0 %v3200
    %3902 = vmatmul.mubr.bf16.gmra.mxu0 %v3199
    %v3903 = vpop.f32.mrf.mxu0
    %v3904 = vadd.f32 %v3206, %v3903
    %v3905 = vpop.f32.mrf.mxu0
    %v3906 = vadd.f32 %v3210, %v3905
    %v3907 = vpop.f32.mrf.mxu0
    %v3908 = vadd.f32 %v3206, %v3907
    %v3909 = vpop.f32.mrf.mxu0
    %v3910 = vadd.f32 %v3210, %v3909
    %3911 = vdwg.mxu0
    %3912 = vmatprep.subr.bf16.mxu0 %v3696
    %3913 = vmatpush1.bf16.msra.mxu0 %v3695
    %3914 = vmatprep.subr.bf16.mxu0 %v3692
    %3915 = vmatpush1.bf16.msra.mxu0 %v3691
    %3916 = vmatprep.subr.bf16.mxu0 %v3688
    %3917 = vmatpush1.bf16.msra.mxu0 %v3687
    %3918 = vmatprep.subr.bf16.mxu0 %v3684
    %3919 = vmatpush1.bf16.msra.mxu0 %v3683
    %3920 = vmatprep.subr.bf16.mxu0 %v3680
    %3921 = vmatpush1.bf16.msra.mxu0 %v3679
    %3922 = vmatprep.subr.bf16.mxu0 %v3676
    %3923 = vmatpush1.bf16.msra.mxu0 %v3675
    %3924 = vmatprep.subr.bf16.mxu0 %v3672
    %3925 = vmatpush1.bf16.msra.mxu0 %v3671
    %3926 = vmatprep.subr.bf16.mxu0 %v3668
    %3927 = vmatpush1.bf16.msra.mxu0 %v3667
    %3928 = vmatprep.subr.bf16.mxu0 %v3728
    %3929 = vmatpush2.bf16.msra.mxu0 %v3727
    %3930 = vmatprep.subr.bf16.mxu0 %v3724
    %3931 = vmatpush2.bf16.msra.mxu0 %v3723
    %3932 = vmatprep.subr.bf16.mxu0 %v3720
    %3933 = vmatpush2.bf16.msra.mxu0 %v3719
    %3934 = vmatprep.subr.bf16.mxu0 %v3716
    %3935 = vmatpush2.bf16.msra.mxu0 %v3715
    %3936 = vmatprep.subr.bf16.mxu0 %v3712
    %3937 = vmatpush2.bf16.msra.mxu0 %v3711
    %3938 = vmatprep.subr.bf16.mxu0 %v3708
    %3939 = vmatpush2.bf16.msra.mxu0 %v3707
    %3940 = vmatprep.subr.bf16.mxu0 %v3704
    %3941 = vmatpush2.bf16.msra.mxu0 %v3703
    %3942 = vmatprep.subr.bf16.mxu0 %v3700
    %3943 = vmatpush2.bf16.msra.mxu0 %v3699
    %3944 = vmatprep.mubr.bf16.mxu0 %v3198
    %3945 = vmatmul.mubr.bf16.gmra.mxu0 %v3197
    %v3946 = vpop.f32.mrf.mxu0
    %v3947 = vadd.f32 %v3894, %v3946
    %v3948 = vpop.f32.mrf.mxu0
    %v3949 = vadd.f32 %v3896, %v3948
    %v3950 = vpop.f32.mrf.mxu0
    %v3951 = vadd.f32 %v3898, %v3950
    %v3952 = vpop.f32.mrf.mxu0
    %v3953 = vadd.f32 %v3900, %v3952
    %3954 = vmatprep.mubr.bf16.mxu0 %v3202
    %3955 = vmatmul.mubr.bf16.gmra.mxu0 %v3201
    %v3956 = vpop.f32.mrf.mxu0
    %v3957 = vadd.f32 %v3904, %v3956
    %v3958 = vpop.f32.mrf.mxu0
    %v3959 = vadd.f32 %v3906, %v3958
    %v3960 = vpop.f32.mrf.mxu0
    %v3961 = vadd.f32 %v3908, %v3960
    %v3962 = vpop.f32.mrf.mxu0
    %v3963 = vadd.f32 %v3910, %v3962
    %3964 = vdwg.mxu0
    %3965 = vmatprep.subr.bf16.mxu0 %v3634
    %3966 = vmatpush1.bf16.msra.mxu0 %v3633
    %3967 = vmatprep.subr.bf16.mxu0 %v3630
    %3968 = vmatpush1.bf16.msra.mxu0 %v3629
    %3969 = vmatprep.subr.bf16.mxu0 %v3626
    %3970 = vmatpush1.bf16.msra.mxu0 %v3625
    %3971 = vmatprep.subr.bf16.mxu0 %v3622
    %3972 = vmatpush1.bf16.msra.mxu0 %v3621
    %3973 = vmatprep.subr.bf16.mxu0 %v3618
    %3974 = vmatpush1.bf16.msra.mxu0 %v3617
    %3975 = vmatprep.subr.bf16.mxu0 %v3614
    %3976 = vmatpush1.bf16.msra.mxu0 %v3613
    %3977 = vmatprep.subr.bf16.mxu0 %v3610
    %3978 = vmatpush1.bf16.msra.mxu0 %v3609
    %3979 = vmatprep.subr.bf16.mxu0 %v3606
    %3980 = vmatpush1.bf16.msra.mxu0 %v3605
    %3981 = vmatprep.subr.bf16.mxu0 %v3666
    %3982 = vmatpush2.bf16.msra.mxu0 %v3665
    %3983 = vmatprep.subr.bf16.mxu0 %v3662
    %3984 = vmatpush2.bf16.msra.mxu0 %v3661
    %3985 = vmatprep.subr.bf16.mxu0 %v3658
    %3986 = vmatpush2.bf16.msra.mxu0 %v3657
    %3987 = vmatprep.subr.bf16.mxu0 %v3654
    %3988 = vmatpush2.bf16.msra.mxu0 %v3653
    %3989 = vmatprep.subr.bf16.mxu0 %v3650
    %3990 = vmatpush2.bf16.msra.mxu0 %v3649
    %3991 = vmatprep.subr.bf16.mxu0 %v3646
    %3992 = vmatpush2.bf16.msra.mxu0 %v3645
    %3993 = vmatprep.subr.bf16.mxu0 %v3642
    %3994 = vmatpush2.bf16.msra.mxu0 %v3641
    %3995 = vmatprep.subr.bf16.mxu0 %v3638
    %3996 = vmatpush2.bf16.msra.mxu0 %v3637
    %3997 = vmatprep.mubr.bf16.mxu0 %v3196
    %3998 = vmatmul.mubr.bf16.gmra.mxu0 %v3195
    %v3999 = vpop.f32.mrf.mxu0
    %v4000 = vadd.f32 %v3214, %v3999
    %v4001 = vpop.f32.mrf.mxu0
    %v4002 = vadd.f32 %v3218, %v4001
    %v4003 = vpop.f32.mrf.mxu0
    %v4004 = vadd.f32 %v3214, %v4003
    %v4005 = vpop.f32.mrf.mxu0
    %v4006 = vadd.f32 %v3218, %v4005
    %4007 = vmatprep.mubr.bf16.mxu0 %v3200
    %4008 = vmatmul.mubr.bf16.gmra.mxu0 %v3199
    %v4009 = vpop.f32.mrf.mxu0
    %v4010 = vadd.f32 %v3214, %v4009
    %v4011 = vpop.f32.mrf.mxu0
    %v4012 = vadd.f32 %v3218, %v4011
    %v4013 = vpop.f32.mrf.mxu0
    %v4014 = vadd.f32 %v3214, %v4013
    %v4015 = vpop.f32.mrf.mxu0
    %v4016 = vadd.f32 %v3218, %v4015
    %4017 = vdwg.mxu0
    %4018 = vmatprep.subr.bf16.mxu0 %v3698
    %4019 = vmatpush1.bf16.msra.mxu0 %v3697
    %4020 = vmatprep.subr.bf16.mxu0 %v3694
    %4021 = vmatpush1.bf16.msra.mxu0 %v3693
    %4022 = vmatprep.subr.bf16.mxu0 %v3690
    %4023 = vmatpush1.bf16.msra.mxu0 %v3689
    %4024 = vmatprep.subr.bf16.mxu0 %v3686
    %4025 = vmatpush1.bf16.msra.mxu0 %v3685
    %4026 = vmatprep.subr.bf16.mxu0 %v3682
    %4027 = vmatpush1.bf16.msra.mxu0 %v3681
    %4028 = vmatprep.subr.bf16.mxu0 %v3678
    %4029 = vmatpush1.bf16.msra.mxu0 %v3677
    %4030 = vmatprep.subr.bf16.mxu0 %v3674
    %4031 = vmatpush1.bf16.msra.mxu0 %v3673
    %4032 = vmatprep.subr.bf16.mxu0 %v3670
    %4033 = vmatpush1.bf16.msra.mxu0 %v3669
    %4034 = vmatprep.subr.bf16.mxu0 %v3730
    %4035 = vmatpush2.bf16.msra.mxu0 %v3729
    %4036 = vmatprep.subr.bf16.mxu0 %v3726
    %4037 = vmatpush2.bf16.msra.mxu0 %v3725
    %4038 = vmatprep.subr.bf16.mxu0 %v3722
    %4039 = vmatpush2.bf16.msra.mxu0 %v3721
    %4040 = vmatprep.subr.bf16.mxu0 %v3718
    %4041 = vmatpush2.bf16.msra.mxu0 %v3717
    %4042 = vmatprep.subr.bf16.mxu0 %v3714
    %4043 = vmatpush2.bf16.msra.mxu0 %v3713
    %4044 = vmatprep.subr.bf16.mxu0 %v3710
    %4045 = vmatpush2.bf16.msra.mxu0 %v3709
    %4046 = vmatprep.subr.bf16.mxu0 %v3706
    %4047 = vmatpush2.bf16.msra.mxu0 %v3705
    %4048 = vmatprep.subr.bf16.mxu0 %v3702
    %4049 = vmatpush2.bf16.msra.mxu0 %v3701
    %4050 = vmatprep.mubr.bf16.mxu0 %v3198
    %4051 = vmatmul.mubr.bf16.gmra.mxu0 %v3197
    %v4052 = vpop.f32.mrf.mxu0
    %v4053 = vadd.f32 %v4000, %v4052
    %v4054 = vpop.f32.mrf.mxu0
    %v4055 = vadd.f32 %v4002, %v4054
    %v4056 = vpop.f32.mrf.mxu0
    %v4057 = vadd.f32 %v4004, %v4056
    %v4058 = vpop.f32.mrf.mxu0
    %v4059 = vadd.f32 %v4006, %v4058
    %4060 = vmatprep.mubr.bf16.mxu0 %v3202
    %4061 = vmatmul.mubr.bf16.gmra.mxu0 %v3201
    %v4062 = vpop.f32.mrf.mxu0
    %v4063 = vadd.f32 %v4010, %v4062
    %v4064 = vpop.f32.mrf.mxu0
    %v4065 = vadd.f32 %v4012, %v4064
    %v4066 = vpop.f32.mrf.mxu0
    %v4067 = vadd.f32 %v4014, %v4066
    %v4068 = vpop.f32.mrf.mxu0
    %v4069 = vadd.f32 %v4016, %v4068
    %4070 = vdwg.mxu0
    %v4071 = vmax.f32 %v3947, %v3951
    %v4072 = vrot.slane %v4071, 4
    %v4073 = vmax.f32 %v4071, %v4072
    %v4074 = vrot.slane %v4073, 2
    %v4075 = vmax.f32 %v4073, %v4074
    %v4076 = vrot.slane %v4075, 1
    %v4077 = vmax.f32 %v4075, %v4076
    %v4078 = vmax.f32 %v3949, %v3953
    %v4079 = vrot.slane %v4078, 4
    %v4080 = vmax.f32 %v4078, %v4079
    %v4081 = vrot.slane %v4080, 2
    %v4082 = vmax.f32 %v4080, %v4081
    %v4083 = vrot.slane %v4082, 1
    %v4084 = vmax.f32 %v4082, %v4083
    %v4085 = vmax.f32 %v4053, %v4057
    %v4086 = vrot.slane %v4085, 4
    %v4087 = vmax.f32 %v4085, %v4086
    %v4088 = vrot.slane %v4087, 2
    %v4089 = vmax.f32 %v4087, %v4088
    %v4090 = vrot.slane %v4089, 1
    %v4091 = vmax.f32 %v4089, %v4090
    %v4092 = vmax.f32 %v4055, %v4059
    %v4093 = vrot.slane %v4092, 4
    %v4094 = vmax.f32 %v4092, %v4093
    %v4095 = vrot.slane %v4094, 2
    %v4096 = vmax.f32 %v4094, %v4095
    %v4097 = vrot.slane %v4096, 1
    %v4098 = vmax.f32 %v4096, %v4097
    %v4099 = vmax.f32 %v3957, %v3961
    %v4100 = vrot.slane %v4099, 4
    %v4101 = vmax.f32 %v4099, %v4100
    %v4102 = vrot.slane %v4101, 2
    %v4103 = vmax.f32 %v4101, %v4102
    %v4104 = vrot.slane %v4103, 1
    %v4105 = vmax.f32 %v4103, %v4104
    %v4106 = vmax.f32 %v3959, %v3963
    %v4107 = vrot.slane %v4106, 4
    %v4108 = vmax.f32 %v4106, %v4107
    %v4109 = vrot.slane %v4108, 2
    %v4110 = vmax.f32 %v4108, %v4109
    %v4111 = vrot.slane %v4110, 1
    %v4112 = vmax.f32 %v4110, %v4111
    %v4113 = vmax.f32 %v4063, %v4067
    %v4114 = vrot.slane %v4113, 4
    %v4115 = vmax.f32 %v4113, %v4114
    %v4116 = vrot.slane %v4115, 2
    %v4117 = vmax.f32 %v4115, %v4116
    %v4118 = vrot.slane %v4117, 1
    %v4119 = vmax.f32 %v4117, %v4118
    %v4120 = vmax.f32 %v4065, %v4069
    %v4121 = vrot.slane %v4120, 4
    %v4122 = vmax.f32 %v4120, %v4121
    %v4123 = vrot.slane %v4122, 2
    %v4124 = vmax.f32 %v4122, %v4123
    %v4125 = vrot.slane %v4124, 1
    %v4126 = vmax.f32 %v4124, %v4125
    %v4127 = vsel %vm892, %v4077, %v4105
    %v4128 = vsel %vm892, %v4084, %v4112
    %v4129 = vsel %vm892, %v4091, %v4119
    %v4130 = vsel %vm892, %v4098, %v4126
    %s4131 = smul.u32 4, 128
    %s4132 = smul.u32 %s4131, 4
    %s4133 = sshll.u32 %s4132, 4
    %4134 = dma.done %s55, %s4133
    %v4135 = vld [vmem:[#allocation4] sm:$0xff]
    %v4136 = vld [vmem:[#allocation4 + $0x8] sm:$0xff]
    %v4137 = vld [vmem:[#allocation4 + $0x10] sm:$0xff]
    %v4138 = vld [vmem:[#allocation4 + $0x18] sm:$0xff]
    %v4139 = vld [vmem:[#allocation4 + $0x20] sm:$0xff]
    %v4140 = vld [vmem:[#allocation4 + $0x28] sm:$0xff]
    %v4141 = vld [vmem:[#allocation4 + $0x30] sm:$0xff]
    %v4142 = vld [vmem:[#allocation4 + $0x38] sm:$0xff]
    %v4143 = vld [vmem:[#allocation4 + $0x40] sm:$0xff]
    %v4144 = vld [vmem:[#allocation4 + $0x48] sm:$0xff]
    %v4145 = vld [vmem:[#allocation4 + $0x50] sm:$0xff]
    %v4146 = vld [vmem:[#allocation4 + $0x58] sm:$0xff]
    %v4147 = vld [vmem:[#allocation4 + $0x60] sm:$0xff]
    %v4148 = vld [vmem:[#allocation4 + $0x68] sm:$0xff]
    %v4149 = vld [vmem:[#allocation4 + $0x70] sm:$0xff]
    %v4150 = vld [vmem:[#allocation4 + $0x78] sm:$0xff]
    %v4151 = vld [vmem:[#allocation4 + $0x80] sm:$0xff]
    %v4152 = vld [vmem:[#allocation4 + $0x88] sm:$0xff]
    %v4153 = vld [vmem:[#allocation4 + $0x90] sm:$0xff]
    %v4154 = vld [vmem:[#allocation4 + $0x98] sm:$0xff]
    %v4155 = vld [vmem:[#allocation4 + $0xa0] sm:$0xff]
    %v4156 = vld [vmem:[#allocation4 + $0xa8] sm:$0xff]
    %v4157 = vld [vmem:[#allocation4 + $0xb0] sm:$0xff]
    %v4158 = vld [vmem:[#allocation4 + $0xb8] sm:$0xff]
    %v4159 = vld [vmem:[#allocation4 + $0xc0] sm:$0xff]
    %v4160 = vld [vmem:[#allocation4 + $0xc8] sm:$0xff]
    %v4161 = vld [vmem:[#allocation4 + $0xd0] sm:$0xff]
    %v4162 = vld [vmem:[#allocation4 + $0xd8] sm:$0xff]
    %v4163 = vld [vmem:[#allocation4 + $0xe0] sm:$0xff]
    %v4164 = vld [vmem:[#allocation4 + $0xe8] sm:$0xff]
    %v4165 = vld [vmem:[#allocation4 + $0xf0] sm:$0xff]
    %v4166 = vld [vmem:[#allocation4 + $0xf8] sm:$0xff]
    %v4167 = vld [vmem:[#allocation4 + $0x100] sm:$0xff]
    %v4168 = vld [vmem:[#allocation4 + $0x108] sm:$0xff]
    %v4169 = vld [vmem:[#allocation4 + $0x110] sm:$0xff]
    %v4170 = vld [vmem:[#allocation4 + $0x118] sm:$0xff]
    %v4171 = vld [vmem:[#allocation4 + $0x120] sm:$0xff]
    %v4172 = vld [vmem:[#allocation4 + $0x128] sm:$0xff]
    %v4173 = vld [vmem:[#allocation4 + $0x130] sm:$0xff]
    %v4174 = vld [vmem:[#allocation4 + $0x138] sm:$0xff]
    %v4175 = vld [vmem:[#allocation4 + $0x140] sm:$0xff]
    %v4176 = vld [vmem:[#allocation4 + $0x148] sm:$0xff]
    %v4177 = vld [vmem:[#allocation4 + $0x150] sm:$0xff]
    %v4178 = vld [vmem:[#allocation4 + $0x158] sm:$0xff]
    %v4179 = vld [vmem:[#allocation4 + $0x160] sm:$0xff]
    %v4180 = vld [vmem:[#allocation4 + $0x168] sm:$0xff]
    %v4181 = vld [vmem:[#allocation4 + $0x170] sm:$0xff]
    %v4182 = vld [vmem:[#allocation4 + $0x178] sm:$0xff]
    %v4183 = vld [vmem:[#allocation4 + $0x180] sm:$0xff]
    %v4184 = vld [vmem:[#allocation4 + $0x188] sm:$0xff]
    %v4185 = vld [vmem:[#allocation4 + $0x190] sm:$0xff]
    %v4186 = vld [vmem:[#allocation4 + $0x198] sm:$0xff]
    %v4187 = vld [vmem:[#allocation4 + $0x1a0] sm:$0xff]
    %v4188 = vld [vmem:[#allocation4 + $0x1a8] sm:$0xff]
    %v4189 = vld [vmem:[#allocation4 + $0x1b0] sm:$0xff]
    %v4190 = vld [vmem:[#allocation4 + $0x1b8] sm:$0xff]
    %v4191 = vld [vmem:[#allocation4 + $0x1c0] sm:$0xff]
    %v4192 = vld [vmem:[#allocation4 + $0x1c8] sm:$0xff]
    %v4193 = vld [vmem:[#allocation4 + $0x1d0] sm:$0xff]
    %v4194 = vld [vmem:[#allocation4 + $0x1d8] sm:$0xff]
    %v4195 = vld [vmem:[#allocation4 + $0x1e0] sm:$0xff]
    %v4196 = vld [vmem:[#allocation4 + $0x1e8] sm:$0xff]
    %v4197 = vld [vmem:[#allocation4 + $0x1f0] sm:$0xff]
    %v4198 = vld [vmem:[#allocation4 + $0x1f8] sm:$0xff]
    %v4199 = vld [vmem:[#allocation4 + $0x200] sm:$0xff]
    %v4200 = vld [vmem:[#allocation4 + $0x208] sm:$0xff]
    %v4201 = vld [vmem:[#allocation4 + $0x210] sm:$0xff]
    %v4202 = vld [vmem:[#allocation4 + $0x218] sm:$0xff]
    %v4203 = vld [vmem:[#allocation4 + $0x220] sm:$0xff]
    %v4204 = vld [vmem:[#allocation4 + $0x228] sm:$0xff]
    %v4205 = vld [vmem:[#allocation4 + $0x230] sm:$0xff]
    %v4206 = vld [vmem:[#allocation4 + $0x238] sm:$0xff]
    %v4207 = vld [vmem:[#allocation4 + $0x240] sm:$0xff]
    %v4208 = vld [vmem:[#allocation4 + $0x248] sm:$0xff]
    %v4209 = vld [vmem:[#allocation4 + $0x250] sm:$0xff]
    %v4210 = vld [vmem:[#allocation4 + $0x258] sm:$0xff]
    %v4211 = vld [vmem:[#allocation4 + $0x260] sm:$0xff]
    %v4212 = vld [vmem:[#allocation4 + $0x268] sm:$0xff]
    %v4213 = vld [vmem:[#allocation4 + $0x270] sm:$0xff]
    %v4214 = vld [vmem:[#allocation4 + $0x278] sm:$0xff]
    %v4215 = vld [vmem:[#allocation4 + $0x280] sm:$0xff]
    %v4216 = vld [vmem:[#allocation4 + $0x288] sm:$0xff]
    %v4217 = vld [vmem:[#allocation4 + $0x290] sm:$0xff]
    %v4218 = vld [vmem:[#allocation4 + $0x298] sm:$0xff]
    %v4219 = vld [vmem:[#allocation4 + $0x2a0] sm:$0xff]
    %v4220 = vld [vmem:[#allocation4 + $0x2a8] sm:$0xff]
    %v4221 = vld [vmem:[#allocation4 + $0x2b0] sm:$0xff]
    %v4222 = vld [vmem:[#allocation4 + $0x2b8] sm:$0xff]
    %v4223 = vld [vmem:[#allocation4 + $0x2c0] sm:$0xff]
    %v4224 = vld [vmem:[#allocation4 + $0x2c8] sm:$0xff]
    %v4225 = vld [vmem:[#allocation4 + $0x2d0] sm:$0xff]
    %v4226 = vld [vmem:[#allocation4 + $0x2d8] sm:$0xff]
    %v4227 = vld [vmem:[#allocation4 + $0x2e0] sm:$0xff]
    %v4228 = vld [vmem:[#allocation4 + $0x2e8] sm:$0xff]
    %v4229 = vld [vmem:[#allocation4 + $0x2f0] sm:$0xff]
    %v4230 = vld [vmem:[#allocation4 + $0x2f8] sm:$0xff]
    %v4231 = vld [vmem:[#allocation4 + $0x300] sm:$0xff]
    %v4232 = vld [vmem:[#allocation4 + $0x308] sm:$0xff]
    %v4233 = vld [vmem:[#allocation4 + $0x310] sm:$0xff]
    %v4234 = vld [vmem:[#allocation4 + $0x318] sm:$0xff]
    %v4235 = vld [vmem:[#allocation4 + $0x320] sm:$0xff]
    %v4236 = vld [vmem:[#allocation4 + $0x328] sm:$0xff]
    %v4237 = vld [vmem:[#allocation4 + $0x330] sm:$0xff]
    %v4238 = vld [vmem:[#allocation4 + $0x338] sm:$0xff]
    %v4239 = vld [vmem:[#allocation4 + $0x340] sm:$0xff]
    %v4240 = vld [vmem:[#allocation4 + $0x348] sm:$0xff]
    %v4241 = vld [vmem:[#allocation4 + $0x350] sm:$0xff]
    %v4242 = vld [vmem:[#allocation4 + $0x358] sm:$0xff]
    %v4243 = vld [vmem:[#allocation4 + $0x360] sm:$0xff]
    %v4244 = vld [vmem:[#allocation4 + $0x368] sm:$0xff]
    %v4245 = vld [vmem:[#allocation4 + $0x370] sm:$0xff]
    %v4246 = vld [vmem:[#allocation4 + $0x378] sm:$0xff]
    %v4247 = vld [vmem:[#allocation4 + $0x380] sm:$0xff]
    %v4248 = vld [vmem:[#allocation4 + $0x388] sm:$0xff]
    %v4249 = vld [vmem:[#allocation4 + $0x390] sm:$0xff]
    %v4250 = vld [vmem:[#allocation4 + $0x398] sm:$0xff]
    %v4251 = vld [vmem:[#allocation4 + $0x3a0] sm:$0xff]
    %v4252 = vld [vmem:[#allocation4 + $0x3a8] sm:$0xff]
    %v4253 = vld [vmem:[#allocation4 + $0x3b0] sm:$0xff]
    %v4254 = vld [vmem:[#allocation4 + $0x3b8] sm:$0xff]
    %v4255 = vld [vmem:[#allocation4 + $0x3c0] sm:$0xff]
    %v4256 = vld [vmem:[#allocation4 + $0x3c8] sm:$0xff]
    %v4257 = vld [vmem:[#allocation4 + $0x3d0] sm:$0xff]
    %v4258 = vld [vmem:[#allocation4 + $0x3d8] sm:$0xff]
    %v4259 = vld [vmem:[#allocation4 + $0x3e0] sm:$0xff]
    %v4260 = vld [vmem:[#allocation4 + $0x3e8] sm:$0xff]
    %v4261 = vld [vmem:[#allocation4 + $0x3f0] sm:$0xff]
    %v4262 = vld [vmem:[#allocation4 + $0x3f8] sm:$0xff]
    %v4263 = vpack.c.bf16 %v4127, %v4127
    %v4264 = vpack.c.bf16 %v4128, %v4128
    %v4265 = vpack.c.bf16 %v4129, %v4129
    %v4266 = vpack.c.bf16 %v4130, %v4130
    %v4267 = vlaneseq
    %v4268 = vshrl.u32 %v4267, 7
    %v4269 = vsub.s32 6, %v4268
    %v4270 = vrot.slane %v71, %v4269
    %v4271 = vlaneseq
    %v4272 = vshrl.u32 %v4271, 7
    %v4273 = vsub.s32 6, %v4272
    %v4274 = vrot.slane %v72, %v4273
    %v4275 = vlaneseq
    %v4276 = vshrl.u32 %v4275, 7
    %v4277 = vsub.s32 6, %v4276
    %v4278 = vrot.slane %v73, %v4277
    %v4279 = vlaneseq
    %v4280 = vshrl.u32 %v4279, 7
    %v4281 = vsub.s32 6, %v4280
    %v4282 = vrot.slane %v74, %v4281
    %v4411 = vunpack.c.l.b16 %v4135
    %v4412 = vunpack.c.h.b16 %v4135
    %v4413 = vunpack.c.l.b16 %v4136
    %v4414 = vunpack.c.h.b16 %v4136
    %v4415 = vunpack.c.l.b16 %v4137
    %v4416 = vunpack.c.h.b16 %v4137
    %v4417 = vunpack.c.l.b16 %v4138
    %v4418 = vunpack.c.h.b16 %v4138
    %v4419 = vunpack.c.l.b16 %v4139
    %v4420 = vunpack.c.h.b16 %v4139
    %v4421 = vunpack.c.l.b16 %v4140
    %v4422 = vunpack.c.h.b16 %v4140
    %v4423 = vunpack.c.l.b16 %v4141
    %v4424 = vunpack.c.h.b16 %v4141
    %v4425 = vunpack.c.l.b16 %v4142
    %v4426 = vunpack.c.h.b16 %v4142
    %v4427 = vunpack.c.l.b16 %v4143
    %v4428 = vunpack.c.h.b16 %v4143
    %v4429 = vunpack.c.l.b16 %v4144
    %v4430 = vunpack.c.h.b16 %v4144
    %v4431 = vunpack.c.l.b16 %v4145
    %v4432 = vunpack.c.h.b16 %v4145
    %v4433 = vunpack.c.l.b16 %v4146
    %v4434 = vunpack.c.h.b16 %v4146
    %v4435 = vunpack.c.l.b16 %v4147
    %v4436 = vunpack.c.h.b16 %v4147
    %v4437 = vunpack.c.l.b16 %v4148
    %v4438 = vunpack.c.h.b16 %v4148
    %v4439 = vunpack.c.l.b16 %v4149
    %v4440 = vunpack.c.h.b16 %v4149
    %v4441 = vunpack.c.l.b16 %v4150
    %v4442 = vunpack.c.h.b16 %v4150
    %v4443 = vunpack.c.l.b16 %v4151
    %v4444 = vunpack.c.h.b16 %v4151
    %v4445 = vunpack.c.l.b16 %v4152
    %v4446 = vunpack.c.h.b16 %v4152
    %v4447 = vunpack.c.l.b16 %v4153
    %v4448 = vunpack.c.h.b16 %v4153
    %v4449 = vunpack.c.l.b16 %v4154
    %v4450 = vunpack.c.h.b16 %v4154
    %v4451 = vunpack.c.l.b16 %v4155
    %v4452 = vunpack.c.h.b16 %v4155
    %v4453 = vunpack.c.l.b16 %v4156
    %v4454 = vunpack.c.h.b16 %v4156
    %v4455 = vunpack.c.l.b16 %v4157
    %v4456 = vunpack.c.h.b16 %v4157
    %v4457 = vunpack.c.l.b16 %v4158
    %v4458 = vunpack.c.h.b16 %v4158
    %v4459 = vunpack.c.l.b16 %v4159
    %v4460 = vunpack.c.h.b16 %v4159
    %v4461 = vunpack.c.l.b16 %v4160
    %v4462 = vunpack.c.h.b16 %v4160
    %v4463 = vunpack.c.l.b16 %v4161
    %v4464 = vunpack.c.h.b16 %v4161
    %v4465 = vunpack.c.l.b16 %v4162
    %v4466 = vunpack.c.h.b16 %v4162
    %v4467 = vunpack.c.l.b16 %v4163
    %v4468 = vunpack.c.h.b16 %v4163
    %v4469 = vunpack.c.l.b16 %v4164
    %v4470 = vunpack.c.h.b16 %v4164
    %v4471 = vunpack.c.l.b16 %v4165
    %v4472 = vunpack.c.h.b16 %v4165
    %v4473 = vunpack.c.l.b16 %v4166
    %v4474 = vunpack.c.h.b16 %v4166
    %v4475 = vunpack.c.l.b16 %v4167
    %v4476 = vunpack.c.h.b16 %v4167
    %v4477 = vunpack.c.l.b16 %v4168
    %v4478 = vunpack.c.h.b16 %v4168
    %v4479 = vunpack.c.l.b16 %v4169
    %v4480 = vunpack.c.h.b16 %v4169
    %v4481 = vunpack.c.l.b16 %v4170
    %v4482 = vunpack.c.h.b16 %v4170
    %v4483 = vunpack.c.l.b16 %v4171
    %v4484 = vunpack.c.h.b16 %v4171
    %v4485 = vunpack.c.l.b16 %v4172
    %v4486 = vunpack.c.h.b16 %v4172
    %v4487 = vunpack.c.l.b16 %v4173
    %v4488 = vunpack.c.h.b16 %v4173
    %v4489 = vunpack.c.l.b16 %v4174
    %v4490 = vunpack.c.h.b16 %v4174
    %v4491 = vunpack.c.l.b16 %v4175
    %v4492 = vunpack.c.h.b16 %v4175
    %v4493 = vunpack.c.l.b16 %v4176
    %v4494 = vunpack.c.h.b16 %v4176
    %v4495 = vunpack.c.l.b16 %v4177
    %v4496 = vunpack.c.h.b16 %v4177
    %v4497 = vunpack.c.l.b16 %v4178
    %v4498 = vunpack.c.h.b16 %v4178
    %v4499 = vunpack.c.l.b16 %v4179
    %v4500 = vunpack.c.h.b16 %v4179
    %v4501 = vunpack.c.l.b16 %v4180
    %v4502 = vunpack.c.h.b16 %v4180
    %v4503 = vunpack.c.l.b16 %v4181
    %v4504 = vunpack.c.h.b16 %v4181
    %v4505 = vunpack.c.l.b16 %v4182
    %v4506 = vunpack.c.h.b16 %v4182
    %v4507 = vunpack.c.l.b16 %v4183
    %v4508 = vunpack.c.h.b16 %v4183
    %v4509 = vunpack.c.l.b16 %v4184
    %v4510 = vunpack.c.h.b16 %v4184
    %v4511 = vunpack.c.l.b16 %v4185
    %v4512 = vunpack.c.h.b16 %v4185
    %v4513 = vunpack.c.l.b16 %v4186
    %v4514 = vunpack.c.h.b16 %v4186
    %v4515 = vunpack.c.l.b16 %v4187
    %v4516 = vunpack.c.h.b16 %v4187
    %v4517 = vunpack.c.l.b16 %v4188
    %v4518 = vunpack.c.h.b16 %v4188
    %v4519 = vunpack.c.l.b16 %v4189
    %v4520 = vunpack.c.h.b16 %v4189
    %v4521 = vunpack.c.l.b16 %v4190
    %v4522 = vunpack.c.h.b16 %v4190
    %v4523 = vunpack.c.l.b16 %v4191
    %v4524 = vunpack.c.h.b16 %v4191
    %v4525 = vunpack.c.l.b16 %v4192
    %v4526 = vunpack.c.h.b16 %v4192
    %v4527 = vunpack.c.l.b16 %v4193
    %v4528 = vunpack.c.h.b16 %v4193
    %v4529 = vunpack.c.l.b16 %v4194
    %v4530 = vunpack.c.h.b16 %v4194
    %v4531 = vunpack.c.l.b16 %v4195
    %v4532 = vunpack.c.h.b16 %v4195
    %v4533 = vunpack.c.l.b16 %v4196
    %v4534 = vunpack.c.h.b16 %v4196
    %v4535 = vunpack.c.l.b16 %v4197
    %v4536 = vunpack.c.h.b16 %v4197
    %v4537 = vunpack.c.l.b16 %v4198
    %v4538 = vunpack.c.h.b16 %v4198
    %v4539 = vunpack.c.l.b16 %v4199
    %v4540 = vunpack.c.h.b16 %v4199
    %v4541 = vunpack.c.l.b16 %v4200
    %v4542 = vunpack.c.h.b16 %v4200
    %v4543 = vunpack.c.l.b16 %v4201
    %v4544 = vunpack.c.h.b16 %v4201
    %v4545 = vunpack.c.l.b16 %v4202
    %v4546 = vunpack.c.h.b16 %v4202
    %v4547 = vunpack.c.l.b16 %v4203
    %v4548 = vunpack.c.h.b16 %v4203
    %v4549 = vunpack.c.l.b16 %v4204
    %v4550 = vunpack.c.h.b16 %v4204
    %v4551 = vunpack.c.l.b16 %v4205
    %v4552 = vunpack.c.h.b16 %v4205
    %v4553 = vunpack.c.l.b16 %v4206
    %v4554 = vunpack.c.h.b16 %v4206
    %v4555 = vunpack.c.l.b16 %v4207
    %v4556 = vunpack.c.h.b16 %v4207
    %v4557 = vunpack.c.l.b16 %v4208
    %v4558 = vunpack.c.h.b16 %v4208
    %v4559 = vunpack.c.l.b16 %v4209
    %v4560 = vunpack.c.h.b16 %v4209
    %v4561 = vunpack.c.l.b16 %v4210
    %v4562 = vunpack.c.h.b16 %v4210
    %v4563 = vunpack.c.l.b16 %v4211
    %v4564 = vunpack.c.h.b16 %v4211
    %v4565 = vunpack.c.l.b16 %v4212
    %v4566 = vunpack.c.h.b16 %v4212
    %v4567 = vunpack.c.l.b16 %v4213
    %v4568 = vunpack.c.h.b16 %v4213
    %v4569 = vunpack.c.l.b16 %v4214
    %v4570 = vunpack.c.h.b16 %v4214
    %v4571 = vunpack.c.l.b16 %v4215
    %v4572 = vunpack.c.h.b16 %v4215
    %v4573 = vunpack.c.l.b16 %v4216
    %v4574 = vunpack.c.h.b16 %v4216
    %v4575 = vunpack.c.l.b16 %v4217
    %v4576 = vunpack.c.h.b16 %v4217
    %v4577 = vunpack.c.l.b16 %v4218
    %v4578 = vunpack.c.h.b16 %v4218
    %v4579 = vunpack.c.l.b16 %v4219
    %v4580 = vunpack.c.h.b16 %v4219
    %v4581 = vunpack.c.l.b16 %v4220
    %v4582 = vunpack.c.h.b16 %v4220
    %v4583 = vunpack.c.l.b16 %v4221
    %v4584 = vunpack.c.h.b16 %v4221
    %v4585 = vunpack.c.l.b16 %v4222
    %v4586 = vunpack.c.h.b16 %v4222
    %v4587 = vunpack.c.l.b16 %v4223
    %v4588 = vunpack.c.h.b16 %v4223
    %v4589 = vunpack.c.l.b16 %v4224
    %v4590 = vunpack.c.h.b16 %v4224
    %v4591 = vunpack.c.l.b16 %v4225
    %v4592 = vunpack.c.h.b16 %v4225
    %v4593 = vunpack.c.l.b16 %v4226
    %v4594 = vunpack.c.h.b16 %v4226
    %v4595 = vunpack.c.l.b16 %v4227
    %v4596 = vunpack.c.h.b16 %v4227
    %v4597 = vunpack.c.l.b16 %v4228
    %v4598 = vunpack.c.h.b16 %v4228
    %v4599 = vunpack.c.l.b16 %v4229
    %v4600 = vunpack.c.h.b16 %v4229
    %v4601 = vunpack.c.l.b16 %v4230
    %v4602 = vunpack.c.h.b16 %v4230
    %v4603 = vunpack.c.l.b16 %v4231
    %v4604 = vunpack.c.h.b16 %v4231
    %v4605 = vunpack.c.l.b16 %v4232
    %v4606 = vunpack.c.h.b16 %v4232
    %v4607 = vunpack.c.l.b16 %v4233
    %v4608 = vunpack.c.h.b16 %v4233
    %v4609 = vunpack.c.l.b16 %v4234
    %v4610 = vunpack.c.h.b16 %v4234
    %v4611 = vunpack.c.l.b16 %v4235
    %v4612 = vunpack.c.h.b16 %v4235
    %v4613 = vunpack.c.l.b16 %v4236
    %v4614 = vunpack.c.h.b16 %v4236
    %v4615 = vunpack.c.l.b16 %v4237
    %v4616 = vunpack.c.h.b16 %v4237
    %v4617 = vunpack.c.l.b16 %v4238
    %v4618 = vunpack.c.h.b16 %v4238
    %v4619 = vunpack.c.l.b16 %v4239
    %v4620 = vunpack.c.h.b16 %v4239
    %v4621 = vunpack.c.l.b16 %v4240
    %v4622 = vunpack.c.h.b16 %v4240
    %v4623 = vunpack.c.l.b16 %v4241
    %v4624 = vunpack.c.h.b16 %v4241
    %v4625 = vunpack.c.l.b16 %v4242
    %v4626 = vunpack.c.h.b16 %v4242
    %v4627 = vunpack.c.l.b16 %v4243
    %v4628 = vunpack.c.h.b16 %v4243
    %v4629 = vunpack.c.l.b16 %v4244
    %v4630 = vunpack.c.h.b16 %v4244
    %v4631 = vunpack.c.l.b16 %v4245
    %v4632 = vunpack.c.h.b16 %v4245
    %v4633 = vunpack.c.l.b16 %v4246
    %v4634 = vunpack.c.h.b16 %v4246
    %v4635 = vunpack.c.l.b16 %v4247
    %v4636 = vunpack.c.h.b16 %v4247
    %v4637 = vunpack.c.l.b16 %v4248
    %v4638 = vunpack.c.h.b16 %v4248
    %v4639 = vunpack.c.l.b16 %v4249
    %v4640 = vunpack.c.h.b16 %v4249
    %v4641 = vunpack.c.l.b16 %v4250
    %v4642 = vunpack.c.h.b16 %v4250
    %v4643 = vunpack.c.l.b16 %v4251
    %v4644 = vunpack.c.h.b16 %v4251
    %v4645 = vunpack.c.l.b16 %v4252
    %v4646 = vunpack.c.h.b16 %v4252
    %v4647 = vunpack.c.l.b16 %v4253
    %v4648 = vunpack.c.h.b16 %v4253
    %v4649 = vunpack.c.l.b16 %v4254
    %v4650 = vunpack.c.h.b16 %v4254
    %v4651 = vunpack.c.l.b16 %v4255
    %v4652 = vunpack.c.h.b16 %v4255
    %v4653 = vunpack.c.l.b16 %v4256
    %v4654 = vunpack.c.h.b16 %v4256
    %v4655 = vunpack.c.l.b16 %v4257
    %v4656 = vunpack.c.h.b16 %v4257
    %v4657 = vunpack.c.l.b16 %v4258
    %v4658 = vunpack.c.h.b16 %v4258
    %v4659 = vunpack.c.l.b16 %v4259
    %v4660 = vunpack.c.h.b16 %v4259
    %v4661 = vunpack.c.l.b16 %v4260
    %v4662 = vunpack.c.h.b16 %v4260
    %v4663 = vunpack.c.l.b16 %v4261
    %v4664 = vunpack.c.h.b16 %v4261
    %v4665 = vunpack.c.l.b16 %v4262
    %v4666 = vunpack.c.h.b16 %v4262
    %v4667 = vpack.c.b16 %v4415, %v4411
    %v4668 = vpack.c.b16 %v4416, %v4412
    %v4669 = vpack.c.b16 %v4417, %v4413
    %v4670 = vpack.c.b16 %v4418, %v4414
    %v4671 = vpack.c.b16 %v4423, %v4419
    %v4672 = vpack.c.b16 %v4424, %v4420
    %v4673 = vpack.c.b16 %v4425, %v4421
    %v4674 = vpack.c.b16 %v4426, %v4422
    %v4675 = vpack.c.b16 %v4431, %v4427
    %v4676 = vpack.c.b16 %v4432, %v4428
    %v4677 = vpack.c.b16 %v4433, %v4429
    %v4678 = vpack.c.b16 %v4434, %v4430
    %v4679 = vpack.c.b16 %v4439, %v4435
    %v4680 = vpack.c.b16 %v4440, %v4436
    %v4681 = vpack.c.b16 %v4441, %v4437
    %v4682 = vpack.c.b16 %v4442, %v4438
    %v4683 = vpack.c.b16 %v4447, %v4443
    %v4684 = vpack.c.b16 %v4448, %v4444
    %v4685 = vpack.c.b16 %v4449, %v4445
    %v4686 = vpack.c.b16 %v4450, %v4446
    %v4687 = vpack.c.b16 %v4455, %v4451
    %v4688 = vpack.c.b16 %v4456, %v4452
    %v4689 = vpack.c.b16 %v4457, %v4453
    %v4690 = vpack.c.b16 %v4458, %v4454
    %v4691 = vpack.c.b16 %v4463, %v4459
    %v4692 = vpack.c.b16 %v4464, %v4460
    %v4693 = vpack.c.b16 %v4465, %v4461
    %v4694 = vpack.c.b16 %v4466, %v4462
    %v4695 = vpack.c.b16 %v4471, %v4467
    %v4696 = vpack.c.b16 %v4472, %v4468
    %v4697 = vpack.c.b16 %v4473, %v4469
    %v4698 = vpack.c.b16 %v4474, %v4470
    %v4699 = vpack.c.b16 %v4479, %v4475
    %v4700 = vpack.c.b16 %v4480, %v4476
    %v4701 = vpack.c.b16 %v4481, %v4477
    %v4702 = vpack.c.b16 %v4482, %v4478
    %v4703 = vpack.c.b16 %v4487, %v4483
    %v4704 = vpack.c.b16 %v4488, %v4484
    %v4705 = vpack.c.b16 %v4489, %v4485
    %v4706 = vpack.c.b16 %v4490, %v4486
    %v4707 = vpack.c.b16 %v4495, %v4491
    %v4708 = vpack.c.b16 %v4496, %v4492
    %v4709 = vpack.c.b16 %v4497, %v4493
    %v4710 = vpack.c.b16 %v4498, %v4494
    %v4711 = vpack.c.b16 %v4503, %v4499
    %v4712 = vpack.c.b16 %v4504, %v4500
    %v4713 = vpack.c.b16 %v4505, %v4501
    %v4714 = vpack.c.b16 %v4506, %v4502
    %v4715 = vpack.c.b16 %v4511, %v4507
    %v4716 = vpack.c.b16 %v4512, %v4508
    %v4717 = vpack.c.b16 %v4513, %v4509
    %v4718 = vpack.c.b16 %v4514, %v4510
    %v4719 = vpack.c.b16 %v4519, %v4515
    %v4720 = vpack.c.b16 %v4520, %v4516
    %v4721 = vpack.c.b16 %v4521, %v4517
    %v4722 = vpack.c.b16 %v4522, %v4518
    %v4723 = vpack.c.b16 %v4527, %v4523
    %v4724 = vpack.c.b16 %v4528, %v4524
    %v4725 = vpack.c.b16 %v4529, %v4525
    %v4726 = vpack.c.b16 %v4530, %v4526
    %v4727 = vpack.c.b16 %v4535, %v4531
    %v4728 = vpack.c.b16 %v4536, %v4532
    %v4729 = vpack.c.b16 %v4537, %v4533
    %v4730 = vpack.c.b16 %v4538, %v4534
    %v4731 = vpack.c.b16 %v4543, %v4539
    %v4732 = vpack.c.b16 %v4544, %v4540
    %v4733 = vpack.c.b16 %v4545, %v4541
    %v4734 = vpack.c.b16 %v4546, %v4542
    %v4735 = vpack.c.b16 %v4551, %v4547
    %v4736 = vpack.c.b16 %v4552, %v4548
    %v4737 = vpack.c.b16 %v4553, %v4549
    %v4738 = vpack.c.b16 %v4554, %v4550
    %v4739 = vpack.c.b16 %v4559, %v4555
    %v4740 = vpack.c.b16 %v4560, %v4556
    %v4741 = vpack.c.b16 %v4561, %v4557
    %v4742 = vpack.c.b16 %v4562, %v4558
    %v4743 = vpack.c.b16 %v4567, %v4563
    %v4744 = vpack.c.b16 %v4568, %v4564
    %v4745 = vpack.c.b16 %v4569, %v4565
    %v4746 = vpack.c.b16 %v4570, %v4566
    %v4747 = vpack.c.b16 %v4575, %v4571
    %v4748 = vpack.c.b16 %v4576, %v4572
    %v4749 = vpack.c.b16 %v4577, %v4573
    %v4750 = vpack.c.b16 %v4578, %v4574
    %v4751 = vpack.c.b16 %v4583, %v4579
    %v4752 = vpack.c.b16 %v4584, %v4580
    %v4753 = vpack.c.b16 %v4585, %v4581
    %v4754 = vpack.c.b16 %v4586, %v4582
    %v4755 = vpack.c.b16 %v4591, %v4587
    %v4756 = vpack.c.b16 %v4592, %v4588
    %v4757 = vpack.c.b16 %v4593, %v4589
    %v4758 = vpack.c.b16 %v4594, %v4590
    %v4759 = vpack.c.b16 %v4599, %v4595
    %v4760 = vpack.c.b16 %v4600, %v4596
    %v4761 = vpack.c.b16 %v4601, %v4597
    %v4762 = vpack.c.b16 %v4602, %v4598
    %v4763 = vpack.c.b16 %v4607, %v4603
    %v4764 = vpack.c.b16 %v4608, %v4604
    %v4765 = vpack.c.b16 %v4609, %v4605
    %v4766 = vpack.c.b16 %v4610, %v4606
    %v4767 = vpack.c.b16 %v4615, %v4611
    %v4768 = vpack.c.b16 %v4616, %v4612
    %v4769 = vpack.c.b16 %v4617, %v4613
    %v4770 = vpack.c.b16 %v4618, %v4614
    %v4771 = vpack.c.b16 %v4623, %v4619
    %v4772 = vpack.c.b16 %v4624, %v4620
    %v4773 = vpack.c.b16 %v4625, %v4621
    %v4774 = vpack.c.b16 %v4626, %v4622
    %v4775 = vpack.c.b16 %v4631, %v4627
    %v4776 = vpack.c.b16 %v4632, %v4628
    %v4777 = vpack.c.b16 %v4633, %v4629
    %v4778 = vpack.c.b16 %v4634, %v4630
    %v4779 = vpack.c.b16 %v4639, %v4635
    %v4780 = vpack.c.b16 %v4640, %v4636
    %v4781 = vpack.c.b16 %v4641, %v4637
    %v4782 = vpack.c.b16 %v4642, %v4638
    %v4783 = vpack.c.b16 %v4647, %v4643
    %v4784 = vpack.c.b16 %v4648, %v4644
    %v4785 = vpack.c.b16 %v4649, %v4645
    %v4786 = vpack.c.b16 %v4650, %v4646
    %v4787 = vpack.c.b16 %v4655, %v4651
    %v4788 = vpack.c.b16 %v4656, %v4652
    %v4789 = vpack.c.b16 %v4657, %v4653
    %v4790 = vpack.c.b16 %v4658, %v4654
    %v4791 = vpack.c.b16 %v4663, %v4659
    %v4792 = vpack.c.b16 %v4664, %v4660
    %v4793 = vpack.c.b16 %v4665, %v4661
    %v4794 = vpack.c.b16 %v4666, %v4662
    %4923 = vmatprep.subr.bf16.mxu0 %v4696
    %4924 = vmatpush1.bf16.msra.mxu0 %v4695
    %4925 = vmatprep.subr.bf16.mxu0 %v4692
    %4926 = vmatpush1.bf16.msra.mxu0 %v4691
    %4927 = vmatprep.subr.bf16.mxu0 %v4688
    %4928 = vmatpush1.bf16.msra.mxu0 %v4687
    %4929 = vmatprep.subr.bf16.mxu0 %v4684
    %4930 = vmatpush1.bf16.msra.mxu0 %v4683
    %4931 = vmatprep.subr.bf16.mxu0 %v4680
    %4932 = vmatpush1.bf16.msra.mxu0 %v4679
    %4933 = vmatprep.subr.bf16.mxu0 %v4676
    %4934 = vmatpush1.bf16.msra.mxu0 %v4675
    %4935 = vmatprep.subr.bf16.mxu0 %v4672
    %4936 = vmatpush1.bf16.msra.mxu0 %v4671
    %4937 = vmatprep.subr.bf16.mxu0 %v4668
    %4938 = vmatpush1.bf16.msra.mxu0 %v4667
    %4939 = vmatprep.subr.bf16.mxu0 %v4728
    %4940 = vmatpush2.bf16.msra.mxu0 %v4727
    %4941 = vmatprep.subr.bf16.mxu0 %v4724
    %4942 = vmatpush2.bf16.msra.mxu0 %v4723
    %4943 = vmatprep.subr.bf16.mxu0 %v4720
    %4944 = vmatpush2.bf16.msra.mxu0 %v4719
    %4945 = vmatprep.subr.bf16.mxu0 %v4716
    %4946 = vmatpush2.bf16.msra.mxu0 %v4715
    %4947 = vmatprep.subr.bf16.mxu0 %v4712
    %4948 = vmatpush2.bf16.msra.mxu0 %v4711
    %4949 = vmatprep.subr.bf16.mxu0 %v4708
    %4950 = vmatpush2.bf16.msra.mxu0 %v4707
    %4951 = vmatprep.subr.bf16.mxu0 %v4704
    %4952 = vmatpush2.bf16.msra.mxu0 %v4703
    %4953 = vmatprep.subr.bf16.mxu0 %v4700
    %4954 = vmatpush2.bf16.msra.mxu0 %v4699
    %4955 = vmatprep.mubr.bf16.mxu0 %v4264
    %4956 = vmatmul.mubr.bf16.gmra.mxu0 %v4263
    %v4957 = vpop.f32.mrf.mxu0
    %v4958 = vadd.f32 %v4270, %v4957
    %v4959 = vpop.f32.mrf.mxu0
    %v4960 = vadd.f32 %v4274, %v4959
    %v4961 = vpop.f32.mrf.mxu0
    %v4962 = vpop.f32.mrf.mxu0
    %4963 = vdwg.mxu0
    %4964 = vmatprep.subr.bf16.mxu0 %v4760
    %4965 = vmatpush1.bf16.msra.mxu0 %v4759
    %4966 = vmatprep.subr.bf16.mxu0 %v4756
    %4967 = vmatpush1.bf16.msra.mxu0 %v4755
    %4968 = vmatprep.subr.bf16.mxu0 %v4752
    %4969 = vmatpush1.bf16.msra.mxu0 %v4751
    %4970 = vmatprep.subr.bf16.mxu0 %v4748
    %4971 = vmatpush1.bf16.msra.mxu0 %v4747
    %4972 = vmatprep.subr.bf16.mxu0 %v4744
    %4973 = vmatpush1.bf16.msra.mxu0 %v4743
    %4974 = vmatprep.subr.bf16.mxu0 %v4740
    %4975 = vmatpush1.bf16.msra.mxu0 %v4739
    %4976 = vmatprep.subr.bf16.mxu0 %v4736
    %4977 = vmatpush1.bf16.msra.mxu0 %v4735
    %4978 = vmatprep.subr.bf16.mxu0 %v4732
    %4979 = vmatpush1.bf16.msra.mxu0 %v4731
    %4980 = vmatprep.subr.bf16.mxu0 %v4792
    %4981 = vmatpush2.bf16.msra.mxu0 %v4791
    %4982 = vmatprep.subr.bf16.mxu0 %v4788
    %4983 = vmatpush2.bf16.msra.mxu0 %v4787
    %4984 = vmatprep.subr.bf16.mxu0 %v4784
    %4985 = vmatpush2.bf16.msra.mxu0 %v4783
    %4986 = vmatprep.subr.bf16.mxu0 %v4780
    %4987 = vmatpush2.bf16.msra.mxu0 %v4779
    %4988 = vmatprep.subr.bf16.mxu0 %v4776
    %4989 = vmatpush2.bf16.msra.mxu0 %v4775
    %4990 = vmatprep.subr.bf16.mxu0 %v4772
    %4991 = vmatpush2.bf16.msra.mxu0 %v4771
    %4992 = vmatprep.subr.bf16.mxu0 %v4768
    %4993 = vmatpush2.bf16.msra.mxu0 %v4767
    %4994 = vmatprep.subr.bf16.mxu0 %v4764
    %4995 = vmatpush2.bf16.msra.mxu0 %v4763
    %4996 = vmatprep.mubr.bf16.mxu0 %v4266
    %4997 = vmatmul.mubr.bf16.gmra.mxu0 %v4265
    %v4998 = vpop.f32.mrf.mxu0
    %v4999 = vadd.f32 %v4958, %v4998
    %v5000 = vpop.f32.mrf.mxu0
    %v5001 = vadd.f32 %v4960, %v5000
    %v5002 = vpop.f32.mrf.mxu0
    %v5003 = vpop.f32.mrf.mxu0
    %5004 = vdwg.mxu0
    %5005 = vmatprep.subr.bf16.mxu0 %v4698
    %5006 = vmatpush1.bf16.msra.mxu0 %v4697
    %5007 = vmatprep.subr.bf16.mxu0 %v4694
    %5008 = vmatpush1.bf16.msra.mxu0 %v4693
    %5009 = vmatprep.subr.bf16.mxu0 %v4690
    %5010 = vmatpush1.bf16.msra.mxu0 %v4689
    %5011 = vmatprep.subr.bf16.mxu0 %v4686
    %5012 = vmatpush1.bf16.msra.mxu0 %v4685
    %5013 = vmatprep.subr.bf16.mxu0 %v4682
    %5014 = vmatpush1.bf16.msra.mxu0 %v4681
    %5015 = vmatprep.subr.bf16.mxu0 %v4678
    %5016 = vmatpush1.bf16.msra.mxu0 %v4677
    %5017 = vmatprep.subr.bf16.mxu0 %v4674
    %5018 = vmatpush1.bf16.msra.mxu0 %v4673
    %5019 = vmatprep.subr.bf16.mxu0 %v4670
    %5020 = vmatpush1.bf16.msra.mxu0 %v4669
    %5021 = vmatprep.subr.bf16.mxu0 %v4730
    %5022 = vmatpush2.bf16.msra.mxu0 %v4729
    %5023 = vmatprep.subr.bf16.mxu0 %v4726
    %5024 = vmatpush2.bf16.msra.mxu0 %v4725
    %5025 = vmatprep.subr.bf16.mxu0 %v4722
    %5026 = vmatpush2.bf16.msra.mxu0 %v4721
    %5027 = vmatprep.subr.bf16.mxu0 %v4718
    %5028 = vmatpush2.bf16.msra.mxu0 %v4717
    %5029 = vmatprep.subr.bf16.mxu0 %v4714
    %5030 = vmatpush2.bf16.msra.mxu0 %v4713
    %5031 = vmatprep.subr.bf16.mxu0 %v4710
    %5032 = vmatpush2.bf16.msra.mxu0 %v4709
    %5033 = vmatprep.subr.bf16.mxu0 %v4706
    %5034 = vmatpush2.bf16.msra.mxu0 %v4705
    %5035 = vmatprep.subr.bf16.mxu0 %v4702
    %5036 = vmatpush2.bf16.msra.mxu0 %v4701
    %5037 = vmatprep.mubr.bf16.mxu0 %v4264
    %5038 = vmatmul.mubr.bf16.gmra.mxu0 %v4263
    %v5039 = vpop.f32.mrf.mxu0
    %v5040 = vadd.f32 %v4278, %v5039
    %v5041 = vpop.f32.mrf.mxu0
    %v5042 = vadd.f32 %v4282, %v5041
    %v5043 = vpop.f32.mrf.mxu0
    %v5044 = vpop.f32.mrf.mxu0
    %5045 = vdwg.mxu0
    %5046 = vmatprep.subr.bf16.mxu0 %v4762
    %5047 = vmatpush1.bf16.msra.mxu0 %v4761
    %5048 = vmatprep.subr.bf16.mxu0 %v4758
    %5049 = vmatpush1.bf16.msra.mxu0 %v4757
    %5050 = vmatprep.subr.bf16.mxu0 %v4754
    %5051 = vmatpush1.bf16.msra.mxu0 %v4753
    %5052 = vmatprep.subr.bf16.mxu0 %v4750
    %5053 = vmatpush1.bf16.msra.mxu0 %v4749
    %5054 = vmatprep.subr.bf16.mxu0 %v4746
    %5055 = vmatpush1.bf16.msra.mxu0 %v4745
    %5056 = vmatprep.subr.bf16.mxu0 %v4742
    %5057 = vmatpush1.bf16.msra.mxu0 %v4741
    %5058 = vmatprep.subr.bf16.mxu0 %v4738
    %5059 = vmatpush1.bf16.msra.mxu0 %v4737
    %5060 = vmatprep.subr.bf16.mxu0 %v4734
    %5061 = vmatpush1.bf16.msra.mxu0 %v4733
    %5062 = vmatprep.subr.bf16.mxu0 %v4794
    %5063 = vmatpush2.bf16.msra.mxu0 %v4793
    %5064 = vmatprep.subr.bf16.mxu0 %v4790
    %5065 = vmatpush2.bf16.msra.mxu0 %v4789
    %5066 = vmatprep.subr.bf16.mxu0 %v4786
    %5067 = vmatpush2.bf16.msra.mxu0 %v4785
    %5068 = vmatprep.subr.bf16.mxu0 %v4782
    %5069 = vmatpush2.bf16.msra.mxu0 %v4781
    %5070 = vmatprep.subr.bf16.mxu0 %v4778
    %5071 = vmatpush2.bf16.msra.mxu0 %v4777
    %5072 = vmatprep.subr.bf16.mxu0 %v4774
    %5073 = vmatpush2.bf16.msra.mxu0 %v4773
    %5074 = vmatprep.subr.bf16.mxu0 %v4770
    %5075 = vmatpush2.bf16.msra.mxu0 %v4769
    %5076 = vmatprep.subr.bf16.mxu0 %v4766
    %5077 = vmatpush2.bf16.msra.mxu0 %v4765
    %5078 = vmatprep.mubr.bf16.mxu0 %v4266
    %5079 = vmatmul.mubr.bf16.gmra.mxu0 %v4265
    %v5080 = vpop.f32.mrf.mxu0
    %v5081 = vadd.f32 %v5040, %v5080
    %v5082 = vpop.f32.mrf.mxu0
    %v5083 = vadd.f32 %v5042, %v5082
    %v5084 = vpop.f32.mrf.mxu0
    %v5085 = vpop.f32.mrf.mxu0
    %5086 = vdwg.mxu0
    %v5087 = vld [vmem:[#allocation4 + $0x400] sm:$0xff]
    %v5088 = vld [vmem:[#allocation4 + $0x410] sm:$0xff]
    %v5089 = vld [vmem:[#allocation4 + $0x420] sm:$0xff]
    %v5090 = vld [vmem:[#allocation4 + $0x430] sm:$0xff]
    %v5091 = vld [vmem:[#allocation4 + $0x440] sm:$0xff]
    %v5092 = vld [vmem:[#allocation4 + $0x450] sm:$0xff]
    %v5093 = vld [vmem:[#allocation4 + $0x460] sm:$0xff]
    %v5094 = vld [vmem:[#allocation4 + $0x470] sm:$0xff]
    %v5095 = vld [vmem:[#allocation4 + $0x480] sm:$0xff]
    %v5096 = vld [vmem:[#allocation4 + $0x490] sm:$0xff]
    %v5097 = vld [vmem:[#allocation4 + $0x4a0] sm:$0xff]
    %v5098 = vld [vmem:[#allocation4 + $0x4b0] sm:$0xff]
    %v5099 = vld [vmem:[#allocation4 + $0x4c0] sm:$0xff]
    %v5100 = vld [vmem:[#allocation4 + $0x4d0] sm:$0xff]
    %v5101 = vld [vmem:[#allocation4 + $0x4e0] sm:$0xff]
    %v5102 = vld [vmem:[#allocation4 + $0x4f0] sm:$0xff]
    %v5103 = vld [vmem:[#allocation4 + $0x500] sm:$0xff]
    %v5104 = vld [vmem:[#allocation4 + $0x510] sm:$0xff]
    %v5105 = vld [vmem:[#allocation4 + $0x520] sm:$0xff]
    %v5106 = vld [vmem:[#allocation4 + $0x530] sm:$0xff]
    %v5107 = vld [vmem:[#allocation4 + $0x540] sm:$0xff]
    %v5108 = vld [vmem:[#allocation4 + $0x550] sm:$0xff]
    %v5109 = vld [vmem:[#allocation4 + $0x560] sm:$0xff]
    %v5110 = vld [vmem:[#allocation4 + $0x570] sm:$0xff]
    %v5111 = vld [vmem:[#allocation4 + $0x580] sm:$0xff]
    %v5112 = vld [vmem:[#allocation4 + $0x590] sm:$0xff]
    %v5113 = vld [vmem:[#allocation4 + $0x5a0] sm:$0xff]
    %v5114 = vld [vmem:[#allocation4 + $0x5b0] sm:$0xff]
    %v5115 = vld [vmem:[#allocation4 + $0x5c0] sm:$0xff]
    %v5116 = vld [vmem:[#allocation4 + $0x5d0] sm:$0xff]
    %v5117 = vld [vmem:[#allocation4 + $0x5e0] sm:$0xff]
    %v5118 = vld [vmem:[#allocation4 + $0x5f0] sm:$0xff]
    %v5119 = vpack.c.bf16 %v4999, %v4999
    %v5120 = vpack.c.bf16 %v5001, %v5001
    %v5121 = vlaneseq
    %v5122 = vshrl.u32 %v5121, 7
    %v5123 = vsub.s32 7, %v5122
    %v5124 = vrot.slane %v71, %v5123
    %v5125 = vlaneseq
    %v5126 = vshrl.u32 %v5125, 7
    %v5127 = vsub.s32 7, %v5126
    %v5128 = vrot.slane %v72, %v5127
    %v5161 = vunpack.c.l.b16 %v5087
    %v5162 = vunpack.c.h.b16 %v5087
    %v5163 = vunpack.c.l.b16 %v5088
    %v5164 = vunpack.c.h.b16 %v5088
    %v5165 = vunpack.c.l.b16 %v5089
    %v5166 = vunpack.c.h.b16 %v5089
    %v5167 = vunpack.c.l.b16 %v5090
    %v5168 = vunpack.c.h.b16 %v5090
    %v5169 = vunpack.c.l.b16 %v5091
    %v5170 = vunpack.c.h.b16 %v5091
    %v5171 = vunpack.c.l.b16 %v5092
    %v5172 = vunpack.c.h.b16 %v5092
    %v5173 = vunpack.c.l.b16 %v5093
    %v5174 = vunpack.c.h.b16 %v5093
    %v5175 = vunpack.c.l.b16 %v5094
    %v5176 = vunpack.c.h.b16 %v5094
    %v5177 = vunpack.c.l.b16 %v5095
    %v5178 = vunpack.c.h.b16 %v5095
    %v5179 = vunpack.c.l.b16 %v5096
    %v5180 = vunpack.c.h.b16 %v5096
    %v5181 = vunpack.c.l.b16 %v5097
    %v5182 = vunpack.c.h.b16 %v5097
    %v5183 = vunpack.c.l.b16 %v5098
    %v5184 = vunpack.c.h.b16 %v5098
    %v5185 = vunpack.c.l.b16 %v5099
    %v5186 = vunpack.c.h.b16 %v5099
    %v5187 = vunpack.c.l.b16 %v5100
    %v5188 = vunpack.c.h.b16 %v5100
    %v5189 = vunpack.c.l.b16 %v5101
    %v5190 = vunpack.c.h.b16 %v5101
    %v5191 = vunpack.c.l.b16 %v5102
    %v5192 = vunpack.c.h.b16 %v5102
    %v5193 = vunpack.c.l.b16 %v5103
    %v5194 = vunpack.c.h.b16 %v5103
    %v5195 = vunpack.c.l.b16 %v5104
    %v5196 = vunpack.c.h.b16 %v5104
    %v5197 = vunpack.c.l.b16 %v5105
    %v5198 = vunpack.c.h.b16 %v5105
    %v5199 = vunpack.c.l.b16 %v5106
    %v5200 = vunpack.c.h.b16 %v5106
    %v5201 = vunpack.c.l.b16 %v5107
    %v5202 = vunpack.c.h.b16 %v5107
    %v5203 = vunpack.c.l.b16 %v5108
    %v5204 = vunpack.c.h.b16 %v5108
    %v5205 = vunpack.c.l.b16 %v5109
    %v5206 = vunpack.c.h.b16 %v5109
    %v5207 = vunpack.c.l.b16 %v5110
    %v5208 = vunpack.c.h.b16 %v5110
    %v5209 = vunpack.c.l.b16 %v5111
    %v5210 = vunpack.c.h.b16 %v5111
    %v5211 = vunpack.c.l.b16 %v5112
    %v5212 = vunpack.c.h.b16 %v5112
    %v5213 = vunpack.c.l.b16 %v5113
    %v5214 = vunpack.c.h.b16 %v5113
    %v5215 = vunpack.c.l.b16 %v5114
    %v5216 = vunpack.c.h.b16 %v5114
    %v5217 = vunpack.c.l.b16 %v5115
    %v5218 = vunpack.c.h.b16 %v5115
    %v5219 = vunpack.c.l.b16 %v5116
    %v5220 = vunpack.c.h.b16 %v5116
    %v5221 = vunpack.c.l.b16 %v5117
    %v5222 = vunpack.c.h.b16 %v5117
    %v5223 = vunpack.c.l.b16 %v5118
    %v5224 = vunpack.c.h.b16 %v5118
    %v5225 = vpack.c.b16 %v5163, %v5161
    %v5226 = vpack.c.b16 %v5164, %v5162
    %v5227 = vpack.c.b16 %v5167, %v5165
    %v5228 = vpack.c.b16 %v5168, %v5166
    %v5229 = vpack.c.b16 %v5171, %v5169
    %v5230 = vpack.c.b16 %v5172, %v5170
    %v5231 = vpack.c.b16 %v5175, %v5173
    %v5232 = vpack.c.b16 %v5176, %v5174
    %v5233 = vpack.c.b16 %v5179, %v5177
    %v5234 = vpack.c.b16 %v5180, %v5178
    %v5235 = vpack.c.b16 %v5183, %v5181
    %v5236 = vpack.c.b16 %v5184, %v5182
    %v5237 = vpack.c.b16 %v5187, %v5185
    %v5238 = vpack.c.b16 %v5188, %v5186
    %v5239 = vpack.c.b16 %v5191, %v5189
    %v5240 = vpack.c.b16 %v5192, %v5190
    %v5241 = vpack.c.b16 %v5195, %v5193
    %v5242 = vpack.c.b16 %v5196, %v5194
    %v5243 = vpack.c.b16 %v5199, %v5197
    %v5244 = vpack.c.b16 %v5200, %v5198
    %v5245 = vpack.c.b16 %v5203, %v5201
    %v5246 = vpack.c.b16 %v5204, %v5202
    %v5247 = vpack.c.b16 %v5207, %v5205
    %v5248 = vpack.c.b16 %v5208, %v5206
    %v5249 = vpack.c.b16 %v5211, %v5209
    %v5250 = vpack.c.b16 %v5212, %v5210
    %v5251 = vpack.c.b16 %v5215, %v5213
    %v5252 = vpack.c.b16 %v5216, %v5214
    %v5253 = vpack.c.b16 %v5219, %v5217
    %v5254 = vpack.c.b16 %v5220, %v5218
    %v5255 = vpack.c.b16 %v5223, %v5221
    %v5256 = vpack.c.b16 %v5224, %v5222
    %5289 = vmatprep.subr.bf16.mxu0 %v5240
    %5290 = vmatpush1.bf16.msra.mxu0 %v5239
    %5291 = vmatprep.subr.bf16.mxu0 %v5238
    %5292 = vmatpush1.bf16.msra.mxu0 %v5237
    %5293 = vmatprep.subr.bf16.mxu0 %v5236
    %5294 = vmatpush1.bf16.msra.mxu0 %v5235
    %5295 = vmatprep.subr.bf16.mxu0 %v5234
    %5296 = vmatpush1.bf16.msra.mxu0 %v5233
    %5297 = vmatprep.subr.bf16.mxu0 %v5232
    %5298 = vmatpush1.bf16.msra.mxu0 %v5231
    %5299 = vmatprep.subr.bf16.mxu0 %v5230
    %5300 = vmatpush1.bf16.msra.mxu0 %v5229
    %5301 = vmatprep.subr.bf16.mxu0 %v5228
    %5302 = vmatpush1.bf16.msra.mxu0 %v5227
    %5303 = vmatprep.subr.bf16.mxu0 %v5226
    %5304 = vmatpush1.bf16.msra.mxu0 %v5225
    %5305 = vmatprep.subr.bf16.mxu0 %v5256
    %5306 = vmatpush2.bf16.msra.mxu0 %v5255
    %5307 = vmatprep.subr.bf16.mxu0 %v5254
    %5308 = vmatpush2.bf16.msra.mxu0 %v5253
    %5309 = vmatprep.subr.bf16.mxu0 %v5252
    %5310 = vmatpush2.bf16.msra.mxu0 %v5251
    %5311 = vmatprep.subr.bf16.mxu0 %v5250
    %5312 = vmatpush2.bf16.msra.mxu0 %v5249
    %5313 = vmatprep.subr.bf16.mxu0 %v5248
    %5314 = vmatpush2.bf16.msra.mxu0 %v5247
    %5315 = vmatprep.subr.bf16.mxu0 %v5246
    %5316 = vmatpush2.bf16.msra.mxu0 %v5245
    %5317 = vmatprep.subr.bf16.mxu0 %v5244
    %5318 = vmatpush2.bf16.msra.mxu0 %v5243
    %5319 = vmatprep.subr.bf16.mxu0 %v5242
    %5320 = vmatpush2.bf16.msra.mxu0 %v5241
    %5321 = vmatprep.mubr.bf16.mxu0 %v5120
    %5322 = vmatmul.mubr.bf16.gmra.mxu0 %v5119
    %v5323 = vpop.f32.mrf.mxu0
    %v5324 = vadd.f32 %v5124, %v5323
    %v5325 = vpop.f32.mrf.mxu0
    %v5326 = vadd.f32 %v5128, %v5325
    %v5327 = vpop.f32.mrf.mxu0
    %v5328 = vpop.f32.mrf.mxu0
    %5329 = vdwg.mxu0
    %v5330 = vld [vmem:[#allocation4 + $0x600] sm:$0xff]
    %v5331 = vld [vmem:[#allocation4 + $0x610] sm:$0xff]
    %v5332 = vld [vmem:[#allocation4 + $0x620] sm:$0xff]
    %v5333 = vld [vmem:[#allocation4 + $0x630] sm:$0xff]
    %v5334 = vld [vmem:[#allocation4 + $0x640] sm:$0xff]
    %v5335 = vld [vmem:[#allocation4 + $0x650] sm:$0xff]
    %v5336 = vld [vmem:[#allocation4 + $0x660] sm:$0xff]
    %v5337 = vld [vmem:[#allocation4 + $0x670] sm:$0xff]
    %v5338 = vld [vmem:[#allocation4 + $0x680] sm:$0xff]
    %v5339 = vld [vmem:[#allocation4 + $0x690] sm:$0xff]
    %v5340 = vld [vmem:[#allocation4 + $0x6a0] sm:$0xff]
    %v5341 = vld [vmem:[#allocation4 + $0x6b0] sm:$0xff]
    %v5342 = vld [vmem:[#allocation4 + $0x6c0] sm:$0xff]
    %v5343 = vld [vmem:[#allocation4 + $0x6d0] sm:$0xff]
    %v5344 = vld [vmem:[#allocation4 + $0x6e0] sm:$0xff]
    %v5345 = vld [vmem:[#allocation4 + $0x6f0] sm:$0xff]
    %v5346 = vld [vmem:[#allocation4 + $0x700] sm:$0xff]
    %v5347 = vld [vmem:[#allocation4 + $0x710] sm:$0xff]
    %v5348 = vld [vmem:[#allocation4 + $0x720] sm:$0xff]
    %v5349 = vld [vmem:[#allocation4 + $0x730] sm:$0xff]
    %v5350 = vld [vmem:[#allocation4 + $0x740] sm:$0xff]
    %v5351 = vld [vmem:[#allocation4 + $0x750] sm:$0xff]
    %v5352 = vld [vmem:[#allocation4 + $0x760] sm:$0xff]
    %v5353 = vld [vmem:[#allocation4 + $0x770] sm:$0xff]
    %v5354 = vld [vmem:[#allocation4 + $0x780] sm:$0xff]
    %v5355 = vld [vmem:[#allocation4 + $0x790] sm:$0xff]
    %v5356 = vld [vmem:[#allocation4 + $0x7a0] sm:$0xff]
    %v5357 = vld [vmem:[#allocation4 + $0x7b0] sm:$0xff]
    %v5358 = vld [vmem:[#allocation4 + $0x7c0] sm:$0xff]
    %v5359 = vld [vmem:[#allocation4 + $0x7d0] sm:$0xff]
    %v5360 = vld [vmem:[#allocation4 + $0x7e0] sm:$0xff]
    %v5361 = vld [vmem:[#allocation4 + $0x7f0] sm:$0xff]
    %v5362 = vpack.c.bf16 %v5081, %v5081
    %v5363 = vpack.c.bf16 %v5083, %v5083
    %v5364 = vlaneseq
    %v5365 = vshrl.u32 %v5364, 7
    %v5366 = vsub.s32 7, %v5365
    %v5367 = vrot.slane %v73, %v5366
    %v5368 = vlaneseq
    %v5369 = vshrl.u32 %v5368, 7
    %v5370 = vsub.s32 7, %v5369
    %v5371 = vrot.slane %v74, %v5370
    %v5404 = vunpack.c.l.b16 %v5330
    %v5405 = vunpack.c.h.b16 %v5330
    %v5406 = vunpack.c.l.b16 %v5331
    %v5407 = vunpack.c.h.b16 %v5331
    %v5408 = vunpack.c.l.b16 %v5332
    %v5409 = vunpack.c.h.b16 %v5332
    %v5410 = vunpack.c.l.b16 %v5333
    %v5411 = vunpack.c.h.b16 %v5333
    %v5412 = vunpack.c.l.b16 %v5334
    %v5413 = vunpack.c.h.b16 %v5334
    %v5414 = vunpack.c.l.b16 %v5335
    %v5415 = vunpack.c.h.b16 %v5335
    %v5416 = vunpack.c.l.b16 %v5336
    %v5417 = vunpack.c.h.b16 %v5336
    %v5418 = vunpack.c.l.b16 %v5337
    %v5419 = vunpack.c.h.b16 %v5337
    %v5420 = vunpack.c.l.b16 %v5338
    %v5421 = vunpack.c.h.b16 %v5338
    %v5422 = vunpack.c.l.b16 %v5339
    %v5423 = vunpack.c.h.b16 %v5339
    %v5424 = vunpack.c.l.b16 %v5340
    %v5425 = vunpack.c.h.b16 %v5340
    %v5426 = vunpack.c.l.b16 %v5341
    %v5427 = vunpack.c.h.b16 %v5341
    %v5428 = vunpack.c.l.b16 %v5342
    %v5429 = vunpack.c.h.b16 %v5342
    %v5430 = vunpack.c.l.b16 %v5343
    %v5431 = vunpack.c.h.b16 %v5343
    %v5432 = vunpack.c.l.b16 %v5344
    %v5433 = vunpack.c.h.b16 %v5344
    %v5434 = vunpack.c.l.b16 %v5345
    %v5435 = vunpack.c.h.b16 %v5345
    %v5436 = vunpack.c.l.b16 %v5346
    %v5437 = vunpack.c.h.b16 %v5346
    %v5438 = vunpack.c.l.b16 %v5347
    %v5439 = vunpack.c.h.b16 %v5347
    %v5440 = vunpack.c.l.b16 %v5348
    %v5441 = vunpack.c.h.b16 %v5348
    %v5442 = vunpack.c.l.b16 %v5349
    %v5443 = vunpack.c.h.b16 %v5349
    %v5444 = vunpack.c.l.b16 %v5350
    %v5445 = vunpack.c.h.b16 %v5350
    %v5446 = vunpack.c.l.b16 %v5351
    %v5447 = vunpack.c.h.b16 %v5351
    %v5448 = vunpack.c.l.b16 %v5352
    %v5449 = vunpack.c.h.b16 %v5352
    %v5450 = vunpack.c.l.b16 %v5353
    %v5451 = vunpack.c.h.b16 %v5353
    %v5452 = vunpack.c.l.b16 %v5354
    %v5453 = vunpack.c.h.b16 %v5354
    %v5454 = vunpack.c.l.b16 %v5355
    %v5455 = vunpack.c.h.b16 %v5355
    %v5456 = vunpack.c.l.b16 %v5356
    %v5457 = vunpack.c.h.b16 %v5356
    %v5458 = vunpack.c.l.b16 %v5357
    %v5459 = vunpack.c.h.b16 %v5357
    %v5460 = vunpack.c.l.b16 %v5358
    %v5461 = vunpack.c.h.b16 %v5358
    %v5462 = vunpack.c.l.b16 %v5359
    %v5463 = vunpack.c.h.b16 %v5359
    %v5464 = vunpack.c.l.b16 %v5360
    %v5465 = vunpack.c.h.b16 %v5360
    %v5466 = vunpack.c.l.b16 %v5361
    %v5467 = vunpack.c.h.b16 %v5361
    %v5468 = vpack.c.b16 %v5406, %v5404
    %v5469 = vpack.c.b16 %v5407, %v5405
    %v5470 = vpack.c.b16 %v5410, %v5408
    %v5471 = vpack.c.b16 %v5411, %v5409
    %v5472 = vpack.c.b16 %v5414, %v5412
    %v5473 = vpack.c.b16 %v5415, %v5413
    %v5474 = vpack.c.b16 %v5418, %v5416
    %v5475 = vpack.c.b16 %v5419, %v5417
    %v5476 = vpack.c.b16 %v5422, %v5420
    %v5477 = vpack.c.b16 %v5423, %v5421
    %v5478 = vpack.c.b16 %v5426, %v5424
    %v5479 = vpack.c.b16 %v5427, %v5425
    %v5480 = vpack.c.b16 %v5430, %v5428
    %v5481 = vpack.c.b16 %v5431, %v5429
    %v5482 = vpack.c.b16 %v5434, %v5432
    %v5483 = vpack.c.b16 %v5435, %v5433
    %v5484 = vpack.c.b16 %v5438, %v5436
    %v5485 = vpack.c.b16 %v5439, %v5437
    %v5486 = vpack.c.b16 %v5442, %v5440
    %v5487 = vpack.c.b16 %v5443, %v5441
    %v5488 = vpack.c.b16 %v5446, %v5444
    %v5489 = vpack.c.b16 %v5447, %v5445
    %v5490 = vpack.c.b16 %v5450, %v5448
    %v5491 = vpack.c.b16 %v5451, %v5449
    %v5492 = vpack.c.b16 %v5454, %v5452
    %v5493 = vpack.c.b16 %v5455, %v5453
    %v5494 = vpack.c.b16 %v5458, %v5456
    %v5495 = vpack.c.b16 %v5459, %v5457
    %v5496 = vpack.c.b16 %v5462, %v5460
    %v5497 = vpack.c.b16 %v5463, %v5461
    %v5498 = vpack.c.b16 %v5466, %v5464
    %v5499 = vpack.c.b16 %v5467, %v5465
    %5532 = vmatprep.subr.bf16.mxu0 %v5483
    %5533 = vmatpush1.bf16.msra.mxu0 %v5482
    %5534 = vmatprep.subr.bf16.mxu0 %v5481
    %5535 = vmatpush1.bf16.msra.mxu0 %v5480
    %5536 = vmatprep.subr.bf16.mxu0 %v5479
    %5537 = vmatpush1.bf16.msra.mxu0 %v5478
    %5538 = vmatprep.subr.bf16.mxu0 %v5477
    %5539 = vmatpush1.bf16.msra.mxu0 %v5476
    %5540 = vmatprep.subr.bf16.mxu0 %v5475
    %5541 = vmatpush1.bf16.msra.mxu0 %v5474
    %5542 = vmatprep.subr.bf16.mxu0 %v5473
    %5543 = vmatpush1.bf16.msra.mxu0 %v5472
    %5544 = vmatprep.subr.bf16.mxu0 %v5471
    %5545 = vmatpush1.bf16.msra.mxu0 %v5470
    %5546 = vmatprep.subr.bf16.mxu0 %v5469
    %5547 = vmatpush1.bf16.msra.mxu0 %v5468
    %5548 = vmatprep.subr.bf16.mxu0 %v5499
    %5549 = vmatpush2.bf16.msra.mxu0 %v5498
    %5550 = vmatprep.subr.bf16.mxu0 %v5497
    %5551 = vmatpush2.bf16.msra.mxu0 %v5496
    %5552 = vmatprep.subr.bf16.mxu0 %v5495
    %5553 = vmatpush2.bf16.msra.mxu0 %v5494
    %5554 = vmatprep.subr.bf16.mxu0 %v5493
    %5555 = vmatpush2.bf16.msra.mxu0 %v5492
    %5556 = vmatprep.subr.bf16.mxu0 %v5491
    %5557 = vmatpush2.bf16.msra.mxu0 %v5490
    %5558 = vmatprep.subr.bf16.mxu0 %v5489
    %5559 = vmatpush2.bf16.msra.mxu0 %v5488
    %5560 = vmatprep.subr.bf16.mxu0 %v5487
    %5561 = vmatpush2.bf16.msra.mxu0 %v5486
    %5562 = vmatprep.subr.bf16.mxu0 %v5485
    %5563 = vmatpush2.bf16.msra.mxu0 %v5484
    %5564 = vmatprep.mubr.bf16.mxu0 %v5363
    %5565 = vmatmul.mubr.bf16.gmra.mxu0 %v5362
    %v5566 = vpop.f32.mrf.mxu0
    %v5567 = vadd.f32 %v5367, %v5566
    %v5568 = vpop.f32.mrf.mxu0
    %v5569 = vadd.f32 %v5371, %v5568
    %v5570 = vpop.f32.mrf.mxu0
    %v5571 = vpop.f32.mrf.mxu0
    %5572 = vdwg.mxu0
    %v5573 = vld [vmem:[#allocation4 + $0x408] sm:$0xf]
    %v5574 = vld [vmem:[#allocation4 + $0x418] sm:$0xf]
    %v5575 = vld [vmem:[#allocation4 + $0x428] sm:$0xf]
    %v5576 = vld [vmem:[#allocation4 + $0x438] sm:$0xf]
    %v5577 = vld [vmem:[#allocation4 + $0x448] sm:$0xf]
    %v5578 = vld [vmem:[#allocation4 + $0x458] sm:$0xf]
    %v5579 = vld [vmem:[#allocation4 + $0x468] sm:$0xf]
    %v5580 = vld [vmem:[#allocation4 + $0x478] sm:$0xf]
    %v5581 = vld [vmem:[#allocation4 + $0x488] sm:$0xf]
    %v5582 = vld [vmem:[#allocation4 + $0x498] sm:$0xf]
    %v5583 = vld [vmem:[#allocation4 + $0x4a8] sm:$0xf]
    %v5584 = vld [vmem:[#allocation4 + $0x4b8] sm:$0xf]
    %v5585 = vld [vmem:[#allocation4 + $0x4c8] sm:$0xf]
    %v5586 = vld [vmem:[#allocation4 + $0x4d8] sm:$0xf]
    %v5587 = vld [vmem:[#allocation4 + $0x4e8] sm:$0xf]
    %v5588 = vld [vmem:[#allocation4 + $0x4f8] sm:$0xf]
    %v5589 = vld [vmem:[#allocation4 + $0x508] sm:$0xf]
    %v5590 = vld [vmem:[#allocation4 + $0x518] sm:$0xf]
    %v5591 = vld [vmem:[#allocation4 + $0x528] sm:$0xf]
    %v5592 = vld [vmem:[#allocation4 + $0x538] sm:$0xf]
    %v5593 = vld [vmem:[#allocation4 + $0x548] sm:$0xf]
    %v5594 = vld [vmem:[#allocation4 + $0x558] sm:$0xf]
    %v5595 = vld [vmem:[#allocation4 + $0x568] sm:$0xf]
    %v5596 = vld [vmem:[#allocation4 + $0x578] sm:$0xf]
    %v5597 = vld [vmem:[#allocation4 + $0x588] sm:$0xf]
    %v5598 = vld [vmem:[#allocation4 + $0x598] sm:$0xf]
    %v5599 = vld [vmem:[#allocation4 + $0x5a8] sm:$0xf]
    %v5600 = vld [vmem:[#allocation4 + $0x5b8] sm:$0xf]
    %v5601 = vld [vmem:[#allocation4 + $0x5c8] sm:$0xf]
    %v5602 = vld [vmem:[#allocation4 + $0x5d8] sm:$0xf]
    %v5603 = vld [vmem:[#allocation4 + $0x5e8] sm:$0xf]
    %v5604 = vld [vmem:[#allocation4 + $0x5f8] sm:$0xf]
    %v5605 = vpack.c.bf16 %v5324, %v5324
    %v5606 = vpack.c.bf16 %v5326, %v5326
    %v5607 = vld [vmem:[#allocation4 + $0x608] sm:$0xf]
    %v5608 = vld [vmem:[#allocation4 + $0x618] sm:$0xf]
    %v5609 = vld [vmem:[#allocation4 + $0x628] sm:$0xf]
    %v5610 = vld [vmem:[#allocation4 + $0x638] sm:$0xf]
    %v5611 = vld [vmem:[#allocation4 + $0x648] sm:$0xf]
    %v5612 = vld [vmem:[#allocation4 + $0x658] sm:$0xf]
    %v5613 = vld [vmem:[#allocation4 + $0x668] sm:$0xf]
    %v5614 = vld [vmem:[#allocation4 + $0x678] sm:$0xf]
    %v5615 = vld [vmem:[#allocation4 + $0x688] sm:$0xf]
    %v5616 = vld [vmem:[#allocation4 + $0x698] sm:$0xf]
    %v5617 = vld [vmem:[#allocation4 + $0x6a8] sm:$0xf]
    %v5618 = vld [vmem:[#allocation4 + $0x6b8] sm:$0xf]
    %v5619 = vld [vmem:[#allocation4 + $0x6c8] sm:$0xf]
    %v5620 = vld [vmem:[#allocation4 + $0x6d8] sm:$0xf]
    %v5621 = vld [vmem:[#allocation4 + $0x6e8] sm:$0xf]
    %v5622 = vld [vmem:[#allocation4 + $0x6f8] sm:$0xf]
    %v5623 = vld [vmem:[#allocation4 + $0x708] sm:$0xf]
    %v5624 = vld [vmem:[#allocation4 + $0x718] sm:$0xf]
    %v5625 = vld [vmem:[#allocation4 + $0x728] sm:$0xf]
    %v5626 = vld [vmem:[#allocation4 + $0x738] sm:$0xf]
    %v5627 = vld [vmem:[#allocation4 + $0x748] sm:$0xf]
    %v5628 = vld [vmem:[#allocation4 + $0x758] sm:$0xf]
    %v5629 = vld [vmem:[#allocation4 + $0x768] sm:$0xf]
    %v5630 = vld [vmem:[#allocation4 + $0x778] sm:$0xf]
    %v5631 = vld [vmem:[#allocation4 + $0x788] sm:$0xf]
    %v5632 = vld [vmem:[#allocation4 + $0x798] sm:$0xf]
    %v5633 = vld [vmem:[#allocation4 + $0x7a8] sm:$0xf]
    %v5634 = vld [vmem:[#allocation4 + $0x7b8] sm:$0xf]
    %v5635 = vld [vmem:[#allocation4 + $0x7c8] sm:$0xf]
    %v5636 = vld [vmem:[#allocation4 + $0x7d8] sm:$0xf]
    %v5637 = vld [vmem:[#allocation4 + $0x7e8] sm:$0xf]
    %v5638 = vld [vmem:[#allocation4 + $0x7f8] sm:$0xf]
    %v5639 = vpack.c.bf16 %v5567, %v5567
    %v5640 = vpack.c.bf16 %v5569, %v5569
    %v5673 = vunpack.c.l.b16 %v5607
    %v5674 = vunpack.c.l.b16 %v5608
    %v5675 = vunpack.c.l.b16 %v5609
    %v5676 = vunpack.c.l.b16 %v5610
    %v5677 = vunpack.c.l.b16 %v5611
    %v5678 = vunpack.c.l.b16 %v5612
    %v5679 = vunpack.c.l.b16 %v5613
    %v5680 = vunpack.c.l.b16 %v5614
    %v5681 = vunpack.c.l.b16 %v5615
    %v5682 = vunpack.c.l.b16 %v5616
    %v5683 = vunpack.c.l.b16 %v5617
    %v5684 = vunpack.c.l.b16 %v5618
    %v5685 = vunpack.c.l.b16 %v5619
    %v5686 = vunpack.c.l.b16 %v5620
    %v5687 = vunpack.c.l.b16 %v5621
    %v5688 = vunpack.c.l.b16 %v5622
    %v5689 = vunpack.c.l.b16 %v5623
    %v5690 = vunpack.c.l.b16 %v5624
    %v5691 = vunpack.c.l.b16 %v5625
    %v5692 = vunpack.c.l.b16 %v5626
    %v5693 = vunpack.c.l.b16 %v5627
    %v5694 = vunpack.c.l.b16 %v5628
    %v5695 = vunpack.c.l.b16 %v5629
    %v5696 = vunpack.c.l.b16 %v5630
    %v5697 = vunpack.c.l.b16 %v5631
    %v5698 = vunpack.c.l.b16 %v5632
    %v5699 = vunpack.c.l.b16 %v5633
    %v5700 = vunpack.c.l.b16 %v5634
    %v5701 = vunpack.c.l.b16 %v5635
    %v5702 = vunpack.c.l.b16 %v5636
    %v5703 = vunpack.c.l.b16 %v5637
    %v5704 = vunpack.c.l.b16 %v5638
    %v5705 = vpack.c.b16 %v5674, %v5673
    %v5706 = vpack.c.b16 %v5676, %v5675
    %v5707 = vpack.c.b16 %v5678, %v5677
    %v5708 = vpack.c.b16 %v5680, %v5679
    %v5709 = vpack.c.b16 %v5682, %v5681
    %v5710 = vpack.c.b16 %v5684, %v5683
    %v5711 = vpack.c.b16 %v5686, %v5685
    %v5712 = vpack.c.b16 %v5688, %v5687
    %v5713 = vpack.c.b16 %v5690, %v5689
    %v5714 = vpack.c.b16 %v5692, %v5691
    %v5715 = vpack.c.b16 %v5694, %v5693
    %v5716 = vpack.c.b16 %v5696, %v5695
    %v5717 = vpack.c.b16 %v5698, %v5697
    %v5718 = vpack.c.b16 %v5700, %v5699
    %v5719 = vpack.c.b16 %v5702, %v5701
    %v5720 = vpack.c.b16 %v5704, %v5703
    %5737 = vmatprep.subr.bf16.mxu0 0
    %5738 = vmatpush1.bf16.msra.mxu0 %v5712
    %5739 = vmatprep.subr.bf16.mxu0 0
    %5740 = vmatpush1.bf16.msra.mxu0 %v5711
    %5741 = vmatprep.subr.bf16.mxu0 0
    %5742 = vmatpush1.bf16.msra.mxu0 %v5710
    %5743 = vmatprep.subr.bf16.mxu0 0
    %5744 = vmatpush1.bf16.msra.mxu0 %v5709
    %5745 = vmatprep.subr.bf16.mxu0 0
    %5746 = vmatpush1.bf16.msra.mxu0 %v5708
    %5747 = vmatprep.subr.bf16.mxu0 0
    %5748 = vmatpush1.bf16.msra.mxu0 %v5707
    %5749 = vmatprep.subr.bf16.mxu0 0
    %5750 = vmatpush1.bf16.msra.mxu0 %v5706
    %5751 = vmatprep.subr.bf16.mxu0 0
    %5752 = vmatpush1.bf16.msra.mxu0 %v5705
    %5753 = vmatprep.subr.bf16.mxu0 0
    %5754 = vmatpush2.bf16.msra.mxu0 %v5720
    %5755 = vmatprep.subr.bf16.mxu0 0
    %5756 = vmatpush2.bf16.msra.mxu0 %v5719
    %5757 = vmatprep.subr.bf16.mxu0 0
    %5758 = vmatpush2.bf16.msra.mxu0 %v5718
    %5759 = vmatprep.subr.bf16.mxu0 0
    %5760 = vmatpush2.bf16.msra.mxu0 %v5717
    %5761 = vmatprep.subr.bf16.mxu0 0
    %5762 = vmatpush2.bf16.msra.mxu0 %v5716
    %5763 = vmatprep.subr.bf16.mxu0 0
    %5764 = vmatpush2.bf16.msra.mxu0 %v5715
    %5765 = vmatprep.subr.bf16.mxu0 0
    %5766 = vmatpush2.bf16.msra.mxu0 %v5714
    %5767 = vmatprep.subr.bf16.mxu0 0
    %5768 = vmatpush2.bf16.msra.mxu0 %v5713
    %5769 = vmatprep.mubr.bf16.mxu0 %v5640
    %5770 = vmatmul.mubr.bf16.gmra.mxu0 %v5639
    %v5771 = vpop.f32.mrf.mxu0
    %v5772 = vadd.f32 0.0, %v5771
    %v5773 = vpop.f32.mrf.mxu0
    %v5774 = vpop.f32.mrf.mxu0
    %v5775 = vpop.f32.mrf.mxu0
    %5776 = vdwg.mxu0
    %v5809 = vunpack.c.l.b16 %v5573
    %v5810 = vunpack.c.l.b16 %v5574
    %v5811 = vunpack.c.l.b16 %v5575
    %v5812 = vunpack.c.l.b16 %v5576
    %v5813 = vunpack.c.l.b16 %v5577
    %v5814 = vunpack.c.l.b16 %v5578
    %v5815 = vunpack.c.l.b16 %v5579
    %v5816 = vunpack.c.l.b16 %v5580
    %v5817 = vunpack.c.l.b16 %v5581
    %v5818 = vunpack.c.l.b16 %v5582
    %v5819 = vunpack.c.l.b16 %v5583
    %v5820 = vunpack.c.l.b16 %v5584
    %v5821 = vunpack.c.l.b16 %v5585
    %v5822 = vunpack.c.l.b16 %v5586
    %v5823 = vunpack.c.l.b16 %v5587
    %v5824 = vunpack.c.l.b16 %v5588
    %v5825 = vunpack.c.l.b16 %v5589
    %v5826 = vunpack.c.l.b16 %v5590
    %v5827 = vunpack.c.l.b16 %v5591
    %v5828 = vunpack.c.l.b16 %v5592
    %v5829 = vunpack.c.l.b16 %v5593
    %v5830 = vunpack.c.l.b16 %v5594
    %v5831 = vunpack.c.l.b16 %v5595
    %v5832 = vunpack.c.l.b16 %v5596
    %v5833 = vunpack.c.l.b16 %v5597
    %v5834 = vunpack.c.l.b16 %v5598
    %v5835 = vunpack.c.l.b16 %v5599
    %v5836 = vunpack.c.l.b16 %v5600
    %v5837 = vunpack.c.l.b16 %v5601
    %v5838 = vunpack.c.l.b16 %v5602
    %v5839 = vunpack.c.l.b16 %v5603
    %v5840 = vunpack.c.l.b16 %v5604
    %v5841 = vpack.c.b16 %v5810, %v5809
    %v5842 = vpack.c.b16 %v5812, %v5811
    %v5843 = vpack.c.b16 %v5814, %v5813
    %v5844 = vpack.c.b16 %v5816, %v5815
    %v5845 = vpack.c.b16 %v5818, %v5817
    %v5846 = vpack.c.b16 %v5820, %v5819
    %v5847 = vpack.c.b16 %v5822, %v5821
    %v5848 = vpack.c.b16 %v5824, %v5823
    %v5849 = vpack.c.b16 %v5826, %v5825
    %v5850 = vpack.c.b16 %v5828, %v5827
    %v5851 = vpack.c.b16 %v5830, %v5829
    %v5852 = vpack.c.b16 %v5832, %v5831
    %v5853 = vpack.c.b16 %v5834, %v5833
    %v5854 = vpack.c.b16 %v5836, %v5835
    %v5855 = vpack.c.b16 %v5838, %v5837
    %v5856 = vpack.c.b16 %v5840, %v5839
    %5873 = vmatprep.subr.bf16.mxu0 0
    %5874 = vmatpush1.bf16.msra.mxu0 %v5848
    %5875 = vmatprep.subr.bf16.mxu0 0
    %5876 = vmatpush1.bf16.msra.mxu0 %v5847
    %5877 = vmatprep.subr.bf16.mxu0 0
    %5878 = vmatpush1.bf16.msra.mxu0 %v5846
    %5879 = vmatprep.subr.bf16.mxu0 0
    %5880 = vmatpush1.bf16.msra.mxu0 %v5845
    %5881 = vmatprep.subr.bf16.mxu0 0
    %5882 = vmatpush1.bf16.msra.mxu0 %v5844
    %5883 = vmatprep.subr.bf16.mxu0 0
    %5884 = vmatpush1.bf16.msra.mxu0 %v5843
    %5885 = vmatprep.subr.bf16.mxu0 0
    %5886 = vmatpush1.bf16.msra.mxu0 %v5842
    %5887 = vmatprep.subr.bf16.mxu0 0
    %5888 = vmatpush1.bf16.msra.mxu0 %v5841
    %5889 = vmatprep.subr.bf16.mxu0 0
    %5890 = vmatpush2.bf16.msra.mxu0 %v5856
    %5891 = vmatprep.subr.bf16.mxu0 0
    %5892 = vmatpush2.bf16.msra.mxu0 %v5855
    %5893 = vmatprep.subr.bf16.mxu0 0
    %5894 = vmatpush2.bf16.msra.mxu0 %v5854
    %5895 = vmatprep.subr.bf16.mxu0 0
    %5896 = vmatpush2.bf16.msra.mxu0 %v5853
    %5897 = vmatprep.subr.bf16.mxu0 0
    %5898 = vmatpush2.bf16.msra.mxu0 %v5852
    %5899 = vmatprep.subr.bf16.mxu0 0
    %5900 = vmatpush2.bf16.msra.mxu0 %v5851
    %5901 = vmatprep.subr.bf16.mxu0 0
    %5902 = vmatpush2.bf16.msra.mxu0 %v5850
    %5903 = vmatprep.subr.bf16.mxu0 0
    %5904 = vmatpush2.bf16.msra.mxu0 %v5849
    %5905 = vmatprep.mubr.bf16.mxu0 %v5606
    %5906 = vmatmul.mubr.bf16.gmra.mxu0 %v5605
    %v5907 = vpop.f32.mrf.mxu0
    %v5908 = vadd.f32 %v5772, %v5907
    %v5909 = vpop.f32.mrf.mxu0
    %v5910 = vpop.f32.mrf.mxu0
    %v5911 = vpop.f32.mrf.mxu0
    %5912 = vdwg.mxu0
    %v5913 = vlaneseq
    %v5914 = vshrl.u32 %v5913, 7
    %v5915 = vsub.s32 0, %v5914
    %v5916 = vrot.slane %v75, %v5915
    %v5917 = vadd.f32 %v5908, %v5916
    %v5918 = vld [vmem:[#allocation4 + $0x60c] sm:$0xf]
    %v5919 = vld [vmem:[#allocation4 + $0x61c] sm:$0xf]
    %v5920 = vld [vmem:[#allocation4 + $0x62c] sm:$0xf]
    %v5921 = vld [vmem:[#allocation4 + $0x63c] sm:$0xf]
    %v5922 = vld [vmem:[#allocation4 + $0x64c] sm:$0xf]
    %v5923 = vld [vmem:[#allocation4 + $0x65c] sm:$0xf]
    %v5924 = vld [vmem:[#allocation4 + $0x66c] sm:$0xf]
    %v5925 = vld [vmem:[#allocation4 + $0x67c] sm:$0xf]
    %v5926 = vld [vmem:[#allocation4 + $0x68c] sm:$0xf]
    %v5927 = vld [vmem:[#allocation4 + $0x69c] sm:$0xf]
    %v5928 = vld [vmem:[#allocation4 + $0x6ac] sm:$0xf]
    %v5929 = vld [vmem:[#allocation4 + $0x6bc] sm:$0xf]
    %v5930 = vld [vmem:[#allocation4 + $0x6cc] sm:$0xf]
    %v5931 = vld [vmem:[#allocation4 + $0x6dc] sm:$0xf]
    %v5932 = vld [vmem:[#allocation4 + $0x6ec] sm:$0xf]
    %v5933 = vld [vmem:[#allocation4 + $0x6fc] sm:$0xf]
    %v5934 = vld [vmem:[#allocation4 + $0x70c] sm:$0xf]
    %v5935 = vld [vmem:[#allocation4 + $0x71c] sm:$0xf]
    %v5936 = vld [vmem:[#allocation4 + $0x72c] sm:$0xf]
    %v5937 = vld [vmem:[#allocation4 + $0x73c] sm:$0xf]
    %v5938 = vld [vmem:[#allocation4 + $0x74c] sm:$0xf]
    %v5939 = vld [vmem:[#allocation4 + $0x75c] sm:$0xf]
    %v5940 = vld [vmem:[#allocation4 + $0x76c] sm:$0xf]
    %v5941 = vld [vmem:[#allocation4 + $0x77c] sm:$0xf]
    %v5942 = vld [vmem:[#allocation4 + $0x78c] sm:$0xf]
    %v5943 = vld [vmem:[#allocation4 + $0x79c] sm:$0xf]
    %v5944 = vld [vmem:[#allocation4 + $0x7ac] sm:$0xf]
    %v5945 = vld [vmem:[#allocation4 + $0x7bc] sm:$0xf]
    %v5946 = vld [vmem:[#allocation4 + $0x7cc] sm:$0xf]
    %v5947 = vld [vmem:[#allocation4 + $0x7dc] sm:$0xf]
    %v5948 = vld [vmem:[#allocation4 + $0x7ec] sm:$0xf]
    %v5949 = vld [vmem:[#allocation4 + $0x7fc] sm:$0xf]
    %v5950 = vlaneseq
    %v5951 = vshrl.u32 %v5950, 7
    %v5952 = vsub.s32 1, %v5951
    %v5953 = vrot.slane %v75, %v5952
    %v5986 = vunpack.c.l.b16 %v5918
    %v5987 = vunpack.c.l.b16 %v5919
    %v5988 = vunpack.c.l.b16 %v5920
    %v5989 = vunpack.c.l.b16 %v5921
    %v5990 = vunpack.c.l.b16 %v5922
    %v5991 = vunpack.c.l.b16 %v5923
    %v5992 = vunpack.c.l.b16 %v5924
    %v5993 = vunpack.c.l.b16 %v5925
    %v5994 = vunpack.c.l.b16 %v5926
    %v5995 = vunpack.c.l.b16 %v5927
    %v5996 = vunpack.c.l.b16 %v5928
    %v5997 = vunpack.c.l.b16 %v5929
    %v5998 = vunpack.c.l.b16 %v5930
    %v5999 = vunpack.c.l.b16 %v5931
    %v6000 = vunpack.c.l.b16 %v5932
    %v6001 = vunpack.c.l.b16 %v5933
    %v6002 = vunpack.c.l.b16 %v5934
    %v6003 = vunpack.c.l.b16 %v5935
    %v6004 = vunpack.c.l.b16 %v5936
    %v6005 = vunpack.c.l.b16 %v5937
    %v6006 = vunpack.c.l.b16 %v5938
    %v6007 = vunpack.c.l.b16 %v5939
    %v6008 = vunpack.c.l.b16 %v5940
    %v6009 = vunpack.c.l.b16 %v5941
    %v6010 = vunpack.c.l.b16 %v5942
    %v6011 = vunpack.c.l.b16 %v5943
    %v6012 = vunpack.c.l.b16 %v5944
    %v6013 = vunpack.c.l.b16 %v5945
    %v6014 = vunpack.c.l.b16 %v5946
    %v6015 = vunpack.c.l.b16 %v5947
    %v6016 = vunpack.c.l.b16 %v5948
    %v6017 = vunpack.c.l.b16 %v5949
    %v6018 = vpack.c.b16 %v5987, %v5986
    %v6019 = vpack.c.b16 %v5989, %v5988
    %v6020 = vpack.c.b16 %v5991, %v5990
    %v6021 = vpack.c.b16 %v5993, %v5992
    %v6022 = vpack.c.b16 %v5995, %v5994
    %v6023 = vpack.c.b16 %v5997, %v5996
    %v6024 = vpack.c.b16 %v5999, %v5998
    %v6025 = vpack.c.b16 %v6001, %v6000
    %v6026 = vpack.c.b16 %v6003, %v6002
    %v6027 = vpack.c.b16 %v6005, %v6004
    %v6028 = vpack.c.b16 %v6007, %v6006
    %v6029 = vpack.c.b16 %v6009, %v6008
    %v6030 = vpack.c.b16 %v6011, %v6010
    %v6031 = vpack.c.b16 %v6013, %v6012
    %v6032 = vpack.c.b16 %v6015, %v6014
    %v6033 = vpack.c.b16 %v6017, %v6016
    %6050 = vmatprep.subr.bf16.mxu0 0
    %6051 = vmatpush1.bf16.msra.mxu0 %v6025
    %6052 = vmatprep.subr.bf16.mxu0 0
    %6053 = vmatpush1.bf16.msra.mxu0 %v6024
    %6054 = vmatprep.subr.bf16.mxu0 0
    %6055 = vmatpush1.bf16.msra.mxu0 %v6023
    %6056 = vmatprep.subr.bf16.mxu0 0
    %6057 = vmatpush1.bf16.msra.mxu0 %v6022
    %6058 = vmatprep.subr.bf16.mxu0 0
    %6059 = vmatpush1.bf16.msra.mxu0 %v6021
    %6060 = vmatprep.subr.bf16.mxu0 0
    %6061 = vmatpush1.bf16.msra.mxu0 %v6020
    %6062 = vmatprep.subr.bf16.mxu0 0
    %6063 = vmatpush1.bf16.msra.mxu0 %v6019
    %6064 = vmatprep.subr.bf16.mxu0 0
    %6065 = vmatpush1.bf16.msra.mxu0 %v6018
    %6066 = vmatprep.subr.bf16.mxu0 0
    %6067 = vmatpush2.bf16.msra.mxu0 %v6033
    %6068 = vmatprep.subr.bf16.mxu0 0
    %6069 = vmatpush2.bf16.msra.mxu0 %v6032
    %6070 = vmatprep.subr.bf16.mxu0 0
    %6071 = vmatpush2.bf16.msra.mxu0 %v6031
    %6072 = vmatprep.subr.bf16.mxu0 0
    %6073 = vmatpush2.bf16.msra.mxu0 %v6030
    %6074 = vmatprep.subr.bf16.mxu0 0
    %6075 = vmatpush2.bf16.msra.mxu0 %v6029
    %6076 = vmatprep.subr.bf16.mxu0 0
    %6077 = vmatpush2.bf16.msra.mxu0 %v6028
    %6078 = vmatprep.subr.bf16.mxu0 0
    %6079 = vmatpush2.bf16.msra.mxu0 %v6027
    %6080 = vmatprep.subr.bf16.mxu0 0
    %6081 = vmatpush2.bf16.msra.mxu0 %v6026
    %6082 = vmatprep.mubr.bf16.mxu0 %v5640
    %6083 = vmatmul.mubr.bf16.gmra.mxu0 %v5639
    %v6084 = vpop.f32.mrf.mxu0
    %v6085 = vadd.f32 %v5953, %v6084
    %v6086 = vpop.f32.mrf.mxu0
    %v6087 = vpop.f32.mrf.mxu0
    %v6088 = vpop.f32.mrf.mxu0
    %6089 = vdwg.mxu0
    %v6090 = vmul.f32 %v6085, 0.5
    %v6091 = vmul.f32 %v6090, 1.442695
    %v6092 = vpow.pop %v6091
    %v6093 = vmul.f32 %v6092, %v80
    %v6094 = vadd.f32 %v6093, %v5917
    %6095 = vst [vmem:[%s4] sm:$0x3] %v6094
    // Predicated region
    $region30: #{encoder_forward.1} parent=1 // pred_check
      _
    $region31: #{encoder_forward.1} parent=1 // pred_check_branch
      %6097 = sbr.rel (0) target = $region33
    $region32: #{encoder_forward.1} parent=1 // pred_region
      _
    $region33: #{encoder_forward.1} parent=1 // pred_fallthru
      _
    // Predicated region
    $region34: #{encoder_forward.1} parent=1 // pred_check
      _
    $region35: #{encoder_forward.1} parent=1 // pred_check_branch
      %6099 = sbr.rel (0) target = $region37
    $region36: #{encoder_forward.1} parent=1 // pred_region
      _
    $region37: #{encoder_forward.1} parent=1 // pred_fallthru
      _
    %6100 = vsyncpa [#allocation7], 1
  %6101 = vsyncmov [#allocation5]
  %s6102 = vpop.sfrf %6101
  %p6103 = scmp.eq.s32.totalorder %s6102, 0
  %p6104 = pneg %p6103
  %6106 = shalt.err (%p6104)
  %s6107 = scalar_lea.sflag [#allocation5], 1
  %6108 = vsyncmov %s6107
  %s6109 = vpop.sfrf %6108
  %p6110 = scmp.eq.s32.totalorder %s6109, 0
  %p6111 = pneg %p6110
  %6113 = shalt.err (%p6111)
  %s6114 = scalar_lea.sflag [#allocation5], 2
  %6115 = vsyncmov %s6114
  %s6116 = vpop.sfrf %6115
  %p6117 = scmp.eq.s32.totalorder %s6116, 0
  %p6118 = pneg %p6117
  %6120 = shalt.err (%p6118)

</llo_original>
